<compile_context>
chip_gen: v7x
topology: tpu7x:2x2x1
jax: 0.10.0
libtpu: 0.0.40
codegen_flags: <defaults>
</compile_context>

<pallas_src>
import math

import jax
import jax.numpy as jnp
from jax import lax
from jax.experimental import pallas as pl
from jax.experimental.pallas import tpu as pltpu


# ----------------------------------------------------------------------------
# Pallas kernel: fused TransBottleneck forward for ONE batch element.
# ----------------------------------------------------------------------------
def transbottleneck_kernel(
    x_ref,        # (1, H, W, Cin)  bf16  input tile (NHWC)
    w1_ref,       # (Cin, Cp)       bf16  conv1 1x1, bn1 scale folded
    w2_ref,       # (9*Cp, Cp)      bf16  conv2 3x3 im2col-packed, bn2 scale folded
    w3_ref,       # (Cp, 4*Cp)      bf16  conv3 deconv taps concatenated, bn3 folded
    wu_ref,       # (Cin, 4*Cp)     bf16  upsample deconv taps concatenated, bn folded
    b1_ref,       # (1, Cp)         f32   bn1 bias
    b2_ref,       # (1, Cp)         f32   bn2 bias
    bt_ref,       # (1, 4*Cp)       f32   (bn3 bias + upsample-bn bias) tiled per tap
    alpha_ref,    # (1, 1)          f32   shared PReLU alpha (SMEM)
    out_ref,      # (1, H*W, 4*Cp)  f32   lane-dense output slab
    pad_ref,      # (H+2, W, Cp)    f32   VMEM scratch: row-halo padded h1
):
    _, H, W, Cin = x_ref.shape
    Cp = w1_ref.shape[1]
    alpha = alpha_ref[0, 0]

    def prelu(z):
        return jnp.where(z >= 0, z, alpha * z)

    x_flat = x_ref[0].reshape(H * W, Cin)                    # bf16

    # ---- conv1 (1x1) + bn1 + PReLU (bn scale folded into w1) ----------------
    h1 = jnp.dot(x_flat, w1_ref[...], preferred_element_type=jnp.float32)
    h1 = prelu(h1 + b1_ref[...])                             # (H*W, Cp) f32

    # ---- conv2 (3x3, stride 1, pad 1) + bn2 + PReLU -------------------------
    # Row halo via scratch (leading-dim slices); column shift via sublane roll
    # + edge mask; 9 patches -> single im2col matmul with K = 9*Cp.
    zero_row = jnp.zeros((W, Cp), pad_ref.dtype)
    pad_ref[0] = zero_row
    pad_ref[H + 1] = zero_row
    pad_ref[1:H + 1] = h1.reshape(H, W, Cp)

    col = lax.broadcasted_iota(jnp.int32, (H, W, Cp), 1)     # W index
    patches = []
    for di in range(3):
        rows = pad_ref[di:di + H]                            # (H, W, Cp) f32
        for dj in range(3):
            if dj == 1:
                sh = rows
            else:
                # sh[:, j] = rows[:, j + dj - 1]  (zero outside the image)
                sh = pltpu.roll(rows, shift=(1 - dj) % W, axis=1)
                if dj == 0:
                    sh = jnp.where(col >= 1, sh, 0.0)
                else:  # dj == 2
                    sh = jnp.where(col <= W - 2, sh, 0.0)
            patches.append(sh.reshape(H * W, Cp))
    cols = jnp.concatenate(patches, axis=-1).astype(jnp.bfloat16)   # (H*W, 9*Cp)
    h2 = jnp.dot(cols, w2_ref[...], preferred_element_type=jnp.float32)
    h2 = prelu(h2 + b2_ref[...]).astype(jnp.bfloat16)        # (H*W, Cp) bf16

    # ---- conv3 + bn3 ; upsample + bn ; add ; PReLU --------------------------
    # The 4 (ki,kj) deconv taps are fused into the lane dimension (4*Cp wide).
    y = jnp.dot(h2, w3_ref[...], preferred_element_type=jnp.float32)
    y = y + jnp.dot(x_flat, wu_ref[...], preferred_element_type=jnp.float32)
    out_ref[0] = prelu(y + bt_ref[...])                      # (H*W, 4*Cp) f32


# ----------------------------------------------------------------------------
# Offline parameter packing: fold BN, pack im2col / tap weights, cast to bf16.
# ----------------------------------------------------------------------------
def _fold_bn(p, name, eps=1e-5):
    s = p[f"{name}_g"] / jnp.sqrt(p[f"{name}_v"] + eps)
    b = p[f"{name}_b"] - p[f"{name}_m"] * s
    return s, b


def pack_params(p):
    Cin = p["w1"].shape[0]
    Cp = p["w1"].shape[1]
    s1, b1 = _fold_bn(p, "bn1")
    s2, b2 = _fold_bn(p, "bn2")
    s3, b3 = _fold_bn(p, "bn3")
    su, bu = _fold_bn(p, "bnu")
    bf16 = jnp.bfloat16

    w1 = (p["w1"] * s1[None, :]).astype(bf16)                           # (Cin, Cp)
    w2 = (p["w2"] * s2[None, None, None, :]).reshape(9 * Cp, Cp).astype(bf16)
    # deconv taps: (ki,kj,ci,co) -> (ci, ki*2+kj, co) -> (ci, 4*co)
    w3 = (p["w3"] * s3[None, None, None, :]).transpose(2, 0, 1, 3) \
        .reshape(Cp, 4 * Cp).astype(bf16)
    wu = (p["wu"] * su[None, None, None, :]).transpose(2, 0, 1, 3) \
        .reshape(Cin, 4 * Cp).astype(bf16)
    return dict(
        w1=w1, w2=w2, w3=w3, wu=wu,
        b1=b1.reshape(1, Cp).astype(jnp.float32),
        b2=b2.reshape(1, Cp).astype(jnp.float32),
        bt=jnp.tile((b3 + bu).reshape(1, Cp), (1, 4)).astype(jnp.float32),
        alpha=p["alpha"].astype(jnp.float32),
    )


# ----------------------------------------------------------------------------
# Wrapper
# ----------------------------------------------------------------------------
def trans_bottleneck_forward(x_nchw, packed):
    """x_nchw: (N, Cin, H, W) f32 -> (N, Cp, 2H, 2W) f32 (NCHW)."""
    x = jnp.transpose(x_nchw, (0, 2, 3, 1)).astype(jnp.bfloat16)   # NHWC bf16
    N, H, W, Cin = x.shape
    Cp = packed["w1"].shape[1]

    weights = [packed[k] for k in ("w1", "w2", "w3", "wu", "b1", "b2", "bt")]
    full = lambda a: pl.BlockSpec(a.shape, lambda n, _nd=a.ndim: (0,) * _nd)

    out = pl.pallas_call(
        transbottleneck_kernel,
        out_shape=jax.ShapeDtypeStruct((N, H * W, 4 * Cp), jnp.float32),
        grid_spec=pltpu.PrefetchScalarGridSpec(
            num_scalar_prefetch=0,
            grid=(N,),
            in_specs=[pl.BlockSpec((1, H, W, Cin), lambda n: (n, 0, 0, 0))]
                     + [full(a) for a in weights]
                     + [pl.BlockSpec(memory_space=pltpu.MemorySpace.SMEM)],
            out_specs=pl.BlockSpec((1, H * W, 4 * Cp), lambda n: (n, 0, 0)),
            scratch_shapes=[pltpu.VMEM((H + 2, W, Cp), jnp.float32)],
        ),
        compiler_params=pltpu.CompilerParams(
            dimension_semantics=("parallel",),      # independent batch elements
            vmem_limit_bytes=32 << 20,              # headroom at production shapes
        ),
    )(x, *weights, packed["alpha"])

    # Glue: interleave the 4 deconv taps -> (N, 2H, 2W, Cp), then back to NCHW.
    out = (out.reshape(N, H, W, 2, 2, Cp)
              .transpose(0, 1, 3, 2, 4, 5)
              .reshape(N, 2 * H, 2 * W, Cp))
    return jnp.transpose(out, (0, 3, 1, 2))


# ----------------------------------------------------------------------------
# Pure-JAX reference (module semantics, convs via lax/einsum, quantization
# points matched to the kernel's bf16 casts so the comparison is tight).
# ----------------------------------------------------------------------------
def reference_forward(x_nchw, raw):
    f32 = jnp.float32
    q = lambda a: a.astype(jnp.bfloat16).astype(f32)
    s1, b1 = _fold_bn(raw, "bn1")
    s2, b2 = _fold_bn(raw, "bn2")
    s3, b3 = _fold_bn(raw, "bn3")
    su, bu = _fold_bn(raw, "bnu")
    alpha = raw["alpha"][0, 0]
    prelu = lambda z: jnp.where(z >= 0, z, alpha * z)
    dn = ("NHWC", "HWIO", "NHWC")

    x = q(jnp.transpose(x_nchw, (0, 2, 3, 1)).astype(f32))
    w1q = q(raw["w1"] * s1[None, :])
    w2q = q(raw["w2"] * s2[None, None, None, :])
    w3q = q(raw["w3"] * s3[None, None, None, :])
    wuq = q(raw["wu"] * su[None, None, None, :])

    h = jnp.einsum("nhwc,cd->nhwd", x, w1q)
    h = q(prelu(h + b1))
    h = lax.conv_general_dilated(h, w2q, (1, 1), ((1, 1), (1, 1)),
                                 dimension_numbers=dn)
    h = q(prelu(h + b2))

    def deconv2x2(z, wk):   # ConvTranspose2d(k=2, s=2, p=0)
        Nb, H, W, _ = z.shape
        Co = wk.shape[-1]
        blocks = jnp.einsum("nhwc,ijcd->nhiwjd", z, wk)
        return blocks.reshape(Nb, 2 * H, 2 * W, Co)

    out = prelu(deconv2x2(h, w3q) + deconv2x2(x, wuq) + (b3 + bu))
    return jnp.transpose(out, (0, 3, 1, 2)).astype(f32)


# ----------------------------------------------------------------------------
# Deterministic parameter construction (mirrors nn.Module.__init__ shapes).
# Conv weights: xavier_uniform.  BN: gamma=1, beta=0 (per __init__); running
# mean/var are randomized so the eval-mode BN fold is exercised non-trivially.
# ----------------------------------------------------------------------------
def make_params(key, inplanes, planes):
    def xavier(k, shape, fan_in, fan_out):
        a = math.sqrt(6.0 / (fan_in + fan_out))
        return jax.random.uniform(k, shape, jnp.float32, -a, a)

    keys = jax.random.split(key, 8)
    p = dict(
        # conv1: torch (planes, inplanes, 1, 1) -> (Cin, Cp)
        w1=xavier(keys[0], (inplanes, planes), inplanes, planes),
        # conv2: torch (planes, planes, 3, 3) -> (3, 3, Cin, Cout)
        w2=xavier(keys[1], (3, 3, planes, planes), planes * 9, planes * 9),
        # conv3 (transpose): torch (planes, planes, 2, 2) -> (2, 2, Cin, Cout)
        w3=xavier(keys[2], (2, 2, planes, planes), planes * 4, planes * 4),
        # upsample (transpose): torch (inplanes, planes, 2, 2) -> (2, 2, Cin, Cout)
        wu=xavier(keys[3], (2, 2, inplanes, planes), inplanes * 4, planes * 4),
        alpha=jnp.full((1, 1), 0.25, jnp.float32),   # nn.PReLU() default
    )
    for i, name in enumerate(("bn1", "bn2", "bn3", "bnu")):
        km, kv = jax.random.split(keys[4 + i])
        p[f"{name}_g"] = jnp.ones((planes,), jnp.float32)
        p[f"{name}_b"] = jnp.zeros((planes,), jnp.float32)
        p[f"{name}_m"] = 0.1 * jax.random.normal(km, (planes,), jnp.float32)
        p[f"{name}_v"] = jax.random.uniform(kv, (planes,), jnp.float32, 0.5, 1.5)
    return p


if __name__ == "__main__":
    key = jax.random.PRNGKey(0)
    kx, kp = jax.random.split(key)

    N, Cin, Cp, H, W = 2, 4, 8, 16, 16                        # small synthetic shapes
    x = jax.random.normal(kx, (N, Cin, H, W), jnp.float32)    # NCHW like PyTorch
    raw = make_params(kp, Cin, Cp)
    packed = pack_params(raw)

    out = jax.block_until_ready(trans_bottleneck_forward(x, packed))
    ref = jax.block_until_ready(reference_forward(x, raw))

    assert out.shape == (N, Cp, 2 * H, 2 * W), out.shape
    err = float(jnp.max(jnp.abs(out - ref)))
    assert err < 1e-2, err
    print("KERNEL_OK")
</pallas_src>

<mosaic_0001>
module attributes {stable_mosaic.version = 11 : i64} {
  func.func @transbottleneck_kernel(%arg0: i32, %arg1: memref<1x16x16x4xbf16, #tpu.memory_space<vmem>>, %arg2: memref<4x8xbf16, #tpu.memory_space<vmem>>, %arg3: memref<72x8xbf16, #tpu.memory_space<vmem>>, %arg4: memref<8x32xbf16, #tpu.memory_space<vmem>>, %arg5: memref<4x32xbf16, #tpu.memory_space<vmem>>, %arg6: memref<1x8xf32, #tpu.memory_space<vmem>>, %arg7: memref<1x8xf32, #tpu.memory_space<vmem>>, %arg8: memref<1x32xf32, #tpu.memory_space<vmem>>, %arg9: memref<1x1xf32, #tpu.memory_space<smem>>, %arg10: memref<1x256x32xf32, #tpu.memory_space<vmem>>, %arg11: memref<18x16x8xf32, #tpu.memory_space<vmem>>) attributes {dimension_semantics = [#tpu.dimension_semantics<parallel>], iteration_bounds = array<i64: 2>, scalar_prefetch = 0 : i64, scratch_operands = 1 : i64, tpu.core_type = #tpu.core_type<tc>, window_params = [{transform_indices = @transform_0, window_bounds = array<i64: 1, 16, 16, 4>}, {pipeline_mode = #tpu.pipeline_mode<synchronous>, transform_indices = @transform_1, window_bounds = array<i64: 4, 8>}, {pipeline_mode = #tpu.pipeline_mode<synchronous>, transform_indices = @transform_2, window_bounds = array<i64: 72, 8>}, {pipeline_mode = #tpu.pipeline_mode<synchronous>, transform_indices = @transform_3, window_bounds = array<i64: 8, 32>}, {pipeline_mode = #tpu.pipeline_mode<synchronous>, transform_indices = @transform_4, window_bounds = array<i64: 4, 32>}, {pipeline_mode = #tpu.pipeline_mode<synchronous>, transform_indices = @transform_5, window_bounds = array<i64: 1, 8>}, {pipeline_mode = #tpu.pipeline_mode<synchronous>, transform_indices = @transform_6, window_bounds = array<i64: 1, 8>}, {pipeline_mode = #tpu.pipeline_mode<synchronous>, transform_indices = @transform_7, window_bounds = array<i64: 1, 32>}, {transform_indices = @transform_8, window_bounds = array<i64: 1, 1>}, {transform_indices = @transform_9, window_bounds = array<i64: 1, 256, 32>}]} {
    %c0 = arith.constant 0 : index
    %c0_0 = arith.constant 0 : index
    %0 = memref.load %arg9[%c0, %c0_0] : memref<1x1xf32, #tpu.memory_space<smem>>
    %c0_1 = arith.constant 0 : index
    %c0_2 = arith.constant 0 : index
    %c0_3 = arith.constant 0 : index
    %c0_4 = arith.constant 0 : index
    %1 = vector.load %arg1[%c0_1, %c0_2, %c0_3, %c0_4] : memref<1x16x16x4xbf16, #tpu.memory_space<vmem>>, vector<1x16x16x4xbf16>
    %2 = vector.shape_cast %1 : vector<1x16x16x4xbf16> to vector<16x16x4xbf16>
    %3 = vector.shape_cast %2 : vector<16x16x4xbf16> to vector<256x4xbf16>
    %c0_5 = arith.constant 0 : index
    %c0_6 = arith.constant 0 : index
    %4 = vector.load %arg2[%c0_5, %c0_6] : memref<4x8xbf16, #tpu.memory_space<vmem>>, vector<4x8xbf16>
    %cst = arith.constant dense<0.000000e+00> : vector<256x8xf32>
    %5 = tpu.matmul %3, %4, %cst {dimension_numbers = #tpu.dot_dimension_numbers<[1], [0], [0], [1], [0, 0, 1, 1], [], []>} : vector<256x4xbf16>, vector<4x8xbf16>, vector<256x8xf32> -> vector<256x8xf32>
    %c0_7 = arith.constant 0 : index
    %c0_8 = arith.constant 0 : index
    %6 = vector.load %arg6[%c0_7, %c0_8] : memref<1x8xf32, #tpu.memory_space<vmem>>, vector<1x8xf32>
    %7 = vector.broadcast %6 : vector<1x8xf32> to vector<256x8xf32>
    %8 = arith.addf %5, %7 : vector<256x8xf32>
    %cst_9 = arith.constant 0.000000e+00 : f32
    %9 = vector.broadcast %cst_9 : f32 to vector<256x8xf32>
    %10 = arith.cmpf oge, %8, %9 : vector<256x8xf32>
    %11 = vector.broadcast %0 : f32 to vector<256x8xf32>
    %12 = arith.mulf %11, %8 : vector<256x8xf32>
    %13 = arith.select %10, %8, %12 : vector<256x8xi1>, vector<256x8xf32>
    %cst_10 = arith.constant 0.000000e+00 : f32
    %14 = vector.broadcast %cst_10 : f32 to vector<16x8xf32>
    %c0_11 = arith.constant 0 : index
    %c0_12 = arith.constant 0 : index
    %c0_13 = arith.constant 0 : index
    %15 = vector.load %arg11[%c0_11, %c0_12, %c0_13] : memref<18x16x8xf32, #tpu.memory_space<vmem>>, vector<1x16x8xf32>
    %16 = vector.shape_cast %15 : vector<1x16x8xf32> to vector<16x8xf32>
    %17 = vector.shape_cast %14 : vector<16x8xf32> to vector<1x16x8xf32>
    tpu.vector_store %arg11[%c0_11, %c0_12, %c0_13], %17 {strides = array<i32>} : memref<18x16x8xf32, #tpu.memory_space<vmem>>, vector<1x16x8xf32>,
    %c17 = arith.constant 17 : index
    %c0_14 = arith.constant 0 : index
    %c0_15 = arith.constant 0 : index
    %18 = vector.load %arg11[%c17, %c0_14, %c0_15] : memref<18x16x8xf32, #tpu.memory_space<vmem>>, vector<1x16x8xf32>
    %19 = vector.shape_cast %18 : vector<1x16x8xf32> to vector<16x8xf32>
    %20 = vector.shape_cast %14 : vector<16x8xf32> to vector<1x16x8xf32>
    tpu.vector_store %arg11[%c17, %c0_14, %c0_15], %20 {strides = array<i32>} : memref<18x16x8xf32, #tpu.memory_space<vmem>>, vector<1x16x8xf32>,
    %21 = vector.shape_cast %13 : vector<256x8xf32> to vector<16x16x8xf32>
    %c1 = arith.constant 1 : index
    %c0_16 = arith.constant 0 : index
    %c0_17 = arith.constant 0 : index
    %22 = vector.load %arg11[%c1, %c0_16, %c0_17] : memref<18x16x8xf32, #tpu.memory_space<vmem>>, vector<16x16x8xf32>
    tpu.vector_store %arg11[%c1, %c0_16, %c0_17], %21 {strides = array<i32>} : memref<18x16x8xf32, #tpu.memory_space<vmem>>, vector<16x16x8xf32>,
    %23 = tpu.iota {dimensions = array<i32: 1>} : vector<16x16x8xi32>
    %c0_18 = arith.constant 0 : index
    %c0_19 = arith.constant 0 : index
    %c0_20 = arith.constant 0 : index
    %24 = vector.load %arg11[%c0_18, %c0_19, %c0_20] : memref<18x16x8xf32, #tpu.memory_space<vmem>>, vector<16x16x8xf32>
    %c1_i32 = arith.constant 1 : i32
    %25 = tpu.dynamic_rotate %24 by %c1_i32 dim 1 : vector<16x16x8xf32>, i32 -> vector<16x16x8xf32>
    %c1_i32_21 = arith.constant 1 : i32
    %26 = vector.broadcast %c1_i32_21 : i32 to vector<16x16x8xi32>
    %27 = arith.cmpi sge, %23, %26 : vector<16x16x8xi32>
    %cst_22 = arith.constant 0.000000e+00 : f32
    %28 = vector.broadcast %cst_22 : f32 to vector<16x16x8xf32>
    %29 = arith.select %27, %25, %28 : vector<16x16x8xi1>, vector<16x16x8xf32>
    %30 = vector.shape_cast %29 : vector<16x16x8xf32> to vector<256x8xf32>
    %31 = vector.shape_cast %24 : vector<16x16x8xf32> to vector<256x8xf32>
    %c15_i32 = arith.constant 15 : i32
    %32 = tpu.dynamic_rotate %24 by %c15_i32 dim 1 : vector<16x16x8xf32>, i32 -> vector<16x16x8xf32>
    %c14_i32 = arith.constant 14 : i32
    %33 = vector.broadcast %c14_i32 : i32 to vector<16x16x8xi32>
    %34 = arith.cmpi sle, %23, %33 : vector<16x16x8xi32>
    %cst_23 = arith.constant 0.000000e+00 : f32
    %35 = vector.broadcast %cst_23 : f32 to vector<16x16x8xf32>
    %36 = arith.select %34, %32, %35 : vector<16x16x8xi1>, vector<16x16x8xf32>
    %37 = vector.shape_cast %36 : vector<16x16x8xf32> to vector<256x8xf32>
    %c1_24 = arith.constant 1 : index
    %c0_25 = arith.constant 0 : index
    %c0_26 = arith.constant 0 : index
    %38 = vector.load %arg11[%c1_24, %c0_25, %c0_26] : memref<18x16x8xf32, #tpu.memory_space<vmem>>, vector<16x16x8xf32>
    %c1_i32_27 = arith.constant 1 : i32
    %39 = tpu.dynamic_rotate %38 by %c1_i32_27 dim 1 : vector<16x16x8xf32>, i32 -> vector<16x16x8xf32>
    %c1_i32_28 = arith.constant 1 : i32
    %40 = vector.broadcast %c1_i32_28 : i32 to vector<16x16x8xi32>
    %41 = arith.cmpi sge, %23, %40 : vector<16x16x8xi32>
    %cst_29 = arith.constant 0.000000e+00 : f32
    %42 = vector.broadcast %cst_29 : f32 to vector<16x16x8xf32>
    %43 = arith.select %41, %39, %42 : vector<16x16x8xi1>, vector<16x16x8xf32>
    %44 = vector.shape_cast %43 : vector<16x16x8xf32> to vector<256x8xf32>
    %45 = vector.shape_cast %38 : vector<16x16x8xf32> to vector<256x8xf32>
    %c15_i32_30 = arith.constant 15 : i32
    %46 = tpu.dynamic_rotate %38 by %c15_i32_30 dim 1 : vector<16x16x8xf32>, i32 -> vector<16x16x8xf32>
    %c14_i32_31 = arith.constant 14 : i32
    %47 = vector.broadcast %c14_i32_31 : i32 to vector<16x16x8xi32>
    %48 = arith.cmpi sle, %23, %47 : vector<16x16x8xi32>
    %cst_32 = arith.constant 0.000000e+00 : f32
    %49 = vector.broadcast %cst_32 : f32 to vector<16x16x8xf32>
    %50 = arith.select %48, %46, %49 : vector<16x16x8xi1>, vector<16x16x8xf32>
    %51 = vector.shape_cast %50 : vector<16x16x8xf32> to vector<256x8xf32>
    %c2 = arith.constant 2 : index
    %c0_33 = arith.constant 0 : index
    %c0_34 = arith.constant 0 : index
    %52 = vector.load %arg11[%c2, %c0_33, %c0_34] : memref<18x16x8xf32, #tpu.memory_space<vmem>>, vector<16x16x8xf32>
    %c1_i32_35 = arith.constant 1 : i32
    %53 = tpu.dynamic_rotate %52 by %c1_i32_35 dim 1 : vector<16x16x8xf32>, i32 -> vector<16x16x8xf32>
    %c1_i32_36 = arith.constant 1 : i32
    %54 = vector.broadcast %c1_i32_36 : i32 to vector<16x16x8xi32>
    %55 = arith.cmpi sge, %23, %54 : vector<16x16x8xi32>
    %cst_37 = arith.constant 0.000000e+00 : f32
    %56 = vector.broadcast %cst_37 : f32 to vector<16x16x8xf32>
    %57 = arith.select %55, %53, %56 : vector<16x16x8xi1>, vector<16x16x8xf32>
    %58 = vector.shape_cast %57 : vector<16x16x8xf32> to vector<256x8xf32>
    %59 = vector.shape_cast %52 : vector<16x16x8xf32> to vector<256x8xf32>
    %c15_i32_38 = arith.constant 15 : i32
    %60 = tpu.dynamic_rotate %52 by %c15_i32_38 dim 1 : vector<16x16x8xf32>, i32 -> vector<16x16x8xf32>
    %c14_i32_39 = arith.constant 14 : i32
    %61 = vector.broadcast %c14_i32_39 : i32 to vector<16x16x8xi32>
    %62 = arith.cmpi sle, %23, %61 : vector<16x16x8xi32>
    %cst_40 = arith.constant 0.000000e+00 : f32
    %63 = vector.broadcast %cst_40 : f32 to vector<16x16x8xf32>
    %64 = arith.select %62, %60, %63 : vector<16x16x8xi1>, vector<16x16x8xf32>
    %65 = vector.shape_cast %64 : vector<16x16x8xf32> to vector<256x8xf32>
    %66 = tpu.concatenate %30, %31, %37, %44, %45, %51, %58, %59, %65 in 1 : vector<256x8xf32>, vector<256x8xf32>, vector<256x8xf32>, vector<256x8xf32>, vector<256x8xf32>, vector<256x8xf32>, vector<256x8xf32>, vector<256x8xf32>, vector<256x8xf32> -> vector<256x72xf32>
    %67 = arith.truncf %66 : vector<256x72xf32> to vector<256x72xbf16>
    %c0_41 = arith.constant 0 : index
    %c0_42 = arith.constant 0 : index
    %68 = vector.load %arg3[%c0_41, %c0_42] : memref<72x8xbf16, #tpu.memory_space<vmem>>, vector<72x8xbf16>
    %cst_43 = arith.constant dense<0.000000e+00> : vector<256x8xf32>
    %69 = tpu.matmul %67, %68, %cst_43 {dimension_numbers = #tpu.dot_dimension_numbers<[1], [0], [0], [1], [0, 0, 1, 1], [], []>} : vector<256x72xbf16>, vector<72x8xbf16>, vector<256x8xf32> -> vector<256x8xf32>
    %c0_44 = arith.constant 0 : index
    %c0_45 = arith.constant 0 : index
    %70 = vector.load %arg7[%c0_44, %c0_45] : memref<1x8xf32, #tpu.memory_space<vmem>>, vector<1x8xf32>
    %71 = vector.broadcast %70 : vector<1x8xf32> to vector<256x8xf32>
    %72 = arith.addf %69, %71 : vector<256x8xf32>
    %cst_46 = arith.constant 0.000000e+00 : f32
    %73 = vector.broadcast %cst_46 : f32 to vector<256x8xf32>
    %74 = arith.cmpf oge, %72, %73 : vector<256x8xf32>
    %75 = vector.broadcast %0 : f32 to vector<256x8xf32>
    %76 = arith.mulf %75, %72 : vector<256x8xf32>
    %77 = arith.select %74, %72, %76 : vector<256x8xi1>, vector<256x8xf32>
    %78 = arith.truncf %77 : vector<256x8xf32> to vector<256x8xbf16>
    %c0_47 = arith.constant 0 : index
    %c0_48 = arith.constant 0 : index
    %79 = vector.load %arg4[%c0_47, %c0_48] : memref<8x32xbf16, #tpu.memory_space<vmem>>, vector<8x32xbf16>
    %cst_49 = arith.constant dense<0.000000e+00> : vector<256x32xf32>
    %80 = tpu.matmul %78, %79, %cst_49 {dimension_numbers = #tpu.dot_dimension_numbers<[1], [0], [0], [1], [0, 0, 1, 1], [], []>} : vector<256x8xbf16>, vector<8x32xbf16>, vector<256x32xf32> -> vector<256x32xf32>
    %c0_50 = arith.constant 0 : index
    %c0_51 = arith.constant 0 : index
    %81 = vector.load %arg5[%c0_50, %c0_51] : memref<4x32xbf16, #tpu.memory_space<vmem>>, vector<4x32xbf16>
    %cst_52 = arith.constant dense<0.000000e+00> : vector<256x32xf32>
    %82 = tpu.matmul %3, %81, %cst_52 {dimension_numbers = #tpu.dot_dimension_numbers<[1], [0], [0], [1], [0, 0, 1, 1], [], []>} : vector<256x4xbf16>, vector<4x32xbf16>, vector<256x32xf32> -> vector<256x32xf32>
    %83 = arith.addf %80, %82 : vector<256x32xf32>
    %c0_53 = arith.constant 0 : index
    %c0_54 = arith.constant 0 : index
    %84 = vector.load %arg8[%c0_53, %c0_54] : memref<1x32xf32, #tpu.memory_space<vmem>>, vector<1x32xf32>
    %85 = vector.broadcast %84 : vector<1x32xf32> to vector<256x32xf32>
    %86 = arith.addf %83, %85 : vector<256x32xf32>
    %cst_55 = arith.constant 0.000000e+00 : f32
    %87 = vector.broadcast %cst_55 : f32 to vector<256x32xf32>
    %88 = arith.cmpf oge, %86, %87 : vector<256x32xf32>
    %89 = vector.broadcast %0 : f32 to vector<256x32xf32>
    %90 = arith.mulf %89, %86 : vector<256x32xf32>
    %91 = arith.select %88, %86, %90 : vector<256x32xi1>, vector<256x32xf32>
    %c0_56 = arith.constant 0 : index
    %c0_57 = arith.constant 0 : index
    %c0_58 = arith.constant 0 : index
    %92 = vector.load %arg10[%c0_56, %c0_57, %c0_58] : memref<1x256x32xf32, #tpu.memory_space<vmem>>, vector<1x256x32xf32>
    %93 = vector.shape_cast %92 : vector<1x256x32xf32> to vector<256x32xf32>
    %94 = vector.shape_cast %91 : vector<256x32xf32> to vector<1x256x32xf32>
    tpu.vector_store %arg10[%c0_56, %c0_57, %c0_58], %94 {strides = array<i32>} : memref<1x256x32xf32, #tpu.memory_space<vmem>>, vector<1x256x32xf32>,
    return
  }
  func.func @transform_0(%arg0: i32) -> (i32, i32, i32, i32) {
    %c0_i32 = arith.constant 0 : i32
    %c0_i32_0 = arith.constant 0 : i32
    %c0_i32_1 = arith.constant 0 : i32
    %c0_i32_2 = arith.constant 0 : i32
    return %arg0, %c0_i32, %c0_i32_0, %c0_i32_1 : i32, i32, i32, i32
  }
  func.func @transform_1(%arg0: i32) -> (i32, i32) {
    %c0_i32 = arith.constant 0 : i32
    %c0_i32_0 = arith.constant 0 : i32
    %c0_i32_1 = arith.constant 0 : i32
    return %c0_i32, %c0_i32_0 : i32, i32
  }
  func.func @transform_2(%arg0: i32) -> (i32, i32) {
    %c0_i32 = arith.constant 0 : i32
    %c0_i32_0 = arith.constant 0 : i32
    %c0_i32_1 = arith.constant 0 : i32
    return %c0_i32, %c0_i32_0 : i32, i32
  }
  func.func @transform_3(%arg0: i32) -> (i32, i32) {
    %c0_i32 = arith.constant 0 : i32
    %c0_i32_0 = arith.constant 0 : i32
    %c0_i32_1 = arith.constant 0 : i32
    return %c0_i32, %c0_i32_0 : i32, i32
  }
  func.func @transform_4(%arg0: i32) -> (i32, i32) {
    %c0_i32 = arith.constant 0 : i32
    %c0_i32_0 = arith.constant 0 : i32
    %c0_i32_1 = arith.constant 0 : i32
    return %c0_i32, %c0_i32_0 : i32, i32
  }
  func.func @transform_5(%arg0: i32) -> (i32, i32) {
    %c0_i32 = arith.constant 0 : i32
    %c0_i32_0 = arith.constant 0 : i32
    %c0_i32_1 = arith.constant 0 : i32
    return %c0_i32, %c0_i32_0 : i32, i32
  }
  func.func @transform_6(%arg0: i32) -> (i32, i32) {
    %c0_i32 = arith.constant 0 : i32
    %c0_i32_0 = arith.constant 0 : i32
    %c0_i32_1 = arith.constant 0 : i32
    return %c0_i32, %c0_i32_0 : i32, i32
  }
  func.func @transform_7(%arg0: i32) -> (i32, i32) {
    %c0_i32 = arith.constant 0 : i32
    %c0_i32_0 = arith.constant 0 : i32
    %c0_i32_1 = arith.constant 0 : i32
    return %c0_i32, %c0_i32_0 : i32, i32
  }
  func.func @transform_8(%arg0: i32) -> (i32, i32) {
    %c0_i32 = arith.constant 0 : i32
    %c0_i32_0 = arith.constant 0 : i32
    %c0_i32_1 = arith.constant 0 : i32
    return %c0_i32, %c0_i32_0 : i32, i32
  }
  func.func @transform_9(%arg0: i32) -> (i32, i32, i32) {
    %c0_i32 = arith.constant 0 : i32
    %c0_i32_0 = arith.constant 0 : i32
    %c0_i32_1 = arith.constant 0 : i32
    return %arg0, %c0_i32, %c0_i32_0 : i32, i32, i32
  }
}

</mosaic_0001>

<llo_original>
// kernel: tpu_custom_call.1
$region0: #{tpu_custom_call.1}
  #allocation0 [shape = 'u32[]', space=smem, size = 0x4, offset = 0x4, fixed_abs, tag = 'smem constant byte address 0x4 - core index']
  #allocation1 [shape = 'u32[144,128]{1,0:T(1,128)}', space=vmem, size = 0x12000, scoped, tag = 'internal scratch']
  #allocation2 [shape = 'f32[18,16,8]{2,1,0:T(8,128)}', space=vmem, size = 0x24000, scoped, tag = 'scratch operand']
  #allocation3 [shape = 'f32[1,1]{1,0:T(1,128)S(6)}', space=smem, size = 0x200, scoped, tag = 'scoped memory for tpu_custom_call.1']
  %s0 = inlined_call_operand.vmem [shape: bf16[2,16,16,4], index: 0, kind: input, shape index: {}]
  %s1 = inlined_call_operand.vmem [shape: bf16[4,8], index: 1, kind: input, shape index: {}]
  %s2 = inlined_call_operand.vmem [shape: bf16[72,8], index: 2, kind: input, shape index: {}]
  %s3 = inlined_call_operand.vmem [shape: bf16[8,32], index: 3, kind: input, shape index: {}]
  %s4 = inlined_call_operand.vmem [shape: bf16[4,32], index: 4, kind: input, shape index: {}]
  %s5 = inlined_call_operand.vmem [shape: f32[1,8], index: 5, kind: input, shape index: {}]
  %s6 = inlined_call_operand.vmem [shape: f32[1,8], index: 6, kind: input, shape index: {}]
  %s7 = inlined_call_operand.vmem [shape: f32[1,32], index: 7, kind: input, shape index: {}]
  %s8 = inlined_call_operand.<no memory space> [shape: f32[1,1], index: 8, kind: input, shape index: {}]
  %s9 = inlined_call_operand.vmem [shape: f32[2,256,32], index: 9, kind: output, shape index: {}]
  %s10 = sld [smem:[#allocation0]]
  $region69: #{tpu_custom_call.1} parent=0
    _
  %s12 = ssub.s32 1, %s10
  %s13 = scalar_select 0, %s12, %s10
  %14 = sst [smem:[#allocation3]] %s8
  loop: start=0, step=1, limit=4
  $region2: #{tpu_custom_call.1} parent=0 // loop_pre_header
    _
  $region3: #{tpu_custom_call.1} parent=0 // loop_header
    %s16 = sphi 0, %s20
    %p17 = scmp.ge.s32.totalorder %s16, 4
    %s26 = sphi 0, %s28
    %s29 = sphi 0, %s26
    %s30 = sphi 0, %s29
    %s46 = sphi 0, %s30
    %s50 = sphi 0, %s50
    %s52 = sphi 0, %s50
    %s53 = sphi 0, %s52
    %s67 = sphi 0, %s53
    %s71 = sphi 0, %s71
    %s73 = sphi 0, %s71
    %s74 = sphi 0, %s73
    %s88 = sphi 0, %s74
    %s92 = sphi 0, %s92
    %s94 = sphi 0, %s92
    %s95 = sphi 0, %s94
    %s109 = sphi 0, %s95
    %s113 = sphi 0, %s113
    %s115 = sphi 0, %s113
    %s116 = sphi 0, %s115
    %s130 = sphi 0, %s116
    %s134 = sphi 0, %s134
    %s136 = sphi 0, %s134
    %s137 = sphi 0, %s136
    %s151 = sphi 0, %s137
    %s155 = sphi 0, %s155
    %s157 = sphi 0, %s155
    %s158 = sphi 0, %s157
    %s172 = sphi 0, %s158
    %s176 = sphi 0, %s176
    %s178 = sphi 0, %s176
    %s179 = sphi 0, %s178
    %s193 = sphi 0, %s179
    %s197 = sphi 0, %s197
    %s199 = sphi 0, %s197
    %s200 = sphi 0, %s199
    %s214 = sphi 0, %s200
    %s220 = sphi 0, %s222
    %s223 = sphi 0, %s220
    %s224 = sphi 0, %s223
    %s240 = sphi 0, %s224
  $region4: #{tpu_custom_call.1} parent=0 // loop_header_branch
    %19 = sbr.rel (%p17) target = $region8
  $region5: #{tpu_custom_call.1} parent=0 // loop_body
    %s21 = ssub.s32 %s16, 1
    %s22 = ssub.s32 %s16, 2
    %s23 = sadd.s32 %s16, 1
    %s24 = ssub.s32 %s16, %s23
    %p25 = scmp.eq.s32.totalorder %s24, 0
    %s27 = sadd.s32 %s26, 1
    %s28 = scalar_select %p25, %s26, %s27
    %p31 = pneg %p25
    %p32 = scmp.eq.s32.totalorder %s16, 1
    %p33 = por %p31, %p32
    %p34 = scmp.ne.s32.totalorder %s26, %s29
    %p35 = scmp.eq.s32.totalorder %s16, 0
    %p36 = por %p34, %p35
    %p37 = scmp.ne.s32.totalorder %s26, %s29
    %p38 = scmp.eq.s32.totalorder %s21, 1
    %p39 = por %p37, %p38
    %p40 = scmp.ne.s32.totalorder %s29, %s30
    %p41 = scmp.eq.s32.totalorder %s21, 0
    %p42 = por %p40, %p41
    %p43 = scmp.ne.s32.totalorder %s29, %s30
    %p44 = scmp.eq.s32.totalorder %s22, 1
    %p45 = por %p43, %p44
    %p47 = scmp.ne.s32.totalorder %s30, %s46
    %p48 = scmp.eq.s32.totalorder %s22, 0
    %p49 = por %p47, %p48
    %s51 = sadd.s32 %s50, 1
    %p54 = scmp.eq.s32.totalorder %s16, 1
    %p55 = scmp.ne.s32.totalorder %s50, %s52
    %p56 = scmp.eq.s32.totalorder %s16, 0
    %p57 = por %p55, %p56
    %p58 = scmp.ne.s32.totalorder %s50, %s52
    %p59 = scmp.eq.s32.totalorder %s21, 1
    %p60 = por %p58, %p59
    %p61 = scmp.ne.s32.totalorder %s52, %s53
    %p62 = scmp.eq.s32.totalorder %s21, 0
    %p63 = por %p61, %p62
    %p64 = scmp.ne.s32.totalorder %s52, %s53
    %p65 = scmp.eq.s32.totalorder %s22, 1
    %p66 = por %p64, %p65
    %p68 = scmp.ne.s32.totalorder %s53, %s67
    %p69 = scmp.eq.s32.totalorder %s22, 0
    %p70 = por %p68, %p69
    %s72 = sadd.s32 %s71, 1
    %p75 = scmp.eq.s32.totalorder %s16, 1
    %p76 = scmp.ne.s32.totalorder %s71, %s73
    %p77 = scmp.eq.s32.totalorder %s16, 0
    %p78 = por %p76, %p77
    %p79 = scmp.ne.s32.totalorder %s71, %s73
    %p80 = scmp.eq.s32.totalorder %s21, 1
    %p81 = por %p79, %p80
    %p82 = scmp.ne.s32.totalorder %s73, %s74
    %p83 = scmp.eq.s32.totalorder %s21, 0
    %p84 = por %p82, %p83
    %p85 = scmp.ne.s32.totalorder %s73, %s74
    %p86 = scmp.eq.s32.totalorder %s22, 1
    %p87 = por %p85, %p86
    %p89 = scmp.ne.s32.totalorder %s74, %s88
    %p90 = scmp.eq.s32.totalorder %s22, 0
    %p91 = por %p89, %p90
    %s93 = sadd.s32 %s92, 1
    %p96 = scmp.eq.s32.totalorder %s16, 1
    %p97 = scmp.ne.s32.totalorder %s92, %s94
    %p98 = scmp.eq.s32.totalorder %s16, 0
    %p99 = por %p97, %p98
    %p100 = scmp.ne.s32.totalorder %s92, %s94
    %p101 = scmp.eq.s32.totalorder %s21, 1
    %p102 = por %p100, %p101
    %p103 = scmp.ne.s32.totalorder %s94, %s95
    %p104 = scmp.eq.s32.totalorder %s21, 0
    %p105 = por %p103, %p104
    %p106 = scmp.ne.s32.totalorder %s94, %s95
    %p107 = scmp.eq.s32.totalorder %s22, 1
    %p108 = por %p106, %p107
    %p110 = scmp.ne.s32.totalorder %s95, %s109
    %p111 = scmp.eq.s32.totalorder %s22, 0
    %p112 = por %p110, %p111
    %s114 = sadd.s32 %s113, 1
    %p117 = scmp.eq.s32.totalorder %s16, 1
    %p118 = scmp.ne.s32.totalorder %s113, %s115
    %p119 = scmp.eq.s32.totalorder %s16, 0
    %p120 = por %p118, %p119
    %p121 = scmp.ne.s32.totalorder %s113, %s115
    %p122 = scmp.eq.s32.totalorder %s21, 1
    %p123 = por %p121, %p122
    %p124 = scmp.ne.s32.totalorder %s115, %s116
    %p125 = scmp.eq.s32.totalorder %s21, 0
    %p126 = por %p124, %p125
    %p127 = scmp.ne.s32.totalorder %s115, %s116
    %p128 = scmp.eq.s32.totalorder %s22, 1
    %p129 = por %p127, %p128
    %p131 = scmp.ne.s32.totalorder %s116, %s130
    %p132 = scmp.eq.s32.totalorder %s22, 0
    %p133 = por %p131, %p132
    %s135 = sadd.s32 %s134, 1
    %p138 = scmp.eq.s32.totalorder %s16, 1
    %p139 = scmp.ne.s32.totalorder %s134, %s136
    %p140 = scmp.eq.s32.totalorder %s16, 0
    %p141 = por %p139, %p140
    %p142 = scmp.ne.s32.totalorder %s134, %s136
    %p143 = scmp.eq.s32.totalorder %s21, 1
    %p144 = por %p142, %p143
    %p145 = scmp.ne.s32.totalorder %s136, %s137
    %p146 = scmp.eq.s32.totalorder %s21, 0
    %p147 = por %p145, %p146
    %p148 = scmp.ne.s32.totalorder %s136, %s137
    %p149 = scmp.eq.s32.totalorder %s22, 1
    %p150 = por %p148, %p149
    %p152 = scmp.ne.s32.totalorder %s137, %s151
    %p153 = scmp.eq.s32.totalorder %s22, 0
    %p154 = por %p152, %p153
    %s156 = sadd.s32 %s155, 1
    %p159 = scmp.eq.s32.totalorder %s16, 1
    %p160 = scmp.ne.s32.totalorder %s155, %s157
    %p161 = scmp.eq.s32.totalorder %s16, 0
    %p162 = por %p160, %p161
    %p163 = scmp.ne.s32.totalorder %s155, %s157
    %p164 = scmp.eq.s32.totalorder %s21, 1
    %p165 = por %p163, %p164
    %p166 = scmp.ne.s32.totalorder %s157, %s158
    %p167 = scmp.eq.s32.totalorder %s21, 0
    %p168 = por %p166, %p167
    %p169 = scmp.ne.s32.totalorder %s157, %s158
    %p170 = scmp.eq.s32.totalorder %s22, 1
    %p171 = por %p169, %p170
    %p173 = scmp.ne.s32.totalorder %s158, %s172
    %p174 = scmp.eq.s32.totalorder %s22, 0
    %p175 = por %p173, %p174
    %s177 = sadd.s32 %s176, 1
    %p180 = scmp.eq.s32.totalorder %s16, 1
    %p181 = scmp.ne.s32.totalorder %s176, %s178
    %p182 = scmp.eq.s32.totalorder %s16, 0
    %p183 = por %p181, %p182
    %p184 = scmp.ne.s32.totalorder %s176, %s178
    %p185 = scmp.eq.s32.totalorder %s21, 1
    %p186 = por %p184, %p185
    %p187 = scmp.ne.s32.totalorder %s178, %s179
    %p188 = scmp.eq.s32.totalorder %s21, 0
    %p189 = por %p187, %p188
    %p190 = scmp.ne.s32.totalorder %s178, %s179
    %p191 = scmp.eq.s32.totalorder %s22, 1
    %p192 = por %p190, %p191
    %p194 = scmp.ne.s32.totalorder %s179, %s193
    %p195 = scmp.eq.s32.totalorder %s22, 0
    %p196 = por %p194, %p195
    %s198 = sadd.s32 %s197, 1
    %p201 = scmp.eq.s32.totalorder %s16, 1
    %p202 = scmp.ne.s32.totalorder %s197, %s199
    %p203 = scmp.eq.s32.totalorder %s16, 0
    %p204 = por %p202, %p203
    %p205 = scmp.ne.s32.totalorder %s197, %s199
    %p206 = scmp.eq.s32.totalorder %s21, 1
    %p207 = por %p205, %p206
    %p208 = scmp.ne.s32.totalorder %s199, %s200
    %p209 = scmp.eq.s32.totalorder %s21, 0
    %p210 = por %p208, %p209
    %p211 = scmp.ne.s32.totalorder %s199, %s200
    %p212 = scmp.eq.s32.totalorder %s22, 1
    %p213 = por %p211, %p212
    %p215 = scmp.ne.s32.totalorder %s200, %s214
    %p216 = scmp.eq.s32.totalorder %s22, 0
    %p217 = por %p215, %p216
    %s218 = ssub.s32 %s16, %s23
    %p219 = scmp.eq.s32.totalorder %s218, 0
    %s221 = sadd.s32 %s220, 1
    %s222 = scalar_select %p219, %s220, %s221
    %p225 = pneg %p219
    %p226 = scmp.eq.s32.totalorder %s16, 1
    %p227 = por %p225, %p226
    %p228 = scmp.ne.s32.totalorder %s220, %s223
    %p229 = scmp.eq.s32.totalorder %s16, 0
    %p230 = por %p228, %p229
    %p231 = scmp.ne.s32.totalorder %s220, %s223
    %p232 = scmp.eq.s32.totalorder %s21, 1
    %p233 = por %p231, %p232
    %p234 = scmp.ne.s32.totalorder %s223, %s224
    %p235 = scmp.eq.s32.totalorder %s21, 0
    %p236 = por %p234, %p235
    %p237 = scmp.ne.s32.totalorder %s223, %s224
    %p238 = scmp.eq.s32.totalorder %s22, 1
    %p239 = por %p237, %p238
    %p241 = scmp.ne.s32.totalorder %s224, %s240
    %p242 = scmp.eq.s32.totalorder %s22, 0
    %p243 = por %p241, %p242
    %p244 = scmp.le.s32.totalorder 1, %s16
    %p245 = scmp.lt.s32.totalorder %s16, 3
    %p246 = pnand %p244, %p245
    %p247 = pneg %p246
    // Predicated region
    $region9: #{tpu_custom_call.1} parent=5 // pred_check
      _
    $region10: #{tpu_custom_call.1} parent=5 // pred_check_branch
      %249 = sbr.rel (%p246) target = $region12
    $region11: #{tpu_custom_call.1} parent=5 // pred_region
      %s250 = ssub.s32 %s16, 1
      // Predicated region
      $region13: #{tpu_custom_call.1} parent=11 // pred_check
        %p251 = pneg %p63
      $region14: #{tpu_custom_call.1} parent=11 // pred_check_branch
        %253 = sbr.rel (%p251) target = $region16
      $region15: #{tpu_custom_call.1} parent=11 // pred_region
        _
      $region16: #{tpu_custom_call.1} parent=11 // pred_fallthru
        _
      // Predicated region
      $region17: #{tpu_custom_call.1} parent=11 // pred_check
        %p254 = pneg %p84
      $region18: #{tpu_custom_call.1} parent=11 // pred_check_branch
        %256 = sbr.rel (%p254) target = $region20
      $region19: #{tpu_custom_call.1} parent=11 // pred_region
        _
      $region20: #{tpu_custom_call.1} parent=11 // pred_fallthru
        _
      // Predicated region
      $region21: #{tpu_custom_call.1} parent=11 // pred_check
        %p257 = pneg %p105
      $region22: #{tpu_custom_call.1} parent=11 // pred_check_branch
        %259 = sbr.rel (%p257) target = $region24
      $region23: #{tpu_custom_call.1} parent=11 // pred_region
        _
      $region24: #{tpu_custom_call.1} parent=11 // pred_fallthru
        _
      // Predicated region
      $region25: #{tpu_custom_call.1} parent=11 // pred_check
        %p260 = pneg %p126
      $region26: #{tpu_custom_call.1} parent=11 // pred_check_branch
        %262 = sbr.rel (%p260) target = $region28
      $region27: #{tpu_custom_call.1} parent=11 // pred_region
        _
      $region28: #{tpu_custom_call.1} parent=11 // pred_fallthru
        _
      // Predicated region
      $region29: #{tpu_custom_call.1} parent=11 // pred_check
        %p263 = pneg %p147
      $region30: #{tpu_custom_call.1} parent=11 // pred_check_branch
        %265 = sbr.rel (%p263) target = $region32
      $region31: #{tpu_custom_call.1} parent=11 // pred_region
        _
      $region32: #{tpu_custom_call.1} parent=11 // pred_fallthru
        _
      // Predicated region
      $region33: #{tpu_custom_call.1} parent=11 // pred_check
        %p266 = pneg %p168
      $region34: #{tpu_custom_call.1} parent=11 // pred_check_branch
        %268 = sbr.rel (%p266) target = $region36
      $region35: #{tpu_custom_call.1} parent=11 // pred_region
        _
      $region36: #{tpu_custom_call.1} parent=11 // pred_fallthru
        _
      // Predicated region
      $region37: #{tpu_custom_call.1} parent=11 // pred_check
        %p269 = pneg %p189
      $region38: #{tpu_custom_call.1} parent=11 // pred_check_branch
        %271 = sbr.rel (%p269) target = $region40
      $region39: #{tpu_custom_call.1} parent=11 // pred_region
        _
      $region40: #{tpu_custom_call.1} parent=11 // pred_fallthru
        _
      // Predicated region
      $region41: #{tpu_custom_call.1} parent=11 // pred_check
        %p272 = pneg %p210
      $region42: #{tpu_custom_call.1} parent=11 // pred_check_branch
        %274 = sbr.rel (%p272) target = $region44
      $region43: #{tpu_custom_call.1} parent=11 // pred_region
        _
      $region44: #{tpu_custom_call.1} parent=11 // pred_fallthru
        _
    $region12: #{tpu_custom_call.1} parent=5 // pred_fallthru
      _
    %p275 = scmp.lt.s32.totalorder %s16, 2
    // Predicated region
    $region45: #{tpu_custom_call.1} parent=5 // pred_check
      %p276 = pneg %p275
    $region46: #{tpu_custom_call.1} parent=5 // pred_check_branch
      %278 = sbr.rel (%p276) target = $region48
    $region47: #{tpu_custom_call.1} parent=5 // pred_region
      // Predicated region
      $region49: #{tpu_custom_call.1} parent=47 // pred_check
        %p279 = pneg %p36
      $region50: #{tpu_custom_call.1} parent=47 // pred_check_branch
        %281 = sbr.rel (%p279) target = $region52
      $region51: #{tpu_custom_call.1} parent=47 // pred_region
        %p282 = scmp.lt.s32.totalorder %s16, 1
        %s283 = scalar_select %p282, %s16, 1
        %s284 = smul.addr %s283, 32
        %s285 = smul.addr %s284, 4
        %s286 = scalar_lea.vmem %s0, %s285
      $region52: #{tpu_custom_call.1} parent=47 // pred_fallthru
        _
    $region48: #{tpu_custom_call.1} parent=5 // pred_fallthru
      _
    %p287 = scmp.le.s32.totalorder 1, %s16
    %p288 = scmp.lt.s32.totalorder %s16, 3
    %p289 = pnand %p287, %p288
    %p290 = pneg %p289
    // Predicated region
    $region53: #{tpu_custom_call.1} parent=5 // pred_check
      _
    $region54: #{tpu_custom_call.1} parent=5 // pred_check_branch
      %292 = sbr.rel (%p289) target = $region56
    $region55: #{tpu_custom_call.1} parent=5 // pred_region
      %s293 = ssub.s32 %s16, 1
      %p294 = scmp.lt.s32.totalorder %s21, 1
      %s295 = scalar_select %p294, %s21, 1
      %s296 = smul.addr %s295, 32
      %s297 = smul.addr %s296, 4
      %s298 = scalar_lea.vmem %s0, %s297
      %p299 = pneg %p42
      %p300 = pneg %p39
      %p301 = pneg %p63
      %p302 = pneg %p60
      %p303 = pneg %p84
      %p304 = pneg %p81
      %p305 = pneg %p105
      %p306 = pneg %p102
      %p307 = pneg %p126
      %p308 = pneg %p123
      %p309 = pneg %p147
      %p310 = pneg %p144
      %p311 = pneg %p168
      %p312 = pneg %p165
      %p313 = pneg %p189
      %p314 = pneg %p186
      %p315 = pneg %p210
      %p316 = pneg %p207
      %p317 = pneg %p236
      %p318 = pneg %p233
      %p319 = scmp.lt.s32.totalorder %s21, 1
      %s320 = scalar_select %p319, %s21, 1
      %s321 = smul.addr %s320, 32
      %s322 = smul.addr %s321, 8
      %s323 = scalar_lea.vmem %s9, %s322
      %p324 = scmp.lt.s32.totalorder %s21, 1
      %s325 = scalar_select %p324, %s21, 1
      %s326 = smul.addr %s325, 32
      %s327 = smul.addr %s326, 4
      %s328 = scalar_lea.vmem %s0, %s327
      %p329 = scmp.lt.s32.totalorder %s21, 1
      %s330 = scalar_select %p329, %s21, 1
      %s331 = smul.addr %s330, 32
      %s332 = smul.addr %s331, 8
      %s333 = scalar_lea.vmem %s9, %s332
      %s335 = sld [smem:[#allocation3]]
      %v336 = vld [vmem:[%s328] sm:$0xf]
      %v337 = vld [vmem:[%s328 + $0x4] sm:$0xf]
      %v338 = vld [vmem:[%s328 + $0x8] sm:$0xf]
      %v339 = vld [vmem:[%s328 + $0xc] sm:$0xf]
      %v340 = vld [vmem:[%s328 + $0x10] sm:$0xf]
      %v341 = vld [vmem:[%s328 + $0x14] sm:$0xf]
      %v342 = vld [vmem:[%s328 + $0x18] sm:$0xf]
      %v343 = vld [vmem:[%s328 + $0x1c] sm:$0xf]
      %v344 = vld [vmem:[%s328 + $0x20] sm:$0xf]
      %v345 = vld [vmem:[%s328 + $0x24] sm:$0xf]
      %v346 = vld [vmem:[%s328 + $0x28] sm:$0xf]
      %v347 = vld [vmem:[%s328 + $0x2c] sm:$0xf]
      %v348 = vld [vmem:[%s328 + $0x30] sm:$0xf]
      %v349 = vld [vmem:[%s328 + $0x34] sm:$0xf]
      %v350 = vld [vmem:[%s328 + $0x38] sm:$0xf]
      %v351 = vld [vmem:[%s328 + $0x3c] sm:$0xf]
      %v352 = vld [vmem:[%s328 + $0x40] sm:$0xf]
      %v353 = vld [vmem:[%s328 + $0x44] sm:$0xf]
      %v354 = vld [vmem:[%s328 + $0x48] sm:$0xf]
      %v355 = vld [vmem:[%s328 + $0x4c] sm:$0xf]
      %v356 = vld [vmem:[%s328 + $0x50] sm:$0xf]
      %v357 = vld [vmem:[%s328 + $0x54] sm:$0xf]
      %v358 = vld [vmem:[%s328 + $0x58] sm:$0xf]
      %v359 = vld [vmem:[%s328 + $0x5c] sm:$0xf]
      %v360 = vld [vmem:[%s328 + $0x60] sm:$0xf]
      %v361 = vld [vmem:[%s328 + $0x64] sm:$0xf]
      %v362 = vld [vmem:[%s328 + $0x68] sm:$0xf]
      %v363 = vld [vmem:[%s328 + $0x6c] sm:$0xf]
      %v364 = vld [vmem:[%s328 + $0x70] sm:$0xf]
      %v365 = vld [vmem:[%s328 + $0x74] sm:$0xf]
      %v366 = vld [vmem:[%s328 + $0x78] sm:$0xf]
      %v367 = vld [vmem:[%s328 + $0x7c] sm:$0xf]
      %v368 = vld [vmem:[%s1] sm:$0x3]
      %v369 = vld [vmem:[%s5] sm:$0x1]
      %v371 = vlaneseq
      %v372 = vshrl.u32 %v371, 7
      %v373 = vsub.s32 0, %v372
      %v374 = vrot.slane %v369, %v373
      %v408 = vunpack.c.l.b16 %v336
      %v409 = vunpack.c.l.b16 %v337
      %v410 = vunpack.c.l.b16 %v338
      %v411 = vunpack.c.l.b16 %v339
      %v412 = vunpack.c.l.b16 %v340
      %v413 = vunpack.c.l.b16 %v341
      %v414 = vunpack.c.l.b16 %v342
      %v415 = vunpack.c.l.b16 %v343
      %v416 = vunpack.c.l.b16 %v344
      %v417 = vunpack.c.l.b16 %v345
      %v418 = vunpack.c.l.b16 %v346
      %v419 = vunpack.c.l.b16 %v347
      %v420 = vunpack.c.l.b16 %v348
      %v421 = vunpack.c.l.b16 %v349
      %v422 = vunpack.c.l.b16 %v350
      %v423 = vunpack.c.l.b16 %v351
      %v424 = vunpack.c.l.b16 %v352
      %v425 = vunpack.c.l.b16 %v353
      %v426 = vunpack.c.l.b16 %v354
      %v427 = vunpack.c.l.b16 %v355
      %v428 = vunpack.c.l.b16 %v356
      %v429 = vunpack.c.l.b16 %v357
      %v430 = vunpack.c.l.b16 %v358
      %v431 = vunpack.c.l.b16 %v359
      %v432 = vunpack.c.l.b16 %v360
      %v433 = vunpack.c.l.b16 %v361
      %v434 = vunpack.c.l.b16 %v362
      %v435 = vunpack.c.l.b16 %v363
      %v436 = vunpack.c.l.b16 %v364
      %v437 = vunpack.c.l.b16 %v365
      %v438 = vunpack.c.l.b16 %v366
      %v439 = vunpack.c.l.b16 %v367
      %v440 = vpack.c.b16 %v409, %v408
      %v441 = vpack.c.b16 %v411, %v410
      %v442 = vpack.c.b16 %v413, %v412
      %v443 = vpack.c.b16 %v415, %v414
      %v444 = vpack.c.b16 %v417, %v416
      %v445 = vpack.c.b16 %v419, %v418
      %v446 = vpack.c.b16 %v421, %v420
      %v447 = vpack.c.b16 %v423, %v422
      %v448 = vpack.c.b16 %v425, %v424
      %v449 = vpack.c.b16 %v427, %v426
      %v450 = vpack.c.b16 %v429, %v428
      %v451 = vpack.c.b16 %v431, %v430
      %v452 = vpack.c.b16 %v433, %v432
      %v453 = vpack.c.b16 %v435, %v434
      %v454 = vpack.c.b16 %v437, %v436
      %v455 = vpack.c.b16 %v439, %v438
      %vm456 = vcmask 31744
      %v458 = vsel %vm456, %v440, 0
      %v461 = vsel %vm456, %v441, 0
      %v464 = vsel %vm456, %v442, 0
      %v467 = vsel %vm456, %v443, 0
      %v470 = vsel %vm456, %v444, 0
      %v473 = vsel %vm456, %v445, 0
      %v476 = vsel %vm456, %v446, 0
      %v479 = vsel %vm456, %v447, 0
      %v482 = vsel %vm456, %v448, 0
      %v485 = vsel %vm456, %v449, 0
      %v488 = vsel %vm456, %v450, 0
      %v491 = vsel %vm456, %v451, 0
      %v494 = vsel %vm456, %v452, 0
      %v497 = vsel %vm456, %v453, 0
      %v500 = vsel %vm456, %v454, 0
      %v503 = vsel %vm456, %v455, 0
      %vm505 = vcmask 1041408
      %v507 = vsel %vm505, %v368, 0
      %509 = vmatprep.subr.bf16.mxu0 0
      %510 = vmatpush1.bf16.msra.mxu0 %v507
      %511 = vmatprep.subr.bf16.mxu0 0
      %512 = vmatpush1.bf16.msra.mxu0 0
      %513 = vmatprep.subr.bf16.mxu0 0
      %514 = vmatpush1.bf16.msra.mxu0 0
      %515 = vmatprep.subr.bf16.mxu0 0
      %516 = vmatpush1.bf16.msra.mxu0 0
      %517 = vmatprep.subr.bf16.mxu0 0
      %518 = vmatpush1.bf16.msra.mxu0 0
      %519 = vmatprep.subr.bf16.mxu0 0
      %520 = vmatpush1.bf16.msra.mxu0 0
      %521 = vmatprep.subr.bf16.mxu0 0
      %522 = vmatpush1.bf16.msra.mxu0 0
      %523 = vmatprep.subr.bf16.mxu0 0
      %524 = vmatpush1.bf16.msra.mxu0 0
      %525 = vmatprep.subr.bf16.mxu0 0
      %526 = vmatpush1.bf16.msra.mxu0 0
      %527 = vmatprep.subr.bf16.mxu0 0
      %528 = vmatpush1.bf16.msra.mxu0 0
      %529 = vmatprep.subr.bf16.mxu0 0
      %530 = vmatpush1.bf16.msra.mxu0 0
      %531 = vmatprep.subr.bf16.mxu0 0
      %532 = vmatpush1.bf16.msra.mxu0 0
      %533 = vmatprep.subr.bf16.mxu0 0
      %534 = vmatpush1.bf16.msra.mxu0 0
      %535 = vmatprep.subr.bf16.mxu0 0
      %536 = vmatpush1.bf16.msra.mxu0 0
      %537 = vmatprep.subr.bf16.mxu0 0
      %538 = vmatpush1.bf16.msra.mxu0 0
      %539 = vmatprep.subr.bf16.mxu0 0
      %540 = vmatpush1.bf16.msra.mxu0 0
      %541 = vmatprep.mubr.bf16.mxu0 0
      %542 = vmatmul.mubr.bf16.gmra.mrb[0].mxu0 %v458
      %v543 = vpop.f32.mrb[0].mxu0
      %v544 = vadd.f32 %v374, %v543
      %v545 = vpop.f32.mrb[0].mxu0
      %v546 = vpop.f32.mrb[0].mxu0
      %v547 = vadd.f32 %v374, %v546
      %v548 = vpop.f32.mrb[0].mxu0
      %549 = vmatprep.mubr.bf16.mxu0 0
      %550 = vmatmul.mubr.bf16.gmra.mrb[0].mxu0 %v461
      %v551 = vpop.f32.mrb[0].mxu0
      %v552 = vadd.f32 %v374, %v551
      %v553 = vpop.f32.mrb[0].mxu0
      %v554 = vpop.f32.mrb[0].mxu0
      %v555 = vadd.f32 %v374, %v554
      %v556 = vpop.f32.mrb[0].mxu0
      %557 = vmatprep.mubr.bf16.mxu0 0
      %558 = vmatmul.mubr.bf16.gmra.mrb[0].mxu0 %v464
      %v559 = vpop.f32.mrb[0].mxu0
      %v560 = vadd.f32 %v374, %v559
      %v561 = vpop.f32.mrb[0].mxu0
      %v562 = vpop.f32.mrb[0].mxu0
      %v563 = vadd.f32 %v374, %v562
      %v564 = vpop.f32.mrb[0].mxu0
      %565 = vmatprep.mubr.bf16.mxu0 0
      %566 = vmatmul.mubr.bf16.gmra.mrb[0].mxu0 %v467
      %v567 = vpop.f32.mrb[0].mxu0
      %v568 = vadd.f32 %v374, %v567
      %v569 = vpop.f32.mrb[0].mxu0
      %v570 = vpop.f32.mrb[0].mxu0
      %v571 = vadd.f32 %v374, %v570
      %v572 = vpop.f32.mrb[0].mxu0
      %573 = vmatprep.mubr.bf16.mxu0 0
      %574 = vmatmul.mubr.bf16.gmra.mrb[0].mxu0 %v470
      %v575 = vpop.f32.mrb[0].mxu0
      %v576 = vadd.f32 %v374, %v575
      %v577 = vpop.f32.mrb[0].mxu0
      %v578 = vpop.f32.mrb[0].mxu0
      %v579 = vadd.f32 %v374, %v578
      %v580 = vpop.f32.mrb[0].mxu0
      %581 = vmatprep.mubr.bf16.mxu0 0
      %582 = vmatmul.mubr.bf16.gmra.mrb[0].mxu0 %v473
      %v583 = vpop.f32.mrb[0].mxu0
      %v584 = vadd.f32 %v374, %v583
      %v585 = vpop.f32.mrb[0].mxu0
      %v586 = vpop.f32.mrb[0].mxu0
      %v587 = vadd.f32 %v374, %v586
      %v588 = vpop.f32.mrb[0].mxu0
      %589 = vmatprep.mubr.bf16.mxu0 0
      %590 = vmatmul.mubr.bf16.gmra.mrb[0].mxu0 %v476
      %v591 = vpop.f32.mrb[0].mxu0
      %v592 = vadd.f32 %v374, %v591
      %v593 = vpop.f32.mrb[0].mxu0
      %v594 = vpop.f32.mrb[0].mxu0
      %v595 = vadd.f32 %v374, %v594
      %v596 = vpop.f32.mrb[0].mxu0
      %597 = vmatprep.mubr.bf16.mxu0 0
      %598 = vmatmul.mubr.bf16.gmra.mrb[0].mxu0 %v479
      %v599 = vpop.f32.mrb[0].mxu0
      %v600 = vadd.f32 %v374, %v599
      %v601 = vpop.f32.mrb[0].mxu0
      %v602 = vpop.f32.mrb[0].mxu0
      %v603 = vadd.f32 %v374, %v602
      %v604 = vpop.f32.mrb[0].mxu0
      %605 = vmatprep.mubr.bf16.mxu0 0
      %606 = vmatmul.mubr.bf16.gmra.mrb[0].mxu0 %v482
      %v607 = vpop.f32.mrb[0].mxu0
      %v608 = vadd.f32 %v374, %v607
      %v609 = vpop.f32.mrb[0].mxu0
      %v610 = vpop.f32.mrb[0].mxu0
      %v611 = vadd.f32 %v374, %v610
      %v612 = vpop.f32.mrb[0].mxu0
      %613 = vmatprep.mubr.bf16.mxu0 0
      %614 = vmatmul.mubr.bf16.gmra.mrb[0].mxu0 %v485
      %v615 = vpop.f32.mrb[0].mxu0
      %v616 = vadd.f32 %v374, %v615
      %v617 = vpop.f32.mrb[0].mxu0
      %v618 = vpop.f32.mrb[0].mxu0
      %v619 = vadd.f32 %v374, %v618
      %v620 = vpop.f32.mrb[0].mxu0
      %621 = vmatprep.mubr.bf16.mxu0 0
      %622 = vmatmul.mubr.bf16.gmra.mrb[0].mxu0 %v488
      %v623 = vpop.f32.mrb[0].mxu0
      %v624 = vadd.f32 %v374, %v623
      %v625 = vpop.f32.mrb[0].mxu0
      %v626 = vpop.f32.mrb[0].mxu0
      %v627 = vadd.f32 %v374, %v626
      %v628 = vpop.f32.mrb[0].mxu0
      %629 = vmatprep.mubr.bf16.mxu0 0
      %630 = vmatmul.mubr.bf16.gmra.mrb[0].mxu0 %v491
      %v631 = vpop.f32.mrb[0].mxu0
      %v632 = vadd.f32 %v374, %v631
      %v633 = vpop.f32.mrb[0].mxu0
      %v634 = vpop.f32.mrb[0].mxu0
      %v635 = vadd.f32 %v374, %v634
      %v636 = vpop.f32.mrb[0].mxu0
      %637 = vmatprep.mubr.bf16.mxu0 0
      %638 = vmatmul.mubr.bf16.gmra.mrb[0].mxu0 %v494
      %v639 = vpop.f32.mrb[0].mxu0
      %v640 = vadd.f32 %v374, %v639
      %v641 = vpop.f32.mrb[0].mxu0
      %v642 = vpop.f32.mrb[0].mxu0
      %v643 = vadd.f32 %v374, %v642
      %v644 = vpop.f32.mrb[0].mxu0
      %645 = vmatprep.mubr.bf16.mxu0 0
      %646 = vmatmul.mubr.bf16.gmra.mrb[0].mxu0 %v497
      %v647 = vpop.f32.mrb[0].mxu0
      %v648 = vadd.f32 %v374, %v647
      %v649 = vpop.f32.mrb[0].mxu0
      %v650 = vpop.f32.mrb[0].mxu0
      %v651 = vadd.f32 %v374, %v650
      %v652 = vpop.f32.mrb[0].mxu0
      %653 = vmatprep.mubr.bf16.mxu0 0
      %654 = vmatmul.mubr.bf16.gmra.mrb[0].mxu0 %v500
      %v655 = vpop.f32.mrb[0].mxu0
      %v656 = vadd.f32 %v374, %v655
      %v657 = vpop.f32.mrb[0].mxu0
      %v658 = vpop.f32.mrb[0].mxu0
      %v659 = vadd.f32 %v374, %v658
      %v660 = vpop.f32.mrb[0].mxu0
      %661 = vmatprep.mubr.bf16.mxu0 0
      %662 = vmatmul.mubr.bf16.gmra.mrb[0].mxu0 %v503
      %v663 = vpop.f32.mrb[0].mxu0
      %v664 = vadd.f32 %v374, %v663
      %v665 = vpop.f32.mrb[0].mxu0
      %v666 = vpop.f32.mrb[0].mxu0
      %v667 = vadd.f32 %v374, %v666
      %v668 = vpop.f32.mrb[0].mxu0
      %669 = vdwg.mxu0
      %vm670 = vcmp.ge.f32.partialorder %v544, 0.0
      %vm671 = vcmp.ge.f32.partialorder %v547, 0.0
      %vm672 = vcmp.ge.f32.partialorder %v552, 0.0
      %vm673 = vcmp.ge.f32.partialorder %v555, 0.0
      %vm674 = vcmp.ge.f32.partialorder %v560, 0.0
      %vm675 = vcmp.ge.f32.partialorder %v563, 0.0
      %vm676 = vcmp.ge.f32.partialorder %v568, 0.0
      %vm677 = vcmp.ge.f32.partialorder %v571, 0.0
      %vm678 = vcmp.ge.f32.partialorder %v576, 0.0
      %vm679 = vcmp.ge.f32.partialorder %v579, 0.0
      %vm680 = vcmp.ge.f32.partialorder %v584, 0.0
      %vm681 = vcmp.ge.f32.partialorder %v587, 0.0
      %vm682 = vcmp.ge.f32.partialorder %v592, 0.0
      %vm683 = vcmp.ge.f32.partialorder %v595, 0.0
      %vm684 = vcmp.ge.f32.partialorder %v600, 0.0
      %vm685 = vcmp.ge.f32.partialorder %v603, 0.0
      %vm686 = vcmp.ge.f32.partialorder %v608, 0.0
      %vm687 = vcmp.ge.f32.partialorder %v611, 0.0
      %vm688 = vcmp.ge.f32.partialorder %v616, 0.0
      %vm689 = vcmp.ge.f32.partialorder %v619, 0.0
      %vm690 = vcmp.ge.f32.partialorder %v624, 0.0
      %vm691 = vcmp.ge.f32.partialorder %v627, 0.0
      %vm692 = vcmp.ge.f32.partialorder %v632, 0.0
      %vm693 = vcmp.ge.f32.partialorder %v635, 0.0
      %vm694 = vcmp.ge.f32.partialorder %v640, 0.0
      %vm695 = vcmp.ge.f32.partialorder %v643, 0.0
      %vm696 = vcmp.ge.f32.partialorder %v648, 0.0
      %vm697 = vcmp.ge.f32.partialorder %v651, 0.0
      %vm698 = vcmp.ge.f32.partialorder %v656, 0.0
      %vm699 = vcmp.ge.f32.partialorder %v659, 0.0
      %vm700 = vcmp.ge.f32.partialorder %v664, 0.0
      %vm701 = vcmp.ge.f32.partialorder %v667, 0.0
      %v702 = vstv %s335
      %v703 = vmul.f32 %v702, %v544
      %v704 = vmul.f32 %v702, %v547
      %v705 = vmul.f32 %v702, %v552
      %v706 = vmul.f32 %v702, %v555
      %v707 = vmul.f32 %v702, %v560
      %v708 = vmul.f32 %v702, %v563
      %v709 = vmul.f32 %v702, %v568
      %v710 = vmul.f32 %v702, %v571
      %v711 = vmul.f32 %v702, %v576
      %v712 = vmul.f32 %v702, %v579
      %v713 = vmul.f32 %v702, %v584
      %v714 = vmul.f32 %v702, %v587
      %v715 = vmul.f32 %v702, %v592
      %v716 = vmul.f32 %v702, %v595
      %v717 = vmul.f32 %v702, %v600
      %v718 = vmul.f32 %v702, %v603
      %v719 = vmul.f32 %v702, %v608
      %v720 = vmul.f32 %v702, %v611
      %v721 = vmul.f32 %v702, %v616
      %v722 = vmul.f32 %v702, %v619
      %v723 = vmul.f32 %v702, %v624
      %v724 = vmul.f32 %v702, %v627
      %v725 = vmul.f32 %v702, %v632
      %v726 = vmul.f32 %v702, %v635
      %v727 = vmul.f32 %v702, %v640
      %v728 = vmul.f32 %v702, %v643
      %v729 = vmul.f32 %v702, %v648
      %v730 = vmul.f32 %v702, %v651
      %v731 = vmul.f32 %v702, %v656
      %v732 = vmul.f32 %v702, %v659
      %v733 = vmul.f32 %v702, %v664
      %v734 = vmul.f32 %v702, %v667
      %v735 = vsel %vm670, %v544, %v703
      %v736 = vsel %vm671, %v547, %v704
      %v737 = vsel %vm672, %v552, %v705
      %v738 = vsel %vm673, %v555, %v706
      %v739 = vsel %vm674, %v560, %v707
      %v740 = vsel %vm675, %v563, %v708
      %v741 = vsel %vm676, %v568, %v709
      %v742 = vsel %vm677, %v571, %v710
      %v743 = vsel %vm678, %v576, %v711
      %v744 = vsel %vm679, %v579, %v712
      %v745 = vsel %vm680, %v584, %v713
      %v746 = vsel %vm681, %v587, %v714
      %v747 = vsel %vm682, %v592, %v715
      %v748 = vsel %vm683, %v595, %v716
      %v749 = vsel %vm684, %v600, %v717
      %v750 = vsel %vm685, %v603, %v718
      %v751 = vsel %vm686, %v608, %v719
      %v752 = vsel %vm687, %v611, %v720
      %v753 = vsel %vm688, %v616, %v721
      %v754 = vsel %vm689, %v619, %v722
      %v755 = vsel %vm690, %v624, %v723
      %v756 = vsel %vm691, %v627, %v724
      %v757 = vsel %vm692, %v632, %v725
      %v758 = vsel %vm693, %v635, %v726
      %v759 = vsel %vm694, %v640, %v727
      %v760 = vsel %vm695, %v643, %v728
      %v761 = vsel %vm696, %v648, %v729
      %v762 = vsel %vm697, %v651, %v730
      %v763 = vsel %vm698, %v656, %v731
      %v764 = vsel %vm699, %v659, %v732
      %v765 = vsel %vm700, %v664, %v733
      %v766 = vsel %vm701, %v667, %v734
      %vm767 = vcmask 64512
      %768 = vst.msk [vmem:[#allocation2] sm:$0xff] %vm767, 0.0
      %769 = vst.msk [vmem:[#allocation2 + $0x8] sm:$0xff] %vm767, 0.0
      %s770 = scalar_lea.vmem [#allocation2], 272
      %771 = vst.msk [vmem:[%s770] sm:$0xff] %vm767, 0.0
      %772 = vst.msk [vmem:[%s770 + $0x8] sm:$0xff] %vm767, 0.0
      %s773 = scalar_lea.vmem [#allocation2], 16
      %774 = vst.msk [vmem:[%s773] sm:$0xff] %vm767, %v735
      %775 = vst.msk [vmem:[%s773 + $0x8] sm:$0xff] %vm767, %v736
      %776 = vst.msk [vmem:[%s773 + $0x10] sm:$0xff] %vm767, %v737
      %777 = vst.msk [vmem:[%s773 + $0x18] sm:$0xff] %vm767, %v738
      %778 = vst.msk [vmem:[%s773 + $0x20] sm:$0xff] %vm767, %v739
      %779 = vst.msk [vmem:[%s773 + $0x28] sm:$0xff] %vm767, %v740
      %780 = vst.msk [vmem:[%s773 + $0x30] sm:$0xff] %vm767, %v741
      %781 = vst.msk [vmem:[%s773 + $0x38] sm:$0xff] %vm767, %v742
      %782 = vst.msk [vmem:[%s773 + $0x40] sm:$0xff] %vm767, %v743
      %783 = vst.msk [vmem:[%s773 + $0x48] sm:$0xff] %vm767, %v744
      %784 = vst.msk [vmem:[%s773 + $0x50] sm:$0xff] %vm767, %v745
      %785 = vst.msk [vmem:[%s773 + $0x58] sm:$0xff] %vm767, %v746
      %786 = vst.msk [vmem:[%s773 + $0x60] sm:$0xff] %vm767, %v747
      %787 = vst.msk [vmem:[%s773 + $0x68] sm:$0xff] %vm767, %v748
      %788 = vst.msk [vmem:[%s773 + $0x70] sm:$0xff] %vm767, %v749
      %789 = vst.msk [vmem:[%s773 + $0x78] sm:$0xff] %vm767, %v750
      %790 = vst.msk [vmem:[%s773 + $0x80] sm:$0xff] %vm767, %v751
      %791 = vst.msk [vmem:[%s773 + $0x88] sm:$0xff] %vm767, %v752
      %792 = vst.msk [vmem:[%s773 + $0x90] sm:$0xff] %vm767, %v753
      %793 = vst.msk [vmem:[%s773 + $0x98] sm:$0xff] %vm767, %v754
      %794 = vst.msk [vmem:[%s773 + $0xa0] sm:$0xff] %vm767, %v755
      %795 = vst.msk [vmem:[%s773 + $0xa8] sm:$0xff] %vm767, %v756
      %796 = vst.msk [vmem:[%s773 + $0xb0] sm:$0xff] %vm767, %v757
      %797 = vst.msk [vmem:[%s773 + $0xb8] sm:$0xff] %vm767, %v758
      %798 = vst.msk [vmem:[%s773 + $0xc0] sm:$0xff] %vm767, %v759
      %799 = vst.msk [vmem:[%s773 + $0xc8] sm:$0xff] %vm767, %v760
      %800 = vst.msk [vmem:[%s773 + $0xd0] sm:$0xff] %vm767, %v761
      %801 = vst.msk [vmem:[%s773 + $0xd8] sm:$0xff] %vm767, %v762
      %802 = vst.msk [vmem:[%s773 + $0xe0] sm:$0xff] %vm767, %v763
      %803 = vst.msk [vmem:[%s773 + $0xe8] sm:$0xff] %vm767, %v764
      %804 = vst.msk [vmem:[%s773 + $0xf0] sm:$0xff] %vm767, %v765
      %805 = vst.msk [vmem:[%s773 + $0xf8] sm:$0xff] %vm767, %v766
      %v806 = vlaneseq
      %v807 = vshrl.u32 %v806, 7
      %v808 = vadd.s32 %v807, 8
      %v809 = vld [vmem:[#allocation2] sm:$0xff]
      %v810 = vld [vmem:[#allocation2 + $0x8] sm:$0xff]
      %v811 = vld [vmem:[#allocation2 + $0x10] sm:$0xff]
      %v812 = vld [vmem:[#allocation2 + $0x18] sm:$0xff]
      %v813 = vld [vmem:[#allocation2 + $0x20] sm:$0xff]
      %v814 = vld [vmem:[#allocation2 + $0x28] sm:$0xff]
      %v815 = vld [vmem:[#allocation2 + $0x30] sm:$0xff]
      %v816 = vld [vmem:[#allocation2 + $0x38] sm:$0xff]
      %v817 = vld [vmem:[#allocation2 + $0x40] sm:$0xff]
      %v818 = vld [vmem:[#allocation2 + $0x48] sm:$0xff]
      %v819 = vld [vmem:[#allocation2 + $0x50] sm:$0xff]
      %v820 = vld [vmem:[#allocation2 + $0x58] sm:$0xff]
      %v821 = vld [vmem:[#allocation2 + $0x60] sm:$0xff]
      %v822 = vld [vmem:[#allocation2 + $0x68] sm:$0xff]
      %v823 = vld [vmem:[#allocation2 + $0x70] sm:$0xff]
      %v824 = vld [vmem:[#allocation2 + $0x78] sm:$0xff]
      %v825 = vld [vmem:[#allocation2 + $0x80] sm:$0xff]
      %v826 = vld [vmem:[#allocation2 + $0x88] sm:$0xff]
      %v827 = vld [vmem:[#allocation2 + $0x90] sm:$0xff]
      %v828 = vld [vmem:[#allocation2 + $0x98] sm:$0xff]
      %v829 = vld [vmem:[#allocation2 + $0xa0] sm:$0xff]
      %v830 = vld [vmem:[#allocation2 + $0xa8] sm:$0xff]
      %v831 = vld [vmem:[#allocation2 + $0xb0] sm:$0xff]
      %v832 = vld [vmem:[#allocation2 + $0xb8] sm:$0xff]
      %v833 = vld [vmem:[#allocation2 + $0xc0] sm:$0xff]
      %v834 = vld [vmem:[#allocation2 + $0xc8] sm:$0xff]
      %v835 = vld [vmem:[#allocation2 + $0xd0] sm:$0xff]
      %v836 = vld [vmem:[#allocation2 + $0xd8] sm:$0xff]
      %v837 = vld [vmem:[#allocation2 + $0xe0] sm:$0xff]
      %v838 = vld [vmem:[#allocation2 + $0xe8] sm:$0xff]
      %v839 = vld [vmem:[#allocation2 + $0xf0] sm:$0xff]
      %v840 = vld [vmem:[#allocation2 + $0xf8] sm:$0xff]
      %v841 = vrot.slane %v809, 7
      %v842 = vrot.slane %v811, 7
      %v843 = vrot.slane %v813, 7
      %v844 = vrot.slane %v815, 7
      %v845 = vrot.slane %v817, 7
      %v846 = vrot.slane %v819, 7
      %v847 = vrot.slane %v821, 7
      %v848 = vrot.slane %v823, 7
      %v849 = vrot.slane %v825, 7
      %v850 = vrot.slane %v827, 7
      %v851 = vrot.slane %v829, 7
      %v852 = vrot.slane %v831, 7
      %v853 = vrot.slane %v833, 7
      %v854 = vrot.slane %v835, 7
      %v855 = vrot.slane %v837, 7
      %v856 = vrot.slane %v839, 7
      %v857 = vrot.slane %v810, 7
      %v858 = vrot.slane %v812, 7
      %v859 = vrot.slane %v814, 7
      %v860 = vrot.slane %v816, 7
      %v861 = vrot.slane %v818, 7
      %v862 = vrot.slane %v820, 7
      %v863 = vrot.slane %v822, 7
      %v864 = vrot.slane %v824, 7
      %v865 = vrot.slane %v826, 7
      %v866 = vrot.slane %v828, 7
      %v867 = vrot.slane %v830, 7
      %v868 = vrot.slane %v832, 7
      %v869 = vrot.slane %v834, 7
      %v870 = vrot.slane %v836, 7
      %v871 = vrot.slane %v838, 7
      %v872 = vrot.slane %v840, 7
      %vm873 = vcmp.lt.s32.totalorder %v807, 1
      %v874 = vsel %vm873, %v841, %v857
      %v875 = vsel %vm873, %v842, %v858
      %v876 = vsel %vm873, %v843, %v859
      %v877 = vsel %vm873, %v844, %v860
      %v878 = vsel %vm873, %v845, %v861
      %v879 = vsel %vm873, %v846, %v862
      %v880 = vsel %vm873, %v847, %v863
      %v881 = vsel %vm873, %v848, %v864
      %v882 = vsel %vm873, %v849, %v865
      %v883 = vsel %vm873, %v850, %v866
      %v884 = vsel %vm873, %v851, %v867
      %v885 = vsel %vm873, %v852, %v868
      %v886 = vsel %vm873, %v853, %v869
      %v887 = vsel %vm873, %v854, %v870
      %v888 = vsel %vm873, %v855, %v871
      %v889 = vsel %vm873, %v856, %v872
      %v890 = vsel %vm873, %v857, %v841
      %v891 = vsel %vm873, %v858, %v842
      %v892 = vsel %vm873, %v859, %v843
      %v893 = vsel %vm873, %v860, %v844
      %v894 = vsel %vm873, %v861, %v845
      %v895 = vsel %vm873, %v862, %v846
      %v896 = vsel %vm873, %v863, %v847
      %v897 = vsel %vm873, %v864, %v848
      %v898 = vsel %vm873, %v865, %v849
      %v899 = vsel %vm873, %v866, %v850
      %v900 = vsel %vm873, %v867, %v851
      %v901 = vsel %vm873, %v868, %v852
      %v902 = vsel %vm873, %v869, %v853
      %v903 = vsel %vm873, %v870, %v854
      %v904 = vsel %vm873, %v871, %v855
      %v905 = vsel %vm873, %v872, %v856
      %vm906 = vcmp.ge.s32.totalorder %v807, 1
      %vm907 = vcmp.ge.s32.totalorder %v808, 1
      %v908 = vsel %vm906, %v890, 0.0
      %v909 = vsel %vm907, %v874, 0.0
      %v910 = vsel %vm906, %v891, 0.0
      %v911 = vsel %vm907, %v875, 0.0
      %v912 = vsel %vm906, %v892, 0.0
      %v913 = vsel %vm907, %v876, 0.0
      %v914 = vsel %vm906, %v893, 0.0
      %v915 = vsel %vm907, %v877, 0.0
      %v916 = vsel %vm906, %v894, 0.0
      %v917 = vsel %vm907, %v878, 0.0
      %v918 = vsel %vm906, %v895, 0.0
      %v919 = vsel %vm907, %v879, 0.0
      %v920 = vsel %vm906, %v896, 0.0
      %v921 = vsel %vm907, %v880, 0.0
      %v922 = vsel %vm906, %v897, 0.0
      %v923 = vsel %vm907, %v881, 0.0
      %v924 = vsel %vm906, %v898, 0.0
      %v925 = vsel %vm907, %v882, 0.0
      %v926 = vsel %vm906, %v899, 0.0
      %v927 = vsel %vm907, %v883, 0.0
      %v928 = vsel %vm906, %v900, 0.0
      %v929 = vsel %vm907, %v884, 0.0
      %v930 = vsel %vm906, %v901, 0.0
      %v931 = vsel %vm907, %v885, 0.0
      %v932 = vsel %vm906, %v902, 0.0
      %v933 = vsel %vm907, %v886, 0.0
      %v934 = vsel %vm906, %v903, 0.0
      %v935 = vsel %vm907, %v887, 0.0
      %v936 = vsel %vm906, %v904, 0.0
      %v937 = vsel %vm907, %v888, 0.0
      %v938 = vsel %vm906, %v905, 0.0
      %v939 = vsel %vm907, %v889, 0.0
      %v940 = vrot.slane %v809, 1
      %v941 = vrot.slane %v811, 1
      %v942 = vrot.slane %v813, 1
      %v943 = vrot.slane %v815, 1
      %v944 = vrot.slane %v817, 1
      %v945 = vrot.slane %v819, 1
      %v946 = vrot.slane %v821, 1
      %v947 = vrot.slane %v823, 1
      %v948 = vrot.slane %v825, 1
      %v949 = vrot.slane %v827, 1
      %v950 = vrot.slane %v829, 1
      %v951 = vrot.slane %v831, 1
      %v952 = vrot.slane %v833, 1
      %v953 = vrot.slane %v835, 1
      %v954 = vrot.slane %v837, 1
      %v955 = vrot.slane %v839, 1
      %v956 = vrot.slane %v810, 1
      %v957 = vrot.slane %v812, 1
      %v958 = vrot.slane %v814, 1
      %v959 = vrot.slane %v816, 1
      %v960 = vrot.slane %v818, 1
      %v961 = vrot.slane %v820, 1
      %v962 = vrot.slane %v822, 1
      %v963 = vrot.slane %v824, 1
      %v964 = vrot.slane %v826, 1
      %v965 = vrot.slane %v828, 1
      %v966 = vrot.slane %v830, 1
      %v967 = vrot.slane %v832, 1
      %v968 = vrot.slane %v834, 1
      %v969 = vrot.slane %v836, 1
      %v970 = vrot.slane %v838, 1
      %v971 = vrot.slane %v840, 1
      %vm972 = vcmp.lt.s32.totalorder %v807, 7
      %v973 = vsel %vm972, %v940, %v956
      %v974 = vsel %vm972, %v941, %v957
      %v975 = vsel %vm972, %v942, %v958
      %v976 = vsel %vm972, %v943, %v959
      %v977 = vsel %vm972, %v944, %v960
      %v978 = vsel %vm972, %v945, %v961
      %v979 = vsel %vm972, %v946, %v962
      %v980 = vsel %vm972, %v947, %v963
      %v981 = vsel %vm972, %v948, %v964
      %v982 = vsel %vm972, %v949, %v965
      %v983 = vsel %vm972, %v950, %v966
      %v984 = vsel %vm972, %v951, %v967
      %v985 = vsel %vm972, %v952, %v968
      %v986 = vsel %vm972, %v953, %v969
      %v987 = vsel %vm972, %v954, %v970
      %v988 = vsel %vm972, %v955, %v971
      %v989 = vsel %vm972, %v956, %v940
      %v990 = vsel %vm972, %v957, %v941
      %v991 = vsel %vm972, %v958, %v942
      %v992 = vsel %vm972, %v959, %v943
      %v993 = vsel %vm972, %v960, %v944
      %v994 = vsel %vm972, %v961, %v945
      %v995 = vsel %vm972, %v962, %v946
      %v996 = vsel %vm972, %v963, %v947
      %v997 = vsel %vm972, %v964, %v948
      %v998 = vsel %vm972, %v965, %v949
      %v999 = vsel %vm972, %v966, %v950
      %v1000 = vsel %vm972, %v967, %v951
      %v1001 = vsel %vm972, %v968, %v952
      %v1002 = vsel %vm972, %v969, %v953
      %v1003 = vsel %vm972, %v970, %v954
      %v1004 = vsel %vm972, %v971, %v955
      %vm1005 = vcmp.le.s32.totalorder %v807, 14
      %vm1006 = vcmp.le.s32.totalorder %v808, 14
      %v1007 = vsel %vm1005, %v973, 0.0
      %v1008 = vsel %vm1006, %v989, 0.0
      %v1009 = vsel %vm1005, %v974, 0.0
      %v1010 = vsel %vm1006, %v990, 0.0
      %v1011 = vsel %vm1005, %v975, 0.0
      %v1012 = vsel %vm1006, %v991, 0.0
      %v1013 = vsel %vm1005, %v976, 0.0
      %v1014 = vsel %vm1006, %v992, 0.0
      %v1015 = vsel %vm1005, %v977, 0.0
      %v1016 = vsel %vm1006, %v993, 0.0
      %v1017 = vsel %vm1005, %v978, 0.0
      %v1018 = vsel %vm1006, %v994, 0.0
      %v1019 = vsel %vm1005, %v979, 0.0
      %v1020 = vsel %vm1006, %v995, 0.0
      %v1021 = vsel %vm1005, %v980, 0.0
      %v1022 = vsel %vm1006, %v996, 0.0
      %v1023 = vsel %vm1005, %v981, 0.0
      %v1024 = vsel %vm1006, %v997, 0.0
      %v1025 = vsel %vm1005, %v982, 0.0
      %v1026 = vsel %vm1006, %v998, 0.0
      %v1027 = vsel %vm1005, %v983, 0.0
      %v1028 = vsel %vm1006, %v999, 0.0
      %v1029 = vsel %vm1005, %v984, 0.0
      %v1030 = vsel %vm1006, %v1000, 0.0
      %v1031 = vsel %vm1005, %v985, 0.0
      %v1032 = vsel %vm1006, %v1001, 0.0
      %v1033 = vsel %vm1005, %v986, 0.0
      %v1034 = vsel %vm1006, %v1002, 0.0
      %v1035 = vsel %vm1005, %v987, 0.0
      %v1036 = vsel %vm1006, %v1003, 0.0
      %v1037 = vsel %vm1005, %v988, 0.0
      %v1038 = vsel %vm1006, %v1004, 0.0
      %v1039 = vld [vmem:[%s773] sm:$0xff]
      %v1040 = vld [vmem:[%s773 + $0x8] sm:$0xff]
      %v1041 = vld [vmem:[%s773 + $0x10] sm:$0xff]
      %v1042 = vld [vmem:[%s773 + $0x18] sm:$0xff]
      %v1043 = vld [vmem:[%s773 + $0x20] sm:$0xff]
      %v1044 = vld [vmem:[%s773 + $0x28] sm:$0xff]
      %v1045 = vld [vmem:[%s773 + $0x30] sm:$0xff]
      %v1046 = vld [vmem:[%s773 + $0x38] sm:$0xff]
      %v1047 = vld [vmem:[%s773 + $0x40] sm:$0xff]
      %v1048 = vld [vmem:[%s773 + $0x48] sm:$0xff]
      %v1049 = vld [vmem:[%s773 + $0x50] sm:$0xff]
      %v1050 = vld [vmem:[%s773 + $0x58] sm:$0xff]
      %v1051 = vld [vmem:[%s773 + $0x60] sm:$0xff]
      %v1052 = vld [vmem:[%s773 + $0x68] sm:$0xff]
      %v1053 = vld [vmem:[%s773 + $0x70] sm:$0xff]
      %v1054 = vld [vmem:[%s773 + $0x78] sm:$0xff]
      %v1055 = vld [vmem:[%s773 + $0x80] sm:$0xff]
      %v1056 = vld [vmem:[%s773 + $0x88] sm:$0xff]
      %v1057 = vld [vmem:[%s773 + $0x90] sm:$0xff]
      %v1058 = vld [vmem:[%s773 + $0x98] sm:$0xff]
      %v1059 = vld [vmem:[%s773 + $0xa0] sm:$0xff]
      %v1060 = vld [vmem:[%s773 + $0xa8] sm:$0xff]
      %v1061 = vld [vmem:[%s773 + $0xb0] sm:$0xff]
      %v1062 = vld [vmem:[%s773 + $0xb8] sm:$0xff]
      %v1063 = vld [vmem:[%s773 + $0xc0] sm:$0xff]
      %v1064 = vld [vmem:[%s773 + $0xc8] sm:$0xff]
      %v1065 = vld [vmem:[%s773 + $0xd0] sm:$0xff]
      %v1066 = vld [vmem:[%s773 + $0xd8] sm:$0xff]
      %v1067 = vld [vmem:[%s773 + $0xe0] sm:$0xff]
      %v1068 = vld [vmem:[%s773 + $0xe8] sm:$0xff]
      %v1069 = vld [vmem:[%s773 + $0xf0] sm:$0xff]
      %v1070 = vld [vmem:[%s773 + $0xf8] sm:$0xff]
      %v1071 = vrot.slane %v1039, 7
      %v1072 = vrot.slane %v1041, 7
      %v1073 = vrot.slane %v1043, 7
      %v1074 = vrot.slane %v1045, 7
      %v1075 = vrot.slane %v1047, 7
      %v1076 = vrot.slane %v1049, 7
      %v1077 = vrot.slane %v1051, 7
      %v1078 = vrot.slane %v1053, 7
      %v1079 = vrot.slane %v1055, 7
      %v1080 = vrot.slane %v1057, 7
      %v1081 = vrot.slane %v1059, 7
      %v1082 = vrot.slane %v1061, 7
      %v1083 = vrot.slane %v1063, 7
      %v1084 = vrot.slane %v1065, 7
      %v1085 = vrot.slane %v1067, 7
      %v1086 = vrot.slane %v1069, 7
      %v1087 = vrot.slane %v1040, 7
      %v1088 = vrot.slane %v1042, 7
      %v1089 = vrot.slane %v1044, 7
      %v1090 = vrot.slane %v1046, 7
      %v1091 = vrot.slane %v1048, 7
      %v1092 = vrot.slane %v1050, 7
      %v1093 = vrot.slane %v1052, 7
      %v1094 = vrot.slane %v1054, 7
      %v1095 = vrot.slane %v1056, 7
      %v1096 = vrot.slane %v1058, 7
      %v1097 = vrot.slane %v1060, 7
      %v1098 = vrot.slane %v1062, 7
      %v1099 = vrot.slane %v1064, 7
      %v1100 = vrot.slane %v1066, 7
      %v1101 = vrot.slane %v1068, 7
      %v1102 = vrot.slane %v1070, 7
      %v1103 = vsel %vm873, %v1071, %v1087
      %v1104 = vsel %vm873, %v1072, %v1088
      %v1105 = vsel %vm873, %v1073, %v1089
      %v1106 = vsel %vm873, %v1074, %v1090
      %v1107 = vsel %vm873, %v1075, %v1091
      %v1108 = vsel %vm873, %v1076, %v1092
      %v1109 = vsel %vm873, %v1077, %v1093
      %v1110 = vsel %vm873, %v1078, %v1094
      %v1111 = vsel %vm873, %v1079, %v1095
      %v1112 = vsel %vm873, %v1080, %v1096
      %v1113 = vsel %vm873, %v1081, %v1097
      %v1114 = vsel %vm873, %v1082, %v1098
      %v1115 = vsel %vm873, %v1083, %v1099
      %v1116 = vsel %vm873, %v1084, %v1100
      %v1117 = vsel %vm873, %v1085, %v1101
      %v1118 = vsel %vm873, %v1086, %v1102
      %v1119 = vsel %vm873, %v1087, %v1071
      %v1120 = vsel %vm873, %v1088, %v1072
      %v1121 = vsel %vm873, %v1089, %v1073
      %v1122 = vsel %vm873, %v1090, %v1074
      %v1123 = vsel %vm873, %v1091, %v1075
      %v1124 = vsel %vm873, %v1092, %v1076
      %v1125 = vsel %vm873, %v1093, %v1077
      %v1126 = vsel %vm873, %v1094, %v1078
      %v1127 = vsel %vm873, %v1095, %v1079
      %v1128 = vsel %vm873, %v1096, %v1080
      %v1129 = vsel %vm873, %v1097, %v1081
      %v1130 = vsel %vm873, %v1098, %v1082
      %v1131 = vsel %vm873, %v1099, %v1083
      %v1132 = vsel %vm873, %v1100, %v1084
      %v1133 = vsel %vm873, %v1101, %v1085
      %v1134 = vsel %vm873, %v1102, %v1086
      %v1135 = vsel %vm906, %v1119, 0.0
      %v1136 = vsel %vm907, %v1103, 0.0
      %v1137 = vsel %vm906, %v1120, 0.0
      %v1138 = vsel %vm907, %v1104, 0.0
      %v1139 = vsel %vm906, %v1121, 0.0
      %v1140 = vsel %vm907, %v1105, 0.0
      %v1141 = vsel %vm906, %v1122, 0.0
      %v1142 = vsel %vm907, %v1106, 0.0
      %v1143 = vsel %vm906, %v1123, 0.0
      %v1144 = vsel %vm907, %v1107, 0.0
      %v1145 = vsel %vm906, %v1124, 0.0
      %v1146 = vsel %vm907, %v1108, 0.0
      %v1147 = vsel %vm906, %v1125, 0.0
      %v1148 = vsel %vm907, %v1109, 0.0
      %v1149 = vsel %vm906, %v1126, 0.0
      %v1150 = vsel %vm907, %v1110, 0.0
      %v1151 = vsel %vm906, %v1127, 0.0
      %v1152 = vsel %vm907, %v1111, 0.0
      %v1153 = vsel %vm906, %v1128, 0.0
      %v1154 = vsel %vm907, %v1112, 0.0
      %v1155 = vsel %vm906, %v1129, 0.0
      %v1156 = vsel %vm907, %v1113, 0.0
      %v1157 = vsel %vm906, %v1130, 0.0
      %v1158 = vsel %vm907, %v1114, 0.0
      %v1159 = vsel %vm906, %v1131, 0.0
      %v1160 = vsel %vm907, %v1115, 0.0
      %v1161 = vsel %vm906, %v1132, 0.0
      %v1162 = vsel %vm907, %v1116, 0.0
      %v1163 = vsel %vm906, %v1133, 0.0
      %v1164 = vsel %vm907, %v1117, 0.0
      %v1165 = vsel %vm906, %v1134, 0.0
      %v1166 = vsel %vm907, %v1118, 0.0
      %v1167 = vrot.slane %v1039, 1
      %v1168 = vrot.slane %v1041, 1
      %v1169 = vrot.slane %v1043, 1
      %v1170 = vrot.slane %v1045, 1
      %v1171 = vrot.slane %v1047, 1
      %v1172 = vrot.slane %v1049, 1
      %v1173 = vrot.slane %v1051, 1
      %v1174 = vrot.slane %v1053, 1
      %v1175 = vrot.slane %v1055, 1
      %v1176 = vrot.slane %v1057, 1
      %v1177 = vrot.slane %v1059, 1
      %v1178 = vrot.slane %v1061, 1
      %v1179 = vrot.slane %v1063, 1
      %v1180 = vrot.slane %v1065, 1
      %v1181 = vrot.slane %v1067, 1
      %v1182 = vrot.slane %v1069, 1
      %v1183 = vrot.slane %v1040, 1
      %v1184 = vrot.slane %v1042, 1
      %v1185 = vrot.slane %v1044, 1
      %v1186 = vrot.slane %v1046, 1
      %v1187 = vrot.slane %v1048, 1
      %v1188 = vrot.slane %v1050, 1
      %v1189 = vrot.slane %v1052, 1
      %v1190 = vrot.slane %v1054, 1
      %v1191 = vrot.slane %v1056, 1
      %v1192 = vrot.slane %v1058, 1
      %v1193 = vrot.slane %v1060, 1
      %v1194 = vrot.slane %v1062, 1
      %v1195 = vrot.slane %v1064, 1
      %v1196 = vrot.slane %v1066, 1
      %v1197 = vrot.slane %v1068, 1
      %v1198 = vrot.slane %v1070, 1
      %v1199 = vsel %vm972, %v1167, %v1183
      %v1200 = vsel %vm972, %v1168, %v1184
      %v1201 = vsel %vm972, %v1169, %v1185
      %v1202 = vsel %vm972, %v1170, %v1186
      %v1203 = vsel %vm972, %v1171, %v1187
      %v1204 = vsel %vm972, %v1172, %v1188
      %v1205 = vsel %vm972, %v1173, %v1189
      %v1206 = vsel %vm972, %v1174, %v1190
      %v1207 = vsel %vm972, %v1175, %v1191
      %v1208 = vsel %vm972, %v1176, %v1192
      %v1209 = vsel %vm972, %v1177, %v1193
      %v1210 = vsel %vm972, %v1178, %v1194
      %v1211 = vsel %vm972, %v1179, %v1195
      %v1212 = vsel %vm972, %v1180, %v1196
      %v1213 = vsel %vm972, %v1181, %v1197
      %v1214 = vsel %vm972, %v1182, %v1198
      %v1215 = vsel %vm972, %v1183, %v1167
      %v1216 = vsel %vm972, %v1184, %v1168
      %v1217 = vsel %vm972, %v1185, %v1169
      %v1218 = vsel %vm972, %v1186, %v1170
      %v1219 = vsel %vm972, %v1187, %v1171
      %v1220 = vsel %vm972, %v1188, %v1172
      %v1221 = vsel %vm972, %v1189, %v1173
      %v1222 = vsel %vm972, %v1190, %v1174
      %v1223 = vsel %vm972, %v1191, %v1175
      %v1224 = vsel %vm972, %v1192, %v1176
      %v1225 = vsel %vm972, %v1193, %v1177
      %v1226 = vsel %vm972, %v1194, %v1178
      %v1227 = vsel %vm972, %v1195, %v1179
      %v1228 = vsel %vm972, %v1196, %v1180
      %v1229 = vsel %vm972, %v1197, %v1181
      %v1230 = vsel %vm972, %v1198, %v1182
      %v1231 = vsel %vm1005, %v1199, 0.0
      %v1232 = vsel %vm1006, %v1215, 0.0
      %v1233 = vsel %vm1005, %v1200, 0.0
      %v1234 = vsel %vm1006, %v1216, 0.0
      %v1235 = vsel %vm1005, %v1201, 0.0
      %v1236 = vsel %vm1006, %v1217, 0.0
      %v1237 = vsel %vm1005, %v1202, 0.0
      %v1238 = vsel %vm1006, %v1218, 0.0
      %v1239 = vsel %vm1005, %v1203, 0.0
      %v1240 = vsel %vm1006, %v1219, 0.0
      %v1241 = vsel %vm1005, %v1204, 0.0
      %v1242 = vsel %vm1006, %v1220, 0.0
      %v1243 = vsel %vm1005, %v1205, 0.0
      %v1244 = vsel %vm1006, %v1221, 0.0
      %v1245 = vsel %vm1005, %v1206, 0.0
      %v1246 = vsel %vm1006, %v1222, 0.0
      %v1247 = vsel %vm1005, %v1207, 0.0
      %v1248 = vsel %vm1006, %v1223, 0.0
      %v1249 = vsel %vm1005, %v1208, 0.0
      %v1250 = vsel %vm1006, %v1224, 0.0
      %v1251 = vsel %vm1005, %v1209, 0.0
      %v1252 = vsel %vm1006, %v1225, 0.0
      %v1253 = vsel %vm1005, %v1210, 0.0
      %v1254 = vsel %vm1006, %v1226, 0.0
      %v1255 = vsel %vm1005, %v1211, 0.0
      %v1256 = vsel %vm1006, %v1227, 0.0
      %v1257 = vsel %vm1005, %v1212, 0.0
      %v1258 = vsel %vm1006, %v1228, 0.0
      %v1259 = vsel %vm1005, %v1213, 0.0
      %v1260 = vsel %vm1006, %v1229, 0.0
      %v1261 = vsel %vm1005, %v1214, 0.0
      %v1262 = vsel %vm1006, %v1230, 0.0
      %s1263 = scalar_lea.vmem [#allocation2], 32
      %v1264 = vld [vmem:[%s1263] sm:$0xff]
      %v1265 = vld [vmem:[%s1263 + $0x8] sm:$0xff]
      %v1266 = vld [vmem:[%s1263 + $0x10] sm:$0xff]
      %v1267 = vld [vmem:[%s1263 + $0x18] sm:$0xff]
      %v1268 = vld [vmem:[%s1263 + $0x20] sm:$0xff]
      %v1269 = vld [vmem:[%s1263 + $0x28] sm:$0xff]
      %v1270 = vld [vmem:[%s1263 + $0x30] sm:$0xff]
      %v1271 = vld [vmem:[%s1263 + $0x38] sm:$0xff]
      %v1272 = vld [vmem:[%s1263 + $0x40] sm:$0xff]
      %v1273 = vld [vmem:[%s1263 + $0x48] sm:$0xff]
      %v1274 = vld [vmem:[%s1263 + $0x50] sm:$0xff]
      %v1275 = vld [vmem:[%s1263 + $0x58] sm:$0xff]
      %v1276 = vld [vmem:[%s1263 + $0x60] sm:$0xff]
      %v1277 = vld [vmem:[%s1263 + $0x68] sm:$0xff]
      %v1278 = vld [vmem:[%s1263 + $0x70] sm:$0xff]
      %v1279 = vld [vmem:[%s1263 + $0x78] sm:$0xff]
      %v1280 = vld [vmem:[%s1263 + $0x80] sm:$0xff]
      %v1281 = vld [vmem:[%s1263 + $0x88] sm:$0xff]
      %v1282 = vld [vmem:[%s1263 + $0x90] sm:$0xff]
      %v1283 = vld [vmem:[%s1263 + $0x98] sm:$0xff]
      %v1284 = vld [vmem:[%s1263 + $0xa0] sm:$0xff]
      %v1285 = vld [vmem:[%s1263 + $0xa8] sm:$0xff]
      %v1286 = vld [vmem:[%s1263 + $0xb0] sm:$0xff]
      %v1287 = vld [vmem:[%s1263 + $0xb8] sm:$0xff]
      %v1288 = vld [vmem:[%s1263 + $0xc0] sm:$0xff]
      %v1289 = vld [vmem:[%s1263 + $0xc8] sm:$0xff]
      %v1290 = vld [vmem:[%s1263 + $0xd0] sm:$0xff]
      %v1291 = vld [vmem:[%s1263 + $0xd8] sm:$0xff]
      %v1292 = vld [vmem:[%s1263 + $0xe0] sm:$0xff]
      %v1293 = vld [vmem:[%s1263 + $0xe8] sm:$0xff]
      %v1294 = vld [vmem:[%s1263 + $0xf0] sm:$0xff]
      %v1295 = vld [vmem:[%s1263 + $0xf8] sm:$0xff]
      %v1296 = vrot.slane %v1264, 7
      %v1297 = vrot.slane %v1266, 7
      %v1298 = vrot.slane %v1268, 7
      %v1299 = vrot.slane %v1270, 7
      %v1300 = vrot.slane %v1272, 7
      %v1301 = vrot.slane %v1274, 7
      %v1302 = vrot.slane %v1276, 7
      %v1303 = vrot.slane %v1278, 7
      %v1304 = vrot.slane %v1280, 7
      %v1305 = vrot.slane %v1282, 7
      %v1306 = vrot.slane %v1284, 7
      %v1307 = vrot.slane %v1286, 7
      %v1308 = vrot.slane %v1288, 7
      %v1309 = vrot.slane %v1290, 7
      %v1310 = vrot.slane %v1292, 7
      %v1311 = vrot.slane %v1294, 7
      %v1312 = vrot.slane %v1265, 7
      %v1313 = vrot.slane %v1267, 7
      %v1314 = vrot.slane %v1269, 7
      %v1315 = vrot.slane %v1271, 7
      %v1316 = vrot.slane %v1273, 7
      %v1317 = vrot.slane %v1275, 7
      %v1318 = vrot.slane %v1277, 7
      %v1319 = vrot.slane %v1279, 7
      %v1320 = vrot.slane %v1281, 7
      %v1321 = vrot.slane %v1283, 7
      %v1322 = vrot.slane %v1285, 7
      %v1323 = vrot.slane %v1287, 7
      %v1324 = vrot.slane %v1289, 7
      %v1325 = vrot.slane %v1291, 7
      %v1326 = vrot.slane %v1293, 7
      %v1327 = vrot.slane %v1295, 7
      %v1328 = vsel %vm873, %v1296, %v1312
      %v1329 = vsel %vm873, %v1297, %v1313
      %v1330 = vsel %vm873, %v1298, %v1314
      %v1331 = vsel %vm873, %v1299, %v1315
      %v1332 = vsel %vm873, %v1300, %v1316
      %v1333 = vsel %vm873, %v1301, %v1317
      %v1334 = vsel %vm873, %v1302, %v1318
      %v1335 = vsel %vm873, %v1303, %v1319
      %v1336 = vsel %vm873, %v1304, %v1320
      %v1337 = vsel %vm873, %v1305, %v1321
      %v1338 = vsel %vm873, %v1306, %v1322
      %v1339 = vsel %vm873, %v1307, %v1323
      %v1340 = vsel %vm873, %v1308, %v1324
      %v1341 = vsel %vm873, %v1309, %v1325
      %v1342 = vsel %vm873, %v1310, %v1326
      %v1343 = vsel %vm873, %v1311, %v1327
      %v1344 = vsel %vm873, %v1312, %v1296
      %v1345 = vsel %vm873, %v1313, %v1297
      %v1346 = vsel %vm873, %v1314, %v1298
      %v1347 = vsel %vm873, %v1315, %v1299
      %v1348 = vsel %vm873, %v1316, %v1300
      %v1349 = vsel %vm873, %v1317, %v1301
      %v1350 = vsel %vm873, %v1318, %v1302
      %v1351 = vsel %vm873, %v1319, %v1303
      %v1352 = vsel %vm873, %v1320, %v1304
      %v1353 = vsel %vm873, %v1321, %v1305
      %v1354 = vsel %vm873, %v1322, %v1306
      %v1355 = vsel %vm873, %v1323, %v1307
      %v1356 = vsel %vm873, %v1324, %v1308
      %v1357 = vsel %vm873, %v1325, %v1309
      %v1358 = vsel %vm873, %v1326, %v1310
      %v1359 = vsel %vm873, %v1327, %v1311
      %v1360 = vsel %vm906, %v1344, 0.0
      %v1361 = vsel %vm907, %v1328, 0.0
      %v1362 = vsel %vm906, %v1345, 0.0
      %v1363 = vsel %vm907, %v1329, 0.0
      %v1364 = vsel %vm906, %v1346, 0.0
      %v1365 = vsel %vm907, %v1330, 0.0
      %v1366 = vsel %vm906, %v1347, 0.0
      %v1367 = vsel %vm907, %v1331, 0.0
      %v1368 = vsel %vm906, %v1348, 0.0
      %v1369 = vsel %vm907, %v1332, 0.0
      %v1370 = vsel %vm906, %v1349, 0.0
      %v1371 = vsel %vm907, %v1333, 0.0
      %v1372 = vsel %vm906, %v1350, 0.0
      %v1373 = vsel %vm907, %v1334, 0.0
      %v1374 = vsel %vm906, %v1351, 0.0
      %v1375 = vsel %vm907, %v1335, 0.0
      %v1376 = vsel %vm906, %v1352, 0.0
      %v1377 = vsel %vm907, %v1336, 0.0
      %v1378 = vsel %vm906, %v1353, 0.0
      %v1379 = vsel %vm907, %v1337, 0.0
      %v1380 = vsel %vm906, %v1354, 0.0
      %v1381 = vsel %vm907, %v1338, 0.0
      %v1382 = vsel %vm906, %v1355, 0.0
      %v1383 = vsel %vm907, %v1339, 0.0
      %v1384 = vsel %vm906, %v1356, 0.0
      %v1385 = vsel %vm907, %v1340, 0.0
      %v1386 = vsel %vm906, %v1357, 0.0
      %v1387 = vsel %vm907, %v1341, 0.0
      %v1388 = vsel %vm906, %v1358, 0.0
      %v1389 = vsel %vm907, %v1342, 0.0
      %v1390 = vsel %vm906, %v1359, 0.0
      %v1391 = vsel %vm907, %v1343, 0.0
      %v1392 = vrot.slane %v1264, 1
      %v1393 = vrot.slane %v1266, 1
      %v1394 = vrot.slane %v1268, 1
      %v1395 = vrot.slane %v1270, 1
      %v1396 = vrot.slane %v1272, 1
      %v1397 = vrot.slane %v1274, 1
      %v1398 = vrot.slane %v1276, 1
      %v1399 = vrot.slane %v1278, 1
      %v1400 = vrot.slane %v1280, 1
      %v1401 = vrot.slane %v1282, 1
      %v1402 = vrot.slane %v1284, 1
      %v1403 = vrot.slane %v1286, 1
      %v1404 = vrot.slane %v1288, 1
      %v1405 = vrot.slane %v1290, 1
      %v1406 = vrot.slane %v1292, 1
      %v1407 = vrot.slane %v1294, 1
      %v1408 = vrot.slane %v1265, 1
      %v1409 = vrot.slane %v1267, 1
      %v1410 = vrot.slane %v1269, 1
      %v1411 = vrot.slane %v1271, 1
      %v1412 = vrot.slane %v1273, 1
      %v1413 = vrot.slane %v1275, 1
      %v1414 = vrot.slane %v1277, 1
      %v1415 = vrot.slane %v1279, 1
      %v1416 = vrot.slane %v1281, 1
      %v1417 = vrot.slane %v1283, 1
      %v1418 = vrot.slane %v1285, 1
      %v1419 = vrot.slane %v1287, 1
      %v1420 = vrot.slane %v1289, 1
      %v1421 = vrot.slane %v1291, 1
      %v1422 = vrot.slane %v1293, 1
      %v1423 = vrot.slane %v1295, 1
      %v1424 = vsel %vm972, %v1392, %v1408
      %v1425 = vsel %vm972, %v1393, %v1409
      %v1426 = vsel %vm972, %v1394, %v1410
      %v1427 = vsel %vm972, %v1395, %v1411
      %v1428 = vsel %vm972, %v1396, %v1412
      %v1429 = vsel %vm972, %v1397, %v1413
      %v1430 = vsel %vm972, %v1398, %v1414
      %v1431 = vsel %vm972, %v1399, %v1415
      %v1432 = vsel %vm972, %v1400, %v1416
      %v1433 = vsel %vm972, %v1401, %v1417
      %v1434 = vsel %vm972, %v1402, %v1418
      %v1435 = vsel %vm972, %v1403, %v1419
      %v1436 = vsel %vm972, %v1404, %v1420
      %v1437 = vsel %vm972, %v1405, %v1421
      %v1438 = vsel %vm972, %v1406, %v1422
      %v1439 = vsel %vm972, %v1407, %v1423
      %v1440 = vsel %vm972, %v1408, %v1392
      %v1441 = vsel %vm972, %v1409, %v1393
      %v1442 = vsel %vm972, %v1410, %v1394
      %v1443 = vsel %vm972, %v1411, %v1395
      %v1444 = vsel %vm972, %v1412, %v1396
      %v1445 = vsel %vm972, %v1413, %v1397
      %v1446 = vsel %vm972, %v1414, %v1398
      %v1447 = vsel %vm972, %v1415, %v1399
      %v1448 = vsel %vm972, %v1416, %v1400
      %v1449 = vsel %vm972, %v1417, %v1401
      %v1450 = vsel %vm972, %v1418, %v1402
      %v1451 = vsel %vm972, %v1419, %v1403
      %v1452 = vsel %vm972, %v1420, %v1404
      %v1453 = vsel %vm972, %v1421, %v1405
      %v1454 = vsel %vm972, %v1422, %v1406
      %v1455 = vsel %vm972, %v1423, %v1407
      %v1456 = vsel %vm1005, %v1424, 0.0
      %v1457 = vsel %vm1006, %v1440, 0.0
      %v1458 = vsel %vm1005, %v1425, 0.0
      %v1459 = vsel %vm1006, %v1441, 0.0
      %v1460 = vsel %vm1005, %v1426, 0.0
      %v1461 = vsel %vm1006, %v1442, 0.0
      %v1462 = vsel %vm1005, %v1427, 0.0
      %v1463 = vsel %vm1006, %v1443, 0.0
      %v1464 = vsel %vm1005, %v1428, 0.0
      %v1465 = vsel %vm1006, %v1444, 0.0
      %v1466 = vsel %vm1005, %v1429, 0.0
      %v1467 = vsel %vm1006, %v1445, 0.0
      %v1468 = vsel %vm1005, %v1430, 0.0
      %v1469 = vsel %vm1006, %v1446, 0.0
      %v1470 = vsel %vm1005, %v1431, 0.0
      %v1471 = vsel %vm1006, %v1447, 0.0
      %v1472 = vsel %vm1005, %v1432, 0.0
      %v1473 = vsel %vm1006, %v1448, 0.0
      %v1474 = vsel %vm1005, %v1433, 0.0
      %v1475 = vsel %vm1006, %v1449, 0.0
      %v1476 = vsel %vm1005, %v1434, 0.0
      %v1477 = vsel %vm1006, %v1450, 0.0
      %v1478 = vsel %vm1005, %v1435, 0.0
      %v1479 = vsel %vm1006, %v1451, 0.0
      %v1480 = vsel %vm1005, %v1436, 0.0
      %v1481 = vsel %vm1006, %v1452, 0.0
      %v1482 = vsel %vm1005, %v1437, 0.0
      %v1483 = vsel %vm1006, %v1453, 0.0
      %v1484 = vsel %vm1005, %v1438, 0.0
      %v1485 = vsel %vm1006, %v1454, 0.0
      %v1486 = vsel %vm1005, %v1439, 0.0
      %v1487 = vsel %vm1006, %v1455, 0.0
      %1520 = vrot.lane.b32.xlu0 %v809, 8
      %v1521 = vpop.permute.xlu0 %1520
      %1522 = vrot.lane.b32.xlu0 %v810, 8
      %v1523 = vpop.permute.xlu0 %1522
      %1524 = vrot.lane.b32.xlu0 %v811, 8
      %v1525 = vpop.permute.xlu0 %1524
      %1526 = vrot.lane.b32.xlu0 %v812, 8
      %v1527 = vpop.permute.xlu0 %1526
      %1528 = vrot.lane.b32.xlu0 %v813, 8
      %v1529 = vpop.permute.xlu0 %1528
      %1530 = vrot.lane.b32.xlu0 %v814, 8
      %v1531 = vpop.permute.xlu0 %1530
      %1532 = vrot.lane.b32.xlu0 %v815, 8
      %v1533 = vpop.permute.xlu0 %1532
      %1534 = vrot.lane.b32.xlu0 %v816, 8
      %v1535 = vpop.permute.xlu0 %1534
      %1536 = vrot.lane.b32.xlu0 %v817, 8
      %v1537 = vpop.permute.xlu0 %1536
      %1538 = vrot.lane.b32.xlu0 %v818, 8
      %v1539 = vpop.permute.xlu0 %1538
      %1540 = vrot.lane.b32.xlu0 %v819, 8
      %v1541 = vpop.permute.xlu0 %1540
      %1542 = vrot.lane.b32.xlu0 %v820, 8
      %v1543 = vpop.permute.xlu0 %1542
      %1544 = vrot.lane.b32.xlu0 %v821, 8
      %v1545 = vpop.permute.xlu0 %1544
      %1546 = vrot.lane.b32.xlu0 %v822, 8
      %v1547 = vpop.permute.xlu0 %1546
      %1548 = vrot.lane.b32.xlu0 %v823, 8
      %v1549 = vpop.permute.xlu0 %1548
      %1550 = vrot.lane.b32.xlu0 %v824, 8
      %v1551 = vpop.permute.xlu0 %1550
      %1552 = vrot.lane.b32.xlu0 %v825, 8
      %v1553 = vpop.permute.xlu0 %1552
      %1554 = vrot.lane.b32.xlu0 %v826, 8
      %v1555 = vpop.permute.xlu0 %1554
      %1556 = vrot.lane.b32.xlu0 %v827, 8
      %v1557 = vpop.permute.xlu0 %1556
      %1558 = vrot.lane.b32.xlu0 %v828, 8
      %v1559 = vpop.permute.xlu0 %1558
      %1560 = vrot.lane.b32.xlu0 %v829, 8
      %v1561 = vpop.permute.xlu0 %1560
      %1562 = vrot.lane.b32.xlu0 %v830, 8
      %v1563 = vpop.permute.xlu0 %1562
      %1564 = vrot.lane.b32.xlu0 %v831, 8
      %v1565 = vpop.permute.xlu0 %1564
      %1566 = vrot.lane.b32.xlu0 %v832, 8
      %v1567 = vpop.permute.xlu0 %1566
      %1568 = vrot.lane.b32.xlu0 %v833, 8
      %v1569 = vpop.permute.xlu0 %1568
      %1570 = vrot.lane.b32.xlu0 %v834, 8
      %v1571 = vpop.permute.xlu0 %1570
      %1572 = vrot.lane.b32.xlu0 %v835, 8
      %v1573 = vpop.permute.xlu0 %1572
      %1574 = vrot.lane.b32.xlu0 %v836, 8
      %v1575 = vpop.permute.xlu0 %1574
      %1576 = vrot.lane.b32.xlu0 %v837, 8
      %v1577 = vpop.permute.xlu0 %1576
      %1578 = vrot.lane.b32.xlu0 %v838, 8
      %v1579 = vpop.permute.xlu0 %1578
      %1580 = vrot.lane.b32.xlu0 %v839, 8
      %v1581 = vpop.permute.xlu0 %1580
      %1582 = vrot.lane.b32.xlu0 %v840, 8
      %v1583 = vpop.permute.xlu0 %1582
      %1648 = vrot.lane.b32.xlu0 %v1007, 16
      %v1649 = vpop.permute.xlu0 %1648
      %1650 = vrot.lane.b32.xlu0 %v1008, 16
      %v1651 = vpop.permute.xlu0 %1650
      %1652 = vrot.lane.b32.xlu0 %v1009, 16
      %v1653 = vpop.permute.xlu0 %1652
      %1654 = vrot.lane.b32.xlu0 %v1010, 16
      %v1655 = vpop.permute.xlu0 %1654
      %1656 = vrot.lane.b32.xlu0 %v1011, 16
      %v1657 = vpop.permute.xlu0 %1656
      %1658 = vrot.lane.b32.xlu0 %v1012, 16
      %v1659 = vpop.permute.xlu0 %1658
      %1660 = vrot.lane.b32.xlu0 %v1013, 16
      %v1661 = vpop.permute.xlu0 %1660
      %1662 = vrot.lane.b32.xlu0 %v1014, 16
      %v1663 = vpop.permute.xlu0 %1662
      %1664 = vrot.lane.b32.xlu0 %v1015, 16
      %v1665 = vpop.permute.xlu0 %1664
      %1666 = vrot.lane.b32.xlu0 %v1016, 16
      %v1667 = vpop.permute.xlu0 %1666
      %1668 = vrot.lane.b32.xlu0 %v1017, 16
      %v1669 = vpop.permute.xlu0 %1668
      %1670 = vrot.lane.b32.xlu0 %v1018, 16
      %v1671 = vpop.permute.xlu0 %1670
      %1672 = vrot.lane.b32.xlu0 %v1019, 16
      %v1673 = vpop.permute.xlu0 %1672
      %1674 = vrot.lane.b32.xlu0 %v1020, 16
      %v1675 = vpop.permute.xlu0 %1674
      %1676 = vrot.lane.b32.xlu0 %v1021, 16
      %v1677 = vpop.permute.xlu0 %1676
      %1678 = vrot.lane.b32.xlu0 %v1022, 16
      %v1679 = vpop.permute.xlu0 %1678
      %1680 = vrot.lane.b32.xlu0 %v1023, 16
      %v1681 = vpop.permute.xlu0 %1680
      %1682 = vrot.lane.b32.xlu0 %v1024, 16
      %v1683 = vpop.permute.xlu0 %1682
      %1684 = vrot.lane.b32.xlu0 %v1025, 16
      %v1685 = vpop.permute.xlu0 %1684
      %1686 = vrot.lane.b32.xlu0 %v1026, 16
      %v1687 = vpop.permute.xlu0 %1686
      %1688 = vrot.lane.b32.xlu0 %v1027, 16
      %v1689 = vpop.permute.xlu0 %1688
      %1690 = vrot.lane.b32.xlu0 %v1028, 16
      %v1691 = vpop.permute.xlu0 %1690
      %1692 = vrot.lane.b32.xlu0 %v1029, 16
      %v1693 = vpop.permute.xlu0 %1692
      %1694 = vrot.lane.b32.xlu0 %v1030, 16
      %v1695 = vpop.permute.xlu0 %1694
      %1696 = vrot.lane.b32.xlu0 %v1031, 16
      %v1697 = vpop.permute.xlu0 %1696
      %1698 = vrot.lane.b32.xlu0 %v1032, 16
      %v1699 = vpop.permute.xlu0 %1698
      %1700 = vrot.lane.b32.xlu0 %v1033, 16
      %v1701 = vpop.permute.xlu0 %1700
      %1702 = vrot.lane.b32.xlu0 %v1034, 16
      %v1703 = vpop.permute.xlu0 %1702
      %1704 = vrot.lane.b32.xlu0 %v1035, 16
      %v1705 = vpop.permute.xlu0 %1704
      %1706 = vrot.lane.b32.xlu0 %v1036, 16
      %v1707 = vpop.permute.xlu0 %1706
      %1708 = vrot.lane.b32.xlu0 %v1037, 16
      %v1709 = vpop.permute.xlu0 %1708
      %1710 = vrot.lane.b32.xlu0 %v1038, 16
      %v1711 = vpop.permute.xlu0 %1710
      %1776 = vrot.lane.b32.xlu0 %v1135, 24
      %v1777 = vpop.permute.xlu0 %1776
      %1778 = vrot.lane.b32.xlu0 %v1136, 24
      %v1779 = vpop.permute.xlu0 %1778
      %1780 = vrot.lane.b32.xlu0 %v1137, 24
      %v1781 = vpop.permute.xlu0 %1780
      %1782 = vrot.lane.b32.xlu0 %v1138, 24
      %v1783 = vpop.permute.xlu0 %1782
      %1784 = vrot.lane.b32.xlu0 %v1139, 24
      %v1785 = vpop.permute.xlu0 %1784
      %1786 = vrot.lane.b32.xlu0 %v1140, 24
      %v1787 = vpop.permute.xlu0 %1786
      %1788 = vrot.lane.b32.xlu0 %v1141, 24
      %v1789 = vpop.permute.xlu0 %1788
      %1790 = vrot.lane.b32.xlu0 %v1142, 24
      %v1791 = vpop.permute.xlu0 %1790
      %1792 = vrot.lane.b32.xlu0 %v1143, 24
      %v1793 = vpop.permute.xlu0 %1792
      %1794 = vrot.lane.b32.xlu0 %v1144, 24
      %v1795 = vpop.permute.xlu0 %1794
      %1796 = vrot.lane.b32.xlu0 %v1145, 24
      %v1797 = vpop.permute.xlu0 %1796
      %1798 = vrot.lane.b32.xlu0 %v1146, 24
      %v1799 = vpop.permute.xlu0 %1798
      %1800 = vrot.lane.b32.xlu0 %v1147, 24
      %v1801 = vpop.permute.xlu0 %1800
      %1802 = vrot.lane.b32.xlu0 %v1148, 24
      %v1803 = vpop.permute.xlu0 %1802
      %1804 = vrot.lane.b32.xlu0 %v1149, 24
      %v1805 = vpop.permute.xlu0 %1804
      %1806 = vrot.lane.b32.xlu0 %v1150, 24
      %v1807 = vpop.permute.xlu0 %1806
      %1808 = vrot.lane.b32.xlu0 %v1151, 24
      %v1809 = vpop.permute.xlu0 %1808
      %1810 = vrot.lane.b32.xlu0 %v1152, 24
      %v1811 = vpop.permute.xlu0 %1810
      %1812 = vrot.lane.b32.xlu0 %v1153, 24
      %v1813 = vpop.permute.xlu0 %1812
      %1814 = vrot.lane.b32.xlu0 %v1154, 24
      %v1815 = vpop.permute.xlu0 %1814
      %1816 = vrot.lane.b32.xlu0 %v1155, 24
      %v1817 = vpop.permute.xlu0 %1816
      %1818 = vrot.lane.b32.xlu0 %v1156, 24
      %v1819 = vpop.permute.xlu0 %1818
      %1820 = vrot.lane.b32.xlu0 %v1157, 24
      %v1821 = vpop.permute.xlu0 %1820
      %1822 = vrot.lane.b32.xlu0 %v1158, 24
      %v1823 = vpop.permute.xlu0 %1822
      %1824 = vrot.lane.b32.xlu0 %v1159, 24
      %v1825 = vpop.permute.xlu0 %1824
      %1826 = vrot.lane.b32.xlu0 %v1160, 24
      %v1827 = vpop.permute.xlu0 %1826
      %1828 = vrot.lane.b32.xlu0 %v1161, 24
      %v1829 = vpop.permute.xlu0 %1828
      %1830 = vrot.lane.b32.xlu0 %v1162, 24
      %v1831 = vpop.permute.xlu0 %1830
      %1832 = vrot.lane.b32.xlu0 %v1163, 24
      %v1833 = vpop.permute.xlu0 %1832
      %1834 = vrot.lane.b32.xlu0 %v1164, 24
      %v1835 = vpop.permute.xlu0 %1834
      %1836 = vrot.lane.b32.xlu0 %v1165, 24
      %v1837 = vpop.permute.xlu0 %1836
      %1838 = vrot.lane.b32.xlu0 %v1166, 24
      %v1839 = vpop.permute.xlu0 %1838
      %1904 = vrot.lane.b32.xlu0 %v1039, 32
      %v1905 = vpop.permute.xlu0 %1904
      %1906 = vrot.lane.b32.xlu0 %v1040, 32
      %v1907 = vpop.permute.xlu0 %1906
      %1908 = vrot.lane.b32.xlu0 %v1041, 32
      %v1909 = vpop.permute.xlu0 %1908
      %1910 = vrot.lane.b32.xlu0 %v1042, 32
      %v1911 = vpop.permute.xlu0 %1910
      %1912 = vrot.lane.b32.xlu0 %v1043, 32
      %v1913 = vpop.permute.xlu0 %1912
      %1914 = vrot.lane.b32.xlu0 %v1044, 32
      %v1915 = vpop.permute.xlu0 %1914
      %1916 = vrot.lane.b32.xlu0 %v1045, 32
      %v1917 = vpop.permute.xlu0 %1916
      %1918 = vrot.lane.b32.xlu0 %v1046, 32
      %v1919 = vpop.permute.xlu0 %1918
      %1920 = vrot.lane.b32.xlu0 %v1047, 32
      %v1921 = vpop.permute.xlu0 %1920
      %1922 = vrot.lane.b32.xlu0 %v1048, 32
      %v1923 = vpop.permute.xlu0 %1922
      %1924 = vrot.lane.b32.xlu0 %v1049, 32
      %v1925 = vpop.permute.xlu0 %1924
      %1926 = vrot.lane.b32.xlu0 %v1050, 32
      %v1927 = vpop.permute.xlu0 %1926
      %1928 = vrot.lane.b32.xlu0 %v1051, 32
      %v1929 = vpop.permute.xlu0 %1928
      %1930 = vrot.lane.b32.xlu0 %v1052, 32
      %v1931 = vpop.permute.xlu0 %1930
      %1932 = vrot.lane.b32.xlu0 %v1053, 32
      %v1933 = vpop.permute.xlu0 %1932
      %1934 = vrot.lane.b32.xlu0 %v1054, 32
      %v1935 = vpop.permute.xlu0 %1934
      %1936 = vrot.lane.b32.xlu0 %v1055, 32
      %v1937 = vpop.permute.xlu0 %1936
      %1938 = vrot.lane.b32.xlu0 %v1056, 32
      %v1939 = vpop.permute.xlu0 %1938
      %1940 = vrot.lane.b32.xlu0 %v1057, 32
      %v1941 = vpop.permute.xlu0 %1940
      %1942 = vrot.lane.b32.xlu0 %v1058, 32
      %v1943 = vpop.permute.xlu0 %1942
      %1944 = vrot.lane.b32.xlu0 %v1059, 32
      %v1945 = vpop.permute.xlu0 %1944
      %1946 = vrot.lane.b32.xlu0 %v1060, 32
      %v1947 = vpop.permute.xlu0 %1946
      %1948 = vrot.lane.b32.xlu0 %v1061, 32
      %v1949 = vpop.permute.xlu0 %1948
      %1950 = vrot.lane.b32.xlu0 %v1062, 32
      %v1951 = vpop.permute.xlu0 %1950
      %1952 = vrot.lane.b32.xlu0 %v1063, 32
      %v1953 = vpop.permute.xlu0 %1952
      %1954 = vrot.lane.b32.xlu0 %v1064, 32
      %v1955 = vpop.permute.xlu0 %1954
      %1956 = vrot.lane.b32.xlu0 %v1065, 32
      %v1957 = vpop.permute.xlu0 %1956
      %1958 = vrot.lane.b32.xlu0 %v1066, 32
      %v1959 = vpop.permute.xlu0 %1958
      %1960 = vrot.lane.b32.xlu0 %v1067, 32
      %v1961 = vpop.permute.xlu0 %1960
      %1962 = vrot.lane.b32.xlu0 %v1068, 32
      %v1963 = vpop.permute.xlu0 %1962
      %1964 = vrot.lane.b32.xlu0 %v1069, 32
      %v1965 = vpop.permute.xlu0 %1964
      %1966 = vrot.lane.b32.xlu0 %v1070, 32
      %v1967 = vpop.permute.xlu0 %1966
      %2032 = vrot.lane.b32.xlu0 %v1231, 40
      %v2033 = vpop.permute.xlu0 %2032
      %2034 = vrot.lane.b32.xlu0 %v1232, 40
      %v2035 = vpop.permute.xlu0 %2034
      %2036 = vrot.lane.b32.xlu0 %v1233, 40
      %v2037 = vpop.permute.xlu0 %2036
      %2038 = vrot.lane.b32.xlu0 %v1234, 40
      %v2039 = vpop.permute.xlu0 %2038
      %2040 = vrot.lane.b32.xlu0 %v1235, 40
      %v2041 = vpop.permute.xlu0 %2040
      %2042 = vrot.lane.b32.xlu0 %v1236, 40
      %v2043 = vpop.permute.xlu0 %2042
      %2044 = vrot.lane.b32.xlu0 %v1237, 40
      %v2045 = vpop.permute.xlu0 %2044
      %2046 = vrot.lane.b32.xlu0 %v1238, 40
      %v2047 = vpop.permute.xlu0 %2046
      %2048 = vrot.lane.b32.xlu0 %v1239, 40
      %v2049 = vpop.permute.xlu0 %2048
      %2050 = vrot.lane.b32.xlu0 %v1240, 40
      %v2051 = vpop.permute.xlu0 %2050
      %2052 = vrot.lane.b32.xlu0 %v1241, 40
      %v2053 = vpop.permute.xlu0 %2052
      %2054 = vrot.lane.b32.xlu0 %v1242, 40
      %v2055 = vpop.permute.xlu0 %2054
      %2056 = vrot.lane.b32.xlu0 %v1243, 40
      %v2057 = vpop.permute.xlu0 %2056
      %2058 = vrot.lane.b32.xlu0 %v1244, 40
      %v2059 = vpop.permute.xlu0 %2058
      %2060 = vrot.lane.b32.xlu0 %v1245, 40
      %v2061 = vpop.permute.xlu0 %2060
      %2062 = vrot.lane.b32.xlu0 %v1246, 40
      %v2063 = vpop.permute.xlu0 %2062
      %2064 = vrot.lane.b32.xlu0 %v1247, 40
      %v2065 = vpop.permute.xlu0 %2064
      %2066 = vrot.lane.b32.xlu0 %v1248, 40
      %v2067 = vpop.permute.xlu0 %2066
      %2068 = vrot.lane.b32.xlu0 %v1249, 40
      %v2069 = vpop.permute.xlu0 %2068
      %2070 = vrot.lane.b32.xlu0 %v1250, 40
      %v2071 = vpop.permute.xlu0 %2070
      %2072 = vrot.lane.b32.xlu0 %v1251, 40
      %v2073 = vpop.permute.xlu0 %2072
      %2074 = vrot.lane.b32.xlu0 %v1252, 40
      %v2075 = vpop.permute.xlu0 %2074
      %2076 = vrot.lane.b32.xlu0 %v1253, 40
      %v2077 = vpop.permute.xlu0 %2076
      %2078 = vrot.lane.b32.xlu0 %v1254, 40
      %v2079 = vpop.permute.xlu0 %2078
      %2080 = vrot.lane.b32.xlu0 %v1255, 40
      %v2081 = vpop.permute.xlu0 %2080
      %2082 = vrot.lane.b32.xlu0 %v1256, 40
      %v2083 = vpop.permute.xlu0 %2082
      %2084 = vrot.lane.b32.xlu0 %v1257, 40
      %v2085 = vpop.permute.xlu0 %2084
      %2086 = vrot.lane.b32.xlu0 %v1258, 40
      %v2087 = vpop.permute.xlu0 %2086
      %2088 = vrot.lane.b32.xlu0 %v1259, 40
      %v2089 = vpop.permute.xlu0 %2088
      %2090 = vrot.lane.b32.xlu0 %v1260, 40
      %v2091 = vpop.permute.xlu0 %2090
      %2092 = vrot.lane.b32.xlu0 %v1261, 40
      %v2093 = vpop.permute.xlu0 %2092
      %2094 = vrot.lane.b32.xlu0 %v1262, 40
      %v2095 = vpop.permute.xlu0 %2094
      %2160 = vrot.lane.b32.xlu0 %v1360, 48
      %v2161 = vpop.permute.xlu0 %2160
      %2162 = vrot.lane.b32.xlu0 %v1361, 48
      %v2163 = vpop.permute.xlu0 %2162
      %2164 = vrot.lane.b32.xlu0 %v1362, 48
      %v2165 = vpop.permute.xlu0 %2164
      %2166 = vrot.lane.b32.xlu0 %v1363, 48
      %v2167 = vpop.permute.xlu0 %2166
      %2168 = vrot.lane.b32.xlu0 %v1364, 48
      %v2169 = vpop.permute.xlu0 %2168
      %2170 = vrot.lane.b32.xlu0 %v1365, 48
      %v2171 = vpop.permute.xlu0 %2170
      %2172 = vrot.lane.b32.xlu0 %v1366, 48
      %v2173 = vpop.permute.xlu0 %2172
      %2174 = vrot.lane.b32.xlu0 %v1367, 48
      %v2175 = vpop.permute.xlu0 %2174
      %2176 = vrot.lane.b32.xlu0 %v1368, 48
      %v2177 = vpop.permute.xlu0 %2176
      %2178 = vrot.lane.b32.xlu0 %v1369, 48
      %v2179 = vpop.permute.xlu0 %2178
      %2180 = vrot.lane.b32.xlu0 %v1370, 48
      %v2181 = vpop.permute.xlu0 %2180
      %2182 = vrot.lane.b32.xlu0 %v1371, 48
      %v2183 = vpop.permute.xlu0 %2182
      %2184 = vrot.lane.b32.xlu0 %v1372, 48
      %v2185 = vpop.permute.xlu0 %2184
      %2186 = vrot.lane.b32.xlu0 %v1373, 48
      %v2187 = vpop.permute.xlu0 %2186
      %2188 = vrot.lane.b32.xlu0 %v1374, 48
      %v2189 = vpop.permute.xlu0 %2188
      %2190 = vrot.lane.b32.xlu0 %v1375, 48
      %v2191 = vpop.permute.xlu0 %2190
      %2192 = vrot.lane.b32.xlu0 %v1376, 48
      %v2193 = vpop.permute.xlu0 %2192
      %2194 = vrot.lane.b32.xlu0 %v1377, 48
      %v2195 = vpop.permute.xlu0 %2194
      %2196 = vrot.lane.b32.xlu0 %v1378, 48
      %v2197 = vpop.permute.xlu0 %2196
      %2198 = vrot.lane.b32.xlu0 %v1379, 48
      %v2199 = vpop.permute.xlu0 %2198
      %2200 = vrot.lane.b32.xlu0 %v1380, 48
      %v2201 = vpop.permute.xlu0 %2200
      %2202 = vrot.lane.b32.xlu0 %v1381, 48
      %v2203 = vpop.permute.xlu0 %2202
      %2204 = vrot.lane.b32.xlu0 %v1382, 48
      %v2205 = vpop.permute.xlu0 %2204
      %2206 = vrot.lane.b32.xlu0 %v1383, 48
      %v2207 = vpop.permute.xlu0 %2206
      %2208 = vrot.lane.b32.xlu0 %v1384, 48
      %v2209 = vpop.permute.xlu0 %2208
      %2210 = vrot.lane.b32.xlu0 %v1385, 48
      %v2211 = vpop.permute.xlu0 %2210
      %2212 = vrot.lane.b32.xlu0 %v1386, 48
      %v2213 = vpop.permute.xlu0 %2212
      %2214 = vrot.lane.b32.xlu0 %v1387, 48
      %v2215 = vpop.permute.xlu0 %2214
      %2216 = vrot.lane.b32.xlu0 %v1388, 48
      %v2217 = vpop.permute.xlu0 %2216
      %2218 = vrot.lane.b32.xlu0 %v1389, 48
      %v2219 = vpop.permute.xlu0 %2218
      %2220 = vrot.lane.b32.xlu0 %v1390, 48
      %v2221 = vpop.permute.xlu0 %2220
      %2222 = vrot.lane.b32.xlu0 %v1391, 48
      %v2223 = vpop.permute.xlu0 %2222
      %2288 = vrot.lane.b32.xlu0 %v1264, 56
      %v2289 = vpop.permute.xlu0 %2288
      %2290 = vrot.lane.b32.xlu0 %v1265, 56
      %v2291 = vpop.permute.xlu0 %2290
      %2292 = vrot.lane.b32.xlu0 %v1266, 56
      %v2293 = vpop.permute.xlu0 %2292
      %2294 = vrot.lane.b32.xlu0 %v1267, 56
      %v2295 = vpop.permute.xlu0 %2294
      %2296 = vrot.lane.b32.xlu0 %v1268, 56
      %v2297 = vpop.permute.xlu0 %2296
      %2298 = vrot.lane.b32.xlu0 %v1269, 56
      %v2299 = vpop.permute.xlu0 %2298
      %2300 = vrot.lane.b32.xlu0 %v1270, 56
      %v2301 = vpop.permute.xlu0 %2300
      %2302 = vrot.lane.b32.xlu0 %v1271, 56
      %v2303 = vpop.permute.xlu0 %2302
      %2304 = vrot.lane.b32.xlu0 %v1272, 56
      %v2305 = vpop.permute.xlu0 %2304
      %2306 = vrot.lane.b32.xlu0 %v1273, 56
      %v2307 = vpop.permute.xlu0 %2306
      %2308 = vrot.lane.b32.xlu0 %v1274, 56
      %v2309 = vpop.permute.xlu0 %2308
      %2310 = vrot.lane.b32.xlu0 %v1275, 56
      %v2311 = vpop.permute.xlu0 %2310
      %2312 = vrot.lane.b32.xlu0 %v1276, 56
      %v2313 = vpop.permute.xlu0 %2312
      %2314 = vrot.lane.b32.xlu0 %v1277, 56
      %v2315 = vpop.permute.xlu0 %2314
      %2316 = vrot.lane.b32.xlu0 %v1278, 56
      %v2317 = vpop.permute.xlu0 %2316
      %2318 = vrot.lane.b32.xlu0 %v1279, 56
      %v2319 = vpop.permute.xlu0 %2318
      %2320 = vrot.lane.b32.xlu0 %v1280, 56
      %v2321 = vpop.permute.xlu0 %2320
      %2322 = vrot.lane.b32.xlu0 %v1281, 56
      %v2323 = vpop.permute.xlu0 %2322
      %2324 = vrot.lane.b32.xlu0 %v1282, 56
      %v2325 = vpop.permute.xlu0 %2324
      %2326 = vrot.lane.b32.xlu0 %v1283, 56
      %v2327 = vpop.permute.xlu0 %2326
      %2328 = vrot.lane.b32.xlu0 %v1284, 56
      %v2329 = vpop.permute.xlu0 %2328
      %2330 = vrot.lane.b32.xlu0 %v1285, 56
      %v2331 = vpop.permute.xlu0 %2330
      %2332 = vrot.lane.b32.xlu0 %v1286, 56
      %v2333 = vpop.permute.xlu0 %2332
      %2334 = vrot.lane.b32.xlu0 %v1287, 56
      %v2335 = vpop.permute.xlu0 %2334
      %2336 = vrot.lane.b32.xlu0 %v1288, 56
      %v2337 = vpop.permute.xlu0 %2336
      %2338 = vrot.lane.b32.xlu0 %v1289, 56
      %v2339 = vpop.permute.xlu0 %2338
      %2340 = vrot.lane.b32.xlu0 %v1290, 56
      %v2341 = vpop.permute.xlu0 %2340
      %2342 = vrot.lane.b32.xlu0 %v1291, 56
      %v2343 = vpop.permute.xlu0 %2342
      %2344 = vrot.lane.b32.xlu0 %v1292, 56
      %v2345 = vpop.permute.xlu0 %2344
      %2346 = vrot.lane.b32.xlu0 %v1293, 56
      %v2347 = vpop.permute.xlu0 %2346
      %2348 = vrot.lane.b32.xlu0 %v1294, 56
      %v2349 = vpop.permute.xlu0 %2348
      %2350 = vrot.lane.b32.xlu0 %v1295, 56
      %v2351 = vpop.permute.xlu0 %2350
      %2416 = vrot.lane.b32.xlu0 %v1456, 64
      %v2417 = vpop.permute.xlu0 %2416
      %2418 = vrot.lane.b32.xlu0 %v1457, 64
      %v2419 = vpop.permute.xlu0 %2418
      %2420 = vrot.lane.b32.xlu0 %v1458, 64
      %v2421 = vpop.permute.xlu0 %2420
      %2422 = vrot.lane.b32.xlu0 %v1459, 64
      %v2423 = vpop.permute.xlu0 %2422
      %2424 = vrot.lane.b32.xlu0 %v1460, 64
      %v2425 = vpop.permute.xlu0 %2424
      %2426 = vrot.lane.b32.xlu0 %v1461, 64
      %v2427 = vpop.permute.xlu0 %2426
      %2428 = vrot.lane.b32.xlu0 %v1462, 64
      %v2429 = vpop.permute.xlu0 %2428
      %2430 = vrot.lane.b32.xlu0 %v1463, 64
      %v2431 = vpop.permute.xlu0 %2430
      %2432 = vrot.lane.b32.xlu0 %v1464, 64
      %v2433 = vpop.permute.xlu0 %2432
      %2434 = vrot.lane.b32.xlu0 %v1465, 64
      %v2435 = vpop.permute.xlu0 %2434
      %2436 = vrot.lane.b32.xlu0 %v1466, 64
      %v2437 = vpop.permute.xlu0 %2436
      %2438 = vrot.lane.b32.xlu0 %v1467, 64
      %v2439 = vpop.permute.xlu0 %2438
      %2440 = vrot.lane.b32.xlu0 %v1468, 64
      %v2441 = vpop.permute.xlu0 %2440
      %2442 = vrot.lane.b32.xlu0 %v1469, 64
      %v2443 = vpop.permute.xlu0 %2442
      %2444 = vrot.lane.b32.xlu0 %v1470, 64
      %v2445 = vpop.permute.xlu0 %2444
      %2446 = vrot.lane.b32.xlu0 %v1471, 64
      %v2447 = vpop.permute.xlu0 %2446
      %2448 = vrot.lane.b32.xlu0 %v1472, 64
      %v2449 = vpop.permute.xlu0 %2448
      %2450 = vrot.lane.b32.xlu0 %v1473, 64
      %v2451 = vpop.permute.xlu0 %2450
      %2452 = vrot.lane.b32.xlu0 %v1474, 64
      %v2453 = vpop.permute.xlu0 %2452
      %2454 = vrot.lane.b32.xlu0 %v1475, 64
      %v2455 = vpop.permute.xlu0 %2454
      %2456 = vrot.lane.b32.xlu0 %v1476, 64
      %v2457 = vpop.permute.xlu0 %2456
      %2458 = vrot.lane.b32.xlu0 %v1477, 64
      %v2459 = vpop.permute.xlu0 %2458
      %2460 = vrot.lane.b32.xlu0 %v1478, 64
      %v2461 = vpop.permute.xlu0 %2460
      %2462 = vrot.lane.b32.xlu0 %v1479, 64
      %v2463 = vpop.permute.xlu0 %2462
      %2464 = vrot.lane.b32.xlu0 %v1480, 64
      %v2465 = vpop.permute.xlu0 %2464
      %2466 = vrot.lane.b32.xlu0 %v1481, 64
      %v2467 = vpop.permute.xlu0 %2466
      %2468 = vrot.lane.b32.xlu0 %v1482, 64
      %v2469 = vpop.permute.xlu0 %2468
      %2470 = vrot.lane.b32.xlu0 %v1483, 64
      %v2471 = vpop.permute.xlu0 %2470
      %2472 = vrot.lane.b32.xlu0 %v1484, 64
      %v2473 = vpop.permute.xlu0 %2472
      %2474 = vrot.lane.b32.xlu0 %v1485, 64
      %v2475 = vpop.permute.xlu0 %2474
      %2476 = vrot.lane.b32.xlu0 %v1486, 64
      %v2477 = vpop.permute.xlu0 %2476
      %2478 = vrot.lane.b32.xlu0 %v1487, 64
      %v2479 = vpop.permute.xlu0 %2478
      %v2512 = vsel %vm767, %v908, %v1521
      %v2513 = vsel %vm767, %v909, %v1523
      %v2514 = vsel %vm767, %v910, %v1525
      %v2515 = vsel %vm767, %v911, %v1527
      %v2516 = vsel %vm767, %v912, %v1529
      %v2517 = vsel %vm767, %v913, %v1531
      %v2518 = vsel %vm767, %v914, %v1533
      %v2519 = vsel %vm767, %v915, %v1535
      %v2520 = vsel %vm767, %v916, %v1537
      %v2521 = vsel %vm767, %v917, %v1539
      %v2522 = vsel %vm767, %v918, %v1541
      %v2523 = vsel %vm767, %v919, %v1543
      %v2524 = vsel %vm767, %v920, %v1545
      %v2525 = vsel %vm767, %v921, %v1547
      %v2526 = vsel %vm767, %v922, %v1549
      %v2527 = vsel %vm767, %v923, %v1551
      %v2528 = vsel %vm767, %v924, %v1553
      %v2529 = vsel %vm767, %v925, %v1555
      %v2530 = vsel %vm767, %v926, %v1557
      %v2531 = vsel %vm767, %v927, %v1559
      %v2532 = vsel %vm767, %v928, %v1561
      %v2533 = vsel %vm767, %v929, %v1563
      %v2534 = vsel %vm767, %v930, %v1565
      %v2535 = vsel %vm767, %v931, %v1567
      %v2536 = vsel %vm767, %v932, %v1569
      %v2537 = vsel %vm767, %v933, %v1571
      %v2538 = vsel %vm767, %v934, %v1573
      %v2539 = vsel %vm767, %v935, %v1575
      %v2540 = vsel %vm767, %v936, %v1577
      %v2541 = vsel %vm767, %v937, %v1579
      %v2542 = vsel %vm767, %v938, %v1581
      %v2543 = vsel %vm767, %v939, %v1583
      %vm2544 = vcmask 130048
      %v2545 = vsel %vm2544, %v2512, %v1649
      %v2546 = vsel %vm2544, %v2513, %v1651
      %v2547 = vsel %vm2544, %v2514, %v1653
      %v2548 = vsel %vm2544, %v2515, %v1655
      %v2549 = vsel %vm2544, %v2516, %v1657
      %v2550 = vsel %vm2544, %v2517, %v1659
      %v2551 = vsel %vm2544, %v2518, %v1661
      %v2552 = vsel %vm2544, %v2519, %v1663
      %v2553 = vsel %vm2544, %v2520, %v1665
      %v2554 = vsel %vm2544, %v2521, %v1667
      %v2555 = vsel %vm2544, %v2522, %v1669
      %v2556 = vsel %vm2544, %v2523, %v1671
      %v2557 = vsel %vm2544, %v2524, %v1673
      %v2558 = vsel %vm2544, %v2525, %v1675
      %v2559 = vsel %vm2544, %v2526, %v1677
      %v2560 = vsel %vm2544, %v2527, %v1679
      %v2561 = vsel %vm2544, %v2528, %v1681
      %v2562 = vsel %vm2544, %v2529, %v1683
      %v2563 = vsel %vm2544, %v2530, %v1685
      %v2564 = vsel %vm2544, %v2531, %v1687
      %v2565 = vsel %vm2544, %v2532, %v1689
      %v2566 = vsel %vm2544, %v2533, %v1691
      %v2567 = vsel %vm2544, %v2534, %v1693
      %v2568 = vsel %vm2544, %v2535, %v1695
      %v2569 = vsel %vm2544, %v2536, %v1697
      %v2570 = vsel %vm2544, %v2537, %v1699
      %v2571 = vsel %vm2544, %v2538, %v1701
      %v2572 = vsel %vm2544, %v2539, %v1703
      %v2573 = vsel %vm2544, %v2540, %v1705
      %v2574 = vsel %vm2544, %v2541, %v1707
      %v2575 = vsel %vm2544, %v2542, %v1709
      %v2576 = vsel %vm2544, %v2543, %v1711
      %vm2577 = vcmask 195584
      %v2578 = vsel %vm2577, %v2545, %v1777
      %v2579 = vsel %vm2577, %v2546, %v1779
      %v2580 = vsel %vm2577, %v2547, %v1781
      %v2581 = vsel %vm2577, %v2548, %v1783
      %v2582 = vsel %vm2577, %v2549, %v1785
      %v2583 = vsel %vm2577, %v2550, %v1787
      %v2584 = vsel %vm2577, %v2551, %v1789
      %v2585 = vsel %vm2577, %v2552, %v1791
      %v2586 = vsel %vm2577, %v2553, %v1793
      %v2587 = vsel %vm2577, %v2554, %v1795
      %v2588 = vsel %vm2577, %v2555, %v1797
      %v2589 = vsel %vm2577, %v2556, %v1799
      %v2590 = vsel %vm2577, %v2557, %v1801
      %v2591 = vsel %vm2577, %v2558, %v1803
      %v2592 = vsel %vm2577, %v2559, %v1805
      %v2593 = vsel %vm2577, %v2560, %v1807
      %v2594 = vsel %vm2577, %v2561, %v1809
      %v2595 = vsel %vm2577, %v2562, %v1811
      %v2596 = vsel %vm2577, %v2563, %v1813
      %v2597 = vsel %vm2577, %v2564, %v1815
      %v2598 = vsel %vm2577, %v2565, %v1817
      %v2599 = vsel %vm2577, %v2566, %v1819
      %v2600 = vsel %vm2577, %v2567, %v1821
      %v2601 = vsel %vm2577, %v2568, %v1823
      %v2602 = vsel %vm2577, %v2569, %v1825
      %v2603 = vsel %vm2577, %v2570, %v1827
      %v2604 = vsel %vm2577, %v2571, %v1829
      %v2605 = vsel %vm2577, %v2572, %v1831
      %v2606 = vsel %vm2577, %v2573, %v1833
      %v2607 = vsel %vm2577, %v2574, %v1835
      %v2608 = vsel %vm2577, %v2575, %v1837
      %v2609 = vsel %vm2577, %v2576, %v1839
      %vm2610 = vcmask 261120
      %v2611 = vsel %vm2610, %v2578, %v1905
      %v2612 = vsel %vm2610, %v2579, %v1907
      %v2613 = vsel %vm2610, %v2580, %v1909
      %v2614 = vsel %vm2610, %v2581, %v1911
      %v2615 = vsel %vm2610, %v2582, %v1913
      %v2616 = vsel %vm2610, %v2583, %v1915
      %v2617 = vsel %vm2610, %v2584, %v1917
      %v2618 = vsel %vm2610, %v2585, %v1919
      %v2619 = vsel %vm2610, %v2586, %v1921
      %v2620 = vsel %vm2610, %v2587, %v1923
      %v2621 = vsel %vm2610, %v2588, %v1925
      %v2622 = vsel %vm2610, %v2589, %v1927
      %v2623 = vsel %vm2610, %v2590, %v1929
      %v2624 = vsel %vm2610, %v2591, %v1931
      %v2625 = vsel %vm2610, %v2592, %v1933
      %v2626 = vsel %vm2610, %v2593, %v1935
      %v2627 = vsel %vm2610, %v2594, %v1937
      %v2628 = vsel %vm2610, %v2595, %v1939
      %v2629 = vsel %vm2610, %v2596, %v1941
      %v2630 = vsel %vm2610, %v2597, %v1943
      %v2631 = vsel %vm2610, %v2598, %v1945
      %v2632 = vsel %vm2610, %v2599, %v1947
      %v2633 = vsel %vm2610, %v2600, %v1949
      %v2634 = vsel %vm2610, %v2601, %v1951
      %v2635 = vsel %vm2610, %v2602, %v1953
      %v2636 = vsel %vm2610, %v2603, %v1955
      %v2637 = vsel %vm2610, %v2604, %v1957
      %v2638 = vsel %vm2610, %v2605, %v1959
      %v2639 = vsel %vm2610, %v2606, %v1961
      %v2640 = vsel %vm2610, %v2607, %v1963
      %v2641 = vsel %vm2610, %v2608, %v1965
      %v2642 = vsel %vm2610, %v2609, %v1967
      %vm2643 = vcmask 326656
      %v2644 = vsel %vm2643, %v2611, %v2033
      %v2645 = vsel %vm2643, %v2612, %v2035
      %v2646 = vsel %vm2643, %v2613, %v2037
      %v2647 = vsel %vm2643, %v2614, %v2039
      %v2648 = vsel %vm2643, %v2615, %v2041
      %v2649 = vsel %vm2643, %v2616, %v2043
      %v2650 = vsel %vm2643, %v2617, %v2045
      %v2651 = vsel %vm2643, %v2618, %v2047
      %v2652 = vsel %vm2643, %v2619, %v2049
      %v2653 = vsel %vm2643, %v2620, %v2051
      %v2654 = vsel %vm2643, %v2621, %v2053
      %v2655 = vsel %vm2643, %v2622, %v2055
      %v2656 = vsel %vm2643, %v2623, %v2057
      %v2657 = vsel %vm2643, %v2624, %v2059
      %v2658 = vsel %vm2643, %v2625, %v2061
      %v2659 = vsel %vm2643, %v2626, %v2063
      %v2660 = vsel %vm2643, %v2627, %v2065
      %v2661 = vsel %vm2643, %v2628, %v2067
      %v2662 = vsel %vm2643, %v2629, %v2069
      %v2663 = vsel %vm2643, %v2630, %v2071
      %v2664 = vsel %vm2643, %v2631, %v2073
      %v2665 = vsel %vm2643, %v2632, %v2075
      %v2666 = vsel %vm2643, %v2633, %v2077
      %v2667 = vsel %vm2643, %v2634, %v2079
      %v2668 = vsel %vm2643, %v2635, %v2081
      %v2669 = vsel %vm2643, %v2636, %v2083
      %v2670 = vsel %vm2643, %v2637, %v2085
      %v2671 = vsel %vm2643, %v2638, %v2087
      %v2672 = vsel %vm2643, %v2639, %v2089
      %v2673 = vsel %vm2643, %v2640, %v2091
      %v2674 = vsel %vm2643, %v2641, %v2093
      %v2675 = vsel %vm2643, %v2642, %v2095
      %vm2676 = vcmask 392192
      %v2677 = vsel %vm2676, %v2644, %v2161
      %v2678 = vsel %vm2676, %v2645, %v2163
      %v2679 = vsel %vm2676, %v2646, %v2165
      %v2680 = vsel %vm2676, %v2647, %v2167
      %v2681 = vsel %vm2676, %v2648, %v2169
      %v2682 = vsel %vm2676, %v2649, %v2171
      %v2683 = vsel %vm2676, %v2650, %v2173
      %v2684 = vsel %vm2676, %v2651, %v2175
      %v2685 = vsel %vm2676, %v2652, %v2177
      %v2686 = vsel %vm2676, %v2653, %v2179
      %v2687 = vsel %vm2676, %v2654, %v2181
      %v2688 = vsel %vm2676, %v2655, %v2183
      %v2689 = vsel %vm2676, %v2656, %v2185
      %v2690 = vsel %vm2676, %v2657, %v2187
      %v2691 = vsel %vm2676, %v2658, %v2189
      %v2692 = vsel %vm2676, %v2659, %v2191
      %v2693 = vsel %vm2676, %v2660, %v2193
      %v2694 = vsel %vm2676, %v2661, %v2195
      %v2695 = vsel %vm2676, %v2662, %v2197
      %v2696 = vsel %vm2676, %v2663, %v2199
      %v2697 = vsel %vm2676, %v2664, %v2201
      %v2698 = vsel %vm2676, %v2665, %v2203
      %v2699 = vsel %vm2676, %v2666, %v2205
      %v2700 = vsel %vm2676, %v2667, %v2207
      %v2701 = vsel %vm2676, %v2668, %v2209
      %v2702 = vsel %vm2676, %v2669, %v2211
      %v2703 = vsel %vm2676, %v2670, %v2213
      %v2704 = vsel %vm2676, %v2671, %v2215
      %v2705 = vsel %vm2676, %v2672, %v2217
      %v2706 = vsel %vm2676, %v2673, %v2219
      %v2707 = vsel %vm2676, %v2674, %v2221
      %v2708 = vsel %vm2676, %v2675, %v2223
      %vm2709 = vcmask 457728
      %v2710 = vsel %vm2709, %v2677, %v2289
      %v2711 = vsel %vm2709, %v2678, %v2291
      %v2712 = vsel %vm2709, %v2679, %v2293
      %v2713 = vsel %vm2709, %v2680, %v2295
      %v2714 = vsel %vm2709, %v2681, %v2297
      %v2715 = vsel %vm2709, %v2682, %v2299
      %v2716 = vsel %vm2709, %v2683, %v2301
      %v2717 = vsel %vm2709, %v2684, %v2303
      %v2718 = vsel %vm2709, %v2685, %v2305
      %v2719 = vsel %vm2709, %v2686, %v2307
      %v2720 = vsel %vm2709, %v2687, %v2309
      %v2721 = vsel %vm2709, %v2688, %v2311
      %v2722 = vsel %vm2709, %v2689, %v2313
      %v2723 = vsel %vm2709, %v2690, %v2315
      %v2724 = vsel %vm2709, %v2691, %v2317
      %v2725 = vsel %vm2709, %v2692, %v2319
      %v2726 = vsel %vm2709, %v2693, %v2321
      %v2727 = vsel %vm2709, %v2694, %v2323
      %v2728 = vsel %vm2709, %v2695, %v2325
      %v2729 = vsel %vm2709, %v2696, %v2327
      %v2730 = vsel %vm2709, %v2697, %v2329
      %v2731 = vsel %vm2709, %v2698, %v2331
      %v2732 = vsel %vm2709, %v2699, %v2333
      %v2733 = vsel %vm2709, %v2700, %v2335
      %v2734 = vsel %vm2709, %v2701, %v2337
      %v2735 = vsel %vm2709, %v2702, %v2339
      %v2736 = vsel %vm2709, %v2703, %v2341
      %v2737 = vsel %vm2709, %v2704, %v2343
      %v2738 = vsel %vm2709, %v2705, %v2345
      %v2739 = vsel %vm2709, %v2706, %v2347
      %v2740 = vsel %vm2709, %v2707, %v2349
      %v2741 = vsel %vm2709, %v2708, %v2351
      %vm2742 = vcmask 523264
      %v2743 = vsel %vm2742, %v2710, %v2417
      %v2744 = vsel %vm2742, %v2711, %v2419
      %v2745 = vsel %vm2742, %v2712, %v2421
      %v2746 = vsel %vm2742, %v2713, %v2423
      %v2747 = vsel %vm2742, %v2714, %v2425
      %v2748 = vsel %vm2742, %v2715, %v2427
      %v2749 = vsel %vm2742, %v2716, %v2429
      %v2750 = vsel %vm2742, %v2717, %v2431
      %v2751 = vsel %vm2742, %v2718, %v2433
      %v2752 = vsel %vm2742, %v2719, %v2435
      %v2753 = vsel %vm2742, %v2720, %v2437
      %v2754 = vsel %vm2742, %v2721, %v2439
      %v2755 = vsel %vm2742, %v2722, %v2441
      %v2756 = vsel %vm2742, %v2723, %v2443
      %v2757 = vsel %vm2742, %v2724, %v2445
      %v2758 = vsel %vm2742, %v2725, %v2447
      %v2759 = vsel %vm2742, %v2726, %v2449
      %v2760 = vsel %vm2742, %v2727, %v2451
      %v2761 = vsel %vm2742, %v2728, %v2453
      %v2762 = vsel %vm2742, %v2729, %v2455
      %v2763 = vsel %vm2742, %v2730, %v2457
      %v2764 = vsel %vm2742, %v2731, %v2459
      %v2765 = vsel %vm2742, %v2732, %v2461
      %v2766 = vsel %vm2742, %v2733, %v2463
      %v2767 = vsel %vm2742, %v2734, %v2465
      %v2768 = vsel %vm2742, %v2735, %v2467
      %v2769 = vsel %vm2742, %v2736, %v2469
      %v2770 = vsel %vm2742, %v2737, %v2471
      %v2771 = vsel %vm2742, %v2738, %v2473
      %v2772 = vsel %vm2742, %v2739, %v2475
      %v2773 = vsel %vm2742, %v2740, %v2477
      %v2774 = vsel %vm2742, %v2741, %v2479
      %v2775 = vpack.c.bf16 %v2744, %v2743
      %v2776 = vpack.c.bf16 %v2746, %v2745
      %v2777 = vpack.c.bf16 %v2748, %v2747
      %v2778 = vpack.c.bf16 %v2750, %v2749
      %v2779 = vpack.c.bf16 %v2752, %v2751
      %v2780 = vpack.c.bf16 %v2754, %v2753
      %v2781 = vpack.c.bf16 %v2756, %v2755
      %v2782 = vpack.c.bf16 %v2758, %v2757
      %v2783 = vpack.c.bf16 %v2760, %v2759
      %v2784 = vpack.c.bf16 %v2762, %v2761
      %v2785 = vpack.c.bf16 %v2764, %v2763
      %v2786 = vpack.c.bf16 %v2766, %v2765
      %v2787 = vpack.c.bf16 %v2768, %v2767
      %v2788 = vpack.c.bf16 %v2770, %v2769
      %v2789 = vpack.c.bf16 %v2772, %v2771
      %v2790 = vpack.c.bf16 %v2774, %v2773
      %v2791 = vld [vmem:[%s2] sm:$0xf]
      %v2792 = vld [vmem:[%s2 + $0x4] sm:$0xf]
      %v2793 = vld [vmem:[%s2 + $0x8] sm:$0xf]
      %v2794 = vld [vmem:[%s2 + $0xc] sm:$0xf]
      %v2795 = vld [vmem:[%s2 + $0x10] sm:$0xf]
      %v2796 = vld [vmem:[%s2 + $0x14] sm:$0xf]
      %v2797 = vld [vmem:[%s2 + $0x18] sm:$0xf]
      %v2798 = vld [vmem:[%s2 + $0x1c] sm:$0xf]
      %v2799 = vld [vmem:[%s2 + $0x20] sm:$0xf]
      %v2800 = vld [vmem:[%s6] sm:$0x1]
      %v2802 = vlaneseq
      %v2803 = vshrl.u32 %v2802, 7
      %v2804 = vsub.s32 0, %v2803
      %v2805 = vrot.slane %v2800, %v2804
      %v2816 = vunpack.c.l.b16 %v2791
      %v2817 = vunpack.c.l.b16 %v2792
      %v2818 = vunpack.c.l.b16 %v2793
      %v2819 = vunpack.c.l.b16 %v2794
      %v2820 = vunpack.c.l.b16 %v2795
      %v2821 = vunpack.c.l.b16 %v2796
      %v2822 = vunpack.c.l.b16 %v2797
      %v2823 = vunpack.c.l.b16 %v2798
      %v2824 = vunpack.c.l.b16 %v2799
      %v2825 = vpack.c.b16 %v2817, %v2816
      %v2826 = vpack.c.b16 %v2819, %v2818
      %v2827 = vpack.c.b16 %v2821, %v2820
      %v2828 = vpack.c.b16 %v2823, %v2822
      %v2829 = vpack.c.b16 %v2824, %v2824
      %vm2834 = vcmask 588800
      %v2836 = vsel %vm2834, %v2775, 0
      %v2839 = vsel %vm2834, %v2776, 0
      %v2842 = vsel %vm2834, %v2777, 0
      %v2845 = vsel %vm2834, %v2778, 0
      %v2848 = vsel %vm2834, %v2779, 0
      %v2851 = vsel %vm2834, %v2780, 0
      %v2854 = vsel %vm2834, %v2781, 0
      %v2857 = vsel %vm2834, %v2782, 0
      %v2860 = vsel %vm2834, %v2783, 0
      %v2863 = vsel %vm2834, %v2784, 0
      %v2866 = vsel %vm2834, %v2785, 0
      %v2869 = vsel %vm2834, %v2786, 0
      %v2872 = vsel %vm2834, %v2787, 0
      %v2875 = vsel %vm2834, %v2788, 0
      %v2878 = vsel %vm2834, %v2789, 0
      %v2881 = vsel %vm2834, %v2790, 0
      %vm2883 = vcmask 1043456
      %v2885 = vsel %vm2883, %v2829, 0
      %2887 = vmatprep.subr.bf16.mxu0 0
      %2888 = vmatpush1.bf16.msra.mxu0 %v2825
      %2889 = vmatprep.subr.bf16.mxu0 0
      %2890 = vmatpush1.bf16.msra.mxu0 %v2826
      %2891 = vmatprep.subr.bf16.mxu0 0
      %2892 = vmatpush1.bf16.msra.mxu0 %v2827
      %2893 = vmatprep.subr.bf16.mxu0 0
      %2894 = vmatpush1.bf16.msra.mxu0 %v2828
      %2895 = vmatprep.subr.bf16.mxu0 0
      %2896 = vmatpush1.bf16.msra.mxu0 %v2885
      %2897 = vmatprep.subr.bf16.mxu0 0
      %2898 = vmatpush1.bf16.msra.mxu0 0
      %2899 = vmatprep.subr.bf16.mxu0 0
      %2900 = vmatpush1.bf16.msra.mxu0 0
      %2901 = vmatprep.subr.bf16.mxu0 0
      %2902 = vmatpush1.bf16.msra.mxu0 0
      %2903 = vmatprep.subr.bf16.mxu0 0
      %2904 = vmatpush1.bf16.msra.mxu0 0
      %2905 = vmatprep.subr.bf16.mxu0 0
      %2906 = vmatpush1.bf16.msra.mxu0 0
      %2907 = vmatprep.subr.bf16.mxu0 0
      %2908 = vmatpush1.bf16.msra.mxu0 0
      %2909 = vmatprep.subr.bf16.mxu0 0
      %2910 = vmatpush1.bf16.msra.mxu0 0
      %2911 = vmatprep.subr.bf16.mxu0 0
      %2912 = vmatpush1.bf16.msra.mxu0 0
      %2913 = vmatprep.subr.bf16.mxu0 0
      %2914 = vmatpush1.bf16.msra.mxu0 0
      %2915 = vmatprep.subr.bf16.mxu0 0
      %2916 = vmatpush1.bf16.msra.mxu0 0
      %2917 = vmatprep.subr.bf16.mxu0 0
      %2918 = vmatpush1.bf16.msra.mxu0 0
      %2919 = vmatprep.mubr.bf16.mxu0 0
      %2920 = vmatmul.mubr.bf16.gmra.mrb[0].mxu0 %v2836
      %v2921 = vpop.f32.mrb[0].mxu0
      %v2922 = vadd.f32 %v2805, %v2921
      %v2923 = vpop.f32.mrb[0].mxu0
      %v2924 = vpop.f32.mrb[0].mxu0
      %v2925 = vadd.f32 %v2805, %v2924
      %v2926 = vpop.f32.mrb[0].mxu0
      %2927 = vmatprep.mubr.bf16.mxu0 0
      %2928 = vmatmul.mubr.bf16.gmra.mrb[0].mxu0 %v2839
      %v2929 = vpop.f32.mrb[0].mxu0
      %v2930 = vadd.f32 %v2805, %v2929
      %v2931 = vpop.f32.mrb[0].mxu0
      %v2932 = vpop.f32.mrb[0].mxu0
      %v2933 = vadd.f32 %v2805, %v2932
      %v2934 = vpop.f32.mrb[0].mxu0
      %2935 = vmatprep.mubr.bf16.mxu0 0
      %2936 = vmatmul.mubr.bf16.gmra.mrb[0].mxu0 %v2842
      %v2937 = vpop.f32.mrb[0].mxu0
      %v2938 = vadd.f32 %v2805, %v2937
      %v2939 = vpop.f32.mrb[0].mxu0
      %v2940 = vpop.f32.mrb[0].mxu0
      %v2941 = vadd.f32 %v2805, %v2940
      %v2942 = vpop.f32.mrb[0].mxu0
      %2943 = vmatprep.mubr.bf16.mxu0 0
      %2944 = vmatmul.mubr.bf16.gmra.mrb[0].mxu0 %v2845
      %v2945 = vpop.f32.mrb[0].mxu0
      %v2946 = vadd.f32 %v2805, %v2945
      %v2947 = vpop.f32.mrb[0].mxu0
      %v2948 = vpop.f32.mrb[0].mxu0
      %v2949 = vadd.f32 %v2805, %v2948
      %v2950 = vpop.f32.mrb[0].mxu0
      %2951 = vmatprep.mubr.bf16.mxu0 0
      %2952 = vmatmul.mubr.bf16.gmra.mrb[0].mxu0 %v2848
      %v2953 = vpop.f32.mrb[0].mxu0
      %v2954 = vadd.f32 %v2805, %v2953
      %v2955 = vpop.f32.mrb[0].mxu0
      %v2956 = vpop.f32.mrb[0].mxu0
      %v2957 = vadd.f32 %v2805, %v2956
      %v2958 = vpop.f32.mrb[0].mxu0
      %2959 = vmatprep.mubr.bf16.mxu0 0
      %2960 = vmatmul.mubr.bf16.gmra.mrb[0].mxu0 %v2851
      %v2961 = vpop.f32.mrb[0].mxu0
      %v2962 = vadd.f32 %v2805, %v2961
      %v2963 = vpop.f32.mrb[0].mxu0
      %v2964 = vpop.f32.mrb[0].mxu0
      %v2965 = vadd.f32 %v2805, %v2964
      %v2966 = vpop.f32.mrb[0].mxu0
      %2967 = vmatprep.mubr.bf16.mxu0 0
      %2968 = vmatmul.mubr.bf16.gmra.mrb[0].mxu0 %v2854
      %v2969 = vpop.f32.mrb[0].mxu0
      %v2970 = vadd.f32 %v2805, %v2969
      %v2971 = vpop.f32.mrb[0].mxu0
      %v2972 = vpop.f32.mrb[0].mxu0
      %v2973 = vadd.f32 %v2805, %v2972
      %v2974 = vpop.f32.mrb[0].mxu0
      %2975 = vmatprep.mubr.bf16.mxu0 0
      %2976 = vmatmul.mubr.bf16.gmra.mrb[0].mxu0 %v2857
      %v2977 = vpop.f32.mrb[0].mxu0
      %v2978 = vadd.f32 %v2805, %v2977
      %v2979 = vpop.f32.mrb[0].mxu0
      %v2980 = vpop.f32.mrb[0].mxu0
      %v2981 = vadd.f32 %v2805, %v2980
      %v2982 = vpop.f32.mrb[0].mxu0
      %2983 = vmatprep.mubr.bf16.mxu0 0
      %2984 = vmatmul.mubr.bf16.gmra.mrb[0].mxu0 %v2860
      %v2985 = vpop.f32.mrb[0].mxu0
      %v2986 = vadd.f32 %v2805, %v2985
      %v2987 = vpop.f32.mrb[0].mxu0
      %v2988 = vpop.f32.mrb[0].mxu0
      %v2989 = vadd.f32 %v2805, %v2988
      %v2990 = vpop.f32.mrb[0].mxu0
      %2991 = vmatprep.mubr.bf16.mxu0 0
      %2992 = vmatmul.mubr.bf16.gmra.mrb[0].mxu0 %v2863
      %v2993 = vpop.f32.mrb[0].mxu0
      %v2994 = vadd.f32 %v2805, %v2993
      %v2995 = vpop.f32.mrb[0].mxu0
      %v2996 = vpop.f32.mrb[0].mxu0
      %v2997 = vadd.f32 %v2805, %v2996
      %v2998 = vpop.f32.mrb[0].mxu0
      %2999 = vmatprep.mubr.bf16.mxu0 0
      %3000 = vmatmul.mubr.bf16.gmra.mrb[0].mxu0 %v2866
      %v3001 = vpop.f32.mrb[0].mxu0
      %v3002 = vadd.f32 %v2805, %v3001
      %v3003 = vpop.f32.mrb[0].mxu0
      %v3004 = vpop.f32.mrb[0].mxu0
      %v3005 = vadd.f32 %v2805, %v3004
      %v3006 = vpop.f32.mrb[0].mxu0
      %3007 = vmatprep.mubr.bf16.mxu0 0
      %3008 = vmatmul.mubr.bf16.gmra.mrb[0].mxu0 %v2869
      %v3009 = vpop.f32.mrb[0].mxu0
      %v3010 = vadd.f32 %v2805, %v3009
      %v3011 = vpop.f32.mrb[0].mxu0
      %v3012 = vpop.f32.mrb[0].mxu0
      %v3013 = vadd.f32 %v2805, %v3012
      %v3014 = vpop.f32.mrb[0].mxu0
      %3015 = vmatprep.mubr.bf16.mxu0 0
      %3016 = vmatmul.mubr.bf16.gmra.mrb[0].mxu0 %v2872
      %v3017 = vpop.f32.mrb[0].mxu0
      %v3018 = vadd.f32 %v2805, %v3017
      %v3019 = vpop.f32.mrb[0].mxu0
      %v3020 = vpop.f32.mrb[0].mxu0
      %v3021 = vadd.f32 %v2805, %v3020
      %v3022 = vpop.f32.mrb[0].mxu0
      %3023 = vmatprep.mubr.bf16.mxu0 0
      %3024 = vmatmul.mubr.bf16.gmra.mrb[0].mxu0 %v2875
      %v3025 = vpop.f32.mrb[0].mxu0
      %v3026 = vadd.f32 %v2805, %v3025
      %v3027 = vpop.f32.mrb[0].mxu0
      %v3028 = vpop.f32.mrb[0].mxu0
      %v3029 = vadd.f32 %v2805, %v3028
      %v3030 = vpop.f32.mrb[0].mxu0
      %3031 = vmatprep.mubr.bf16.mxu0 0
      %3032 = vmatmul.mubr.bf16.gmra.mrb[0].mxu0 %v2878
      %v3033 = vpop.f32.mrb[0].mxu0
      %v3034 = vadd.f32 %v2805, %v3033
      %v3035 = vpop.f32.mrb[0].mxu0
      %v3036 = vpop.f32.mrb[0].mxu0
      %v3037 = vadd.f32 %v2805, %v3036
      %v3038 = vpop.f32.mrb[0].mxu0
      %3039 = vmatprep.mubr.bf16.mxu0 0
      %3040 = vmatmul.mubr.bf16.gmra.mrb[0].mxu0 %v2881
      %v3041 = vpop.f32.mrb[0].mxu0
      %v3042 = vadd.f32 %v2805, %v3041
      %v3043 = vpop.f32.mrb[0].mxu0
      %v3044 = vpop.f32.mrb[0].mxu0
      %v3045 = vadd.f32 %v2805, %v3044
      %v3046 = vpop.f32.mrb[0].mxu0
      %3047 = vdwg.mxu0
      %vm3048 = vcmp.ge.f32.partialorder %v2922, 0.0
      %vm3049 = vcmp.ge.f32.partialorder %v2925, 0.0
      %vm3050 = vcmp.ge.f32.partialorder %v2930, 0.0
      %vm3051 = vcmp.ge.f32.partialorder %v2933, 0.0
      %vm3052 = vcmp.ge.f32.partialorder %v2938, 0.0
      %vm3053 = vcmp.ge.f32.partialorder %v2941, 0.0
      %vm3054 = vcmp.ge.f32.partialorder %v2946, 0.0
      %vm3055 = vcmp.ge.f32.partialorder %v2949, 0.0
      %vm3056 = vcmp.ge.f32.partialorder %v2954, 0.0
      %vm3057 = vcmp.ge.f32.partialorder %v2957, 0.0
      %vm3058 = vcmp.ge.f32.partialorder %v2962, 0.0
      %vm3059 = vcmp.ge.f32.partialorder %v2965, 0.0
      %vm3060 = vcmp.ge.f32.partialorder %v2970, 0.0
      %vm3061 = vcmp.ge.f32.partialorder %v2973, 0.0
      %vm3062 = vcmp.ge.f32.partialorder %v2978, 0.0
      %vm3063 = vcmp.ge.f32.partialorder %v2981, 0.0
      %vm3064 = vcmp.ge.f32.partialorder %v2986, 0.0
      %vm3065 = vcmp.ge.f32.partialorder %v2989, 0.0
      %vm3066 = vcmp.ge.f32.partialorder %v2994, 0.0
      %vm3067 = vcmp.ge.f32.partialorder %v2997, 0.0
      %vm3068 = vcmp.ge.f32.partialorder %v3002, 0.0
      %vm3069 = vcmp.ge.f32.partialorder %v3005, 0.0
      %vm3070 = vcmp.ge.f32.partialorder %v3010, 0.0
      %vm3071 = vcmp.ge.f32.partialorder %v3013, 0.0
      %vm3072 = vcmp.ge.f32.partialorder %v3018, 0.0
      %vm3073 = vcmp.ge.f32.partialorder %v3021, 0.0
      %vm3074 = vcmp.ge.f32.partialorder %v3026, 0.0
      %vm3075 = vcmp.ge.f32.partialorder %v3029, 0.0
      %vm3076 = vcmp.ge.f32.partialorder %v3034, 0.0
      %vm3077 = vcmp.ge.f32.partialorder %v3037, 0.0
      %vm3078 = vcmp.ge.f32.partialorder %v3042, 0.0
      %vm3079 = vcmp.ge.f32.partialorder %v3045, 0.0
      %v3080 = vmul.f32 %v702, %v2922
      %v3081 = vmul.f32 %v702, %v2925
      %v3082 = vmul.f32 %v702, %v2930
      %v3083 = vmul.f32 %v702, %v2933
      %v3084 = vmul.f32 %v702, %v2938
      %v3085 = vmul.f32 %v702, %v2941
      %v3086 = vmul.f32 %v702, %v2946
      %v3087 = vmul.f32 %v702, %v2949
      %v3088 = vmul.f32 %v702, %v2954
      %v3089 = vmul.f32 %v702, %v2957
      %v3090 = vmul.f32 %v702, %v2962
      %v3091 = vmul.f32 %v702, %v2965
      %v3092 = vmul.f32 %v702, %v2970
      %v3093 = vmul.f32 %v702, %v2973
      %v3094 = vmul.f32 %v702, %v2978
      %v3095 = vmul.f32 %v702, %v2981
      %v3096 = vmul.f32 %v702, %v2986
      %v3097 = vmul.f32 %v702, %v2989
      %v3098 = vmul.f32 %v702, %v2994
      %v3099 = vmul.f32 %v702, %v2997
      %v3100 = vmul.f32 %v702, %v3002
      %v3101 = vmul.f32 %v702, %v3005
      %v3102 = vmul.f32 %v702, %v3010
      %v3103 = vmul.f32 %v702, %v3013
      %v3104 = vmul.f32 %v702, %v3018
      %v3105 = vmul.f32 %v702, %v3021
      %v3106 = vmul.f32 %v702, %v3026
      %v3107 = vmul.f32 %v702, %v3029
      %v3108 = vmul.f32 %v702, %v3034
      %v3109 = vmul.f32 %v702, %v3037
      %v3110 = vmul.f32 %v702, %v3042
      %v3111 = vmul.f32 %v702, %v3045
      %v3112 = vsel %vm3048, %v2922, %v3080
      %v3113 = vsel %vm3049, %v2925, %v3081
      %v3114 = vsel %vm3050, %v2930, %v3082
      %v3115 = vsel %vm3051, %v2933, %v3083
      %v3116 = vsel %vm3052, %v2938, %v3084
      %v3117 = vsel %vm3053, %v2941, %v3085
      %v3118 = vsel %vm3054, %v2946, %v3086
      %v3119 = vsel %vm3055, %v2949, %v3087
      %v3120 = vsel %vm3056, %v2954, %v3088
      %v3121 = vsel %vm3057, %v2957, %v3089
      %v3122 = vsel %vm3058, %v2962, %v3090
      %v3123 = vsel %vm3059, %v2965, %v3091
      %v3124 = vsel %vm3060, %v2970, %v3092
      %v3125 = vsel %vm3061, %v2973, %v3093
      %v3126 = vsel %vm3062, %v2978, %v3094
      %v3127 = vsel %vm3063, %v2981, %v3095
      %v3128 = vsel %vm3064, %v2986, %v3096
      %v3129 = vsel %vm3065, %v2989, %v3097
      %v3130 = vsel %vm3066, %v2994, %v3098
      %v3131 = vsel %vm3067, %v2997, %v3099
      %v3132 = vsel %vm3068, %v3002, %v3100
      %v3133 = vsel %vm3069, %v3005, %v3101
      %v3134 = vsel %vm3070, %v3010, %v3102
      %v3135 = vsel %vm3071, %v3013, %v3103
      %v3136 = vsel %vm3072, %v3018, %v3104
      %v3137 = vsel %vm3073, %v3021, %v3105
      %v3138 = vsel %vm3074, %v3026, %v3106
      %v3139 = vsel %vm3075, %v3029, %v3107
      %v3140 = vsel %vm3076, %v3034, %v3108
      %v3141 = vsel %vm3077, %v3037, %v3109
      %v3142 = vsel %vm3078, %v3042, %v3110
      %v3143 = vsel %vm3079, %v3045, %v3111
      %v3144 = vpack.c.bf16 %v3113, %v3112
      %v3145 = vpack.c.bf16 %v3115, %v3114
      %v3146 = vpack.c.bf16 %v3117, %v3116
      %v3147 = vpack.c.bf16 %v3119, %v3118
      %v3148 = vpack.c.bf16 %v3121, %v3120
      %v3149 = vpack.c.bf16 %v3123, %v3122
      %v3150 = vpack.c.bf16 %v3125, %v3124
      %v3151 = vpack.c.bf16 %v3127, %v3126
      %v3152 = vpack.c.bf16 %v3129, %v3128
      %v3153 = vpack.c.bf16 %v3131, %v3130
      %v3154 = vpack.c.bf16 %v3133, %v3132
      %v3155 = vpack.c.bf16 %v3135, %v3134
      %v3156 = vpack.c.bf16 %v3137, %v3136
      %v3157 = vpack.c.bf16 %v3139, %v3138
      %v3158 = vpack.c.bf16 %v3141, %v3140
      %v3159 = vpack.c.bf16 %v3143, %v3142
      %v3160 = vld [vmem:[%s3] sm:$0xf]
      %v3161 = vld [vmem:[%s4] sm:$0x3]
      %v3163 = vsel %vm505, %v3161, 0
      %3165 = vmatprep.subr.bf16.mxu0 0
      %3166 = vmatpush1.bf16.msra.mxu0 %v3163
      %3167 = vmatprep.subr.bf16.mxu0 0
      %3168 = vmatpush1.bf16.msra.mxu0 0
      %3169 = vmatprep.subr.bf16.mxu0 0
      %3170 = vmatpush1.bf16.msra.mxu0 0
      %3171 = vmatprep.subr.bf16.mxu0 0
      %3172 = vmatpush1.bf16.msra.mxu0 0
      %3173 = vmatprep.subr.bf16.mxu0 0
      %3174 = vmatpush1.bf16.msra.mxu0 0
      %3175 = vmatprep.subr.bf16.mxu0 0
      %3176 = vmatpush1.bf16.msra.mxu0 0
      %3177 = vmatprep.subr.bf16.mxu0 0
      %3178 = vmatpush1.bf16.msra.mxu0 0
      %3179 = vmatprep.subr.bf16.mxu0 0
      %3180 = vmatpush1.bf16.msra.mxu0 0
      %3181 = vmatprep.subr.bf16.mxu0 0
      %3182 = vmatpush1.bf16.msra.mxu0 0
      %3183 = vmatprep.subr.bf16.mxu0 0
      %3184 = vmatpush1.bf16.msra.mxu0 0
      %3185 = vmatprep.subr.bf16.mxu0 0
      %3186 = vmatpush1.bf16.msra.mxu0 0
      %3187 = vmatprep.subr.bf16.mxu0 0
      %3188 = vmatpush1.bf16.msra.mxu0 0
      %3189 = vmatprep.subr.bf16.mxu0 0
      %3190 = vmatpush1.bf16.msra.mxu0 0
      %3191 = vmatprep.subr.bf16.mxu0 0
      %3192 = vmatpush1.bf16.msra.mxu0 0
      %3193 = vmatprep.subr.bf16.mxu0 0
      %3194 = vmatpush1.bf16.msra.mxu0 0
      %3195 = vmatprep.subr.bf16.mxu0 0
      %3196 = vmatpush1.bf16.msra.mxu0 0
      %3197 = vmatprep.mubr.bf16.mxu0 0
      %3198 = vmatmul.mubr.bf16.gmra.mrb[0].mxu0 %v458
      %v3199 = vpop.f32.mrb[0].mxu0
      %v3200 = vadd.f32 0.0, %v3199
      %v3201 = vpop.f32.mrb[0].mxu0
      %v3202 = vpop.f32.mrb[0].mxu0
      %v3203 = vadd.f32 0.0, %v3202
      %v3204 = vpop.f32.mrb[0].mxu0
      %3205 = vmatprep.mubr.bf16.mxu0 0
      %3206 = vmatmul.mubr.bf16.gmra.mrb[0].mxu0 %v461
      %v3207 = vpop.f32.mrb[0].mxu0
      %v3208 = vadd.f32 0.0, %v3207
      %v3209 = vpop.f32.mrb[0].mxu0
      %v3210 = vpop.f32.mrb[0].mxu0
      %v3211 = vadd.f32 0.0, %v3210
      %v3212 = vpop.f32.mrb[0].mxu0
      %3213 = vmatprep.mubr.bf16.mxu0 0
      %3214 = vmatmul.mubr.bf16.gmra.mrb[0].mxu0 %v464
      %v3215 = vpop.f32.mrb[0].mxu0
      %v3216 = vadd.f32 0.0, %v3215
      %v3217 = vpop.f32.mrb[0].mxu0
      %v3218 = vpop.f32.mrb[0].mxu0
      %v3219 = vadd.f32 0.0, %v3218
      %v3220 = vpop.f32.mrb[0].mxu0
      %3221 = vmatprep.mubr.bf16.mxu0 0
      %3222 = vmatmul.mubr.bf16.gmra.mrb[0].mxu0 %v467
      %v3223 = vpop.f32.mrb[0].mxu0
      %v3224 = vadd.f32 0.0, %v3223
      %v3225 = vpop.f32.mrb[0].mxu0
      %v3226 = vpop.f32.mrb[0].mxu0
      %v3227 = vadd.f32 0.0, %v3226
      %v3228 = vpop.f32.mrb[0].mxu0
      %3229 = vmatprep.mubr.bf16.mxu0 0
      %3230 = vmatmul.mubr.bf16.gmra.mrb[0].mxu0 %v470
      %v3231 = vpop.f32.mrb[0].mxu0
      %v3232 = vadd.f32 0.0, %v3231
      %v3233 = vpop.f32.mrb[0].mxu0
      %v3234 = vpop.f32.mrb[0].mxu0
      %v3235 = vadd.f32 0.0, %v3234
      %v3236 = vpop.f32.mrb[0].mxu0
      %3237 = vmatprep.mubr.bf16.mxu0 0
      %3238 = vmatmul.mubr.bf16.gmra.mrb[0].mxu0 %v473
      %v3239 = vpop.f32.mrb[0].mxu0
      %v3240 = vadd.f32 0.0, %v3239
      %v3241 = vpop.f32.mrb[0].mxu0
      %v3242 = vpop.f32.mrb[0].mxu0
      %v3243 = vadd.f32 0.0, %v3242
      %v3244 = vpop.f32.mrb[0].mxu0
      %3245 = vmatprep.mubr.bf16.mxu0 0
      %3246 = vmatmul.mubr.bf16.gmra.mrb[0].mxu0 %v476
      %v3247 = vpop.f32.mrb[0].mxu0
      %v3248 = vadd.f32 0.0, %v3247
      %v3249 = vpop.f32.mrb[0].mxu0
      %v3250 = vpop.f32.mrb[0].mxu0
      %v3251 = vadd.f32 0.0, %v3250
      %v3252 = vpop.f32.mrb[0].mxu0
      %3253 = vmatprep.mubr.bf16.mxu0 0
      %3254 = vmatmul.mubr.bf16.gmra.mrb[0].mxu0 %v479
      %v3255 = vpop.f32.mrb[0].mxu0
      %v3256 = vadd.f32 0.0, %v3255
      %v3257 = vpop.f32.mrb[0].mxu0
      %v3258 = vpop.f32.mrb[0].mxu0
      %v3259 = vadd.f32 0.0, %v3258
      %v3260 = vpop.f32.mrb[0].mxu0
      %3261 = vmatprep.mubr.bf16.mxu0 0
      %3262 = vmatmul.mubr.bf16.gmra.mrb[0].mxu0 %v482
      %v3263 = vpop.f32.mrb[0].mxu0
      %v3264 = vadd.f32 0.0, %v3263
      %v3265 = vpop.f32.mrb[0].mxu0
      %v3266 = vpop.f32.mrb[0].mxu0
      %v3267 = vadd.f32 0.0, %v3266
      %v3268 = vpop.f32.mrb[0].mxu0
      %3269 = vmatprep.mubr.bf16.mxu0 0
      %3270 = vmatmul.mubr.bf16.gmra.mrb[0].mxu0 %v485
      %v3271 = vpop.f32.mrb[0].mxu0
      %v3272 = vadd.f32 0.0, %v3271
      %v3273 = vpop.f32.mrb[0].mxu0
      %v3274 = vpop.f32.mrb[0].mxu0
      %v3275 = vadd.f32 0.0, %v3274
      %v3276 = vpop.f32.mrb[0].mxu0
      %3277 = vmatprep.mubr.bf16.mxu0 0
      %3278 = vmatmul.mubr.bf16.gmra.mrb[0].mxu0 %v488
      %v3279 = vpop.f32.mrb[0].mxu0
      %v3280 = vadd.f32 0.0, %v3279
      %v3281 = vpop.f32.mrb[0].mxu0
      %v3282 = vpop.f32.mrb[0].mxu0
      %v3283 = vadd.f32 0.0, %v3282
      %v3284 = vpop.f32.mrb[0].mxu0
      %3285 = vmatprep.mubr.bf16.mxu0 0
      %3286 = vmatmul.mubr.bf16.gmra.mrb[0].mxu0 %v491
      %v3287 = vpop.f32.mrb[0].mxu0
      %v3288 = vadd.f32 0.0, %v3287
      %v3289 = vpop.f32.mrb[0].mxu0
      %v3290 = vpop.f32.mrb[0].mxu0
      %v3291 = vadd.f32 0.0, %v3290
      %v3292 = vpop.f32.mrb[0].mxu0
      %3293 = vmatprep.mubr.bf16.mxu0 0
      %3294 = vmatmul.mubr.bf16.gmra.mrb[0].mxu0 %v494
      %v3295 = vpop.f32.mrb[0].mxu0
      %v3296 = vadd.f32 0.0, %v3295
      %v3297 = vpop.f32.mrb[0].mxu0
      %v3298 = vpop.f32.mrb[0].mxu0
      %v3299 = vadd.f32 0.0, %v3298
      %v3300 = vpop.f32.mrb[0].mxu0
      %3301 = vmatprep.mubr.bf16.mxu0 0
      %3302 = vmatmul.mubr.bf16.gmra.mrb[0].mxu0 %v497
      %v3303 = vpop.f32.mrb[0].mxu0
      %v3304 = vadd.f32 0.0, %v3303
      %v3305 = vpop.f32.mrb[0].mxu0
      %v3306 = vpop.f32.mrb[0].mxu0
      %v3307 = vadd.f32 0.0, %v3306
      %v3308 = vpop.f32.mrb[0].mxu0
      %3309 = vmatprep.mubr.bf16.mxu0 0
      %3310 = vmatmul.mubr.bf16.gmra.mrb[0].mxu0 %v500
      %v3311 = vpop.f32.mrb[0].mxu0
      %v3312 = vadd.f32 0.0, %v3311
      %v3313 = vpop.f32.mrb[0].mxu0
      %v3314 = vpop.f32.mrb[0].mxu0
      %v3315 = vadd.f32 0.0, %v3314
      %v3316 = vpop.f32.mrb[0].mxu0
      %3317 = vmatprep.mubr.bf16.mxu0 0
      %3318 = vmatmul.mubr.bf16.gmra.mrb[0].mxu0 %v503
      %v3319 = vpop.f32.mrb[0].mxu0
      %v3320 = vadd.f32 0.0, %v3319
      %v3321 = vpop.f32.mrb[0].mxu0
      %v3322 = vpop.f32.mrb[0].mxu0
      %v3323 = vadd.f32 0.0, %v3322
      %v3324 = vpop.f32.mrb[0].mxu0
      %3325 = vdwg.mxu0
      %v3327 = vsel %vm767, %v3144, 0
      %v3330 = vsel %vm767, %v3145, 0
      %v3333 = vsel %vm767, %v3146, 0
      %v3336 = vsel %vm767, %v3147, 0
      %v3339 = vsel %vm767, %v3148, 0
      %v3342 = vsel %vm767, %v3149, 0
      %v3345 = vsel %vm767, %v3150, 0
      %v3348 = vsel %vm767, %v3151, 0
      %v3351 = vsel %vm767, %v3152, 0
      %v3354 = vsel %vm767, %v3153, 0
      %v3357 = vsel %vm767, %v3154, 0
      %v3360 = vsel %vm767, %v3155, 0
      %v3363 = vsel %vm767, %v3156, 0
      %v3366 = vsel %vm767, %v3157, 0
      %v3369 = vsel %vm767, %v3158, 0
      %v3372 = vsel %vm767, %v3159, 0
      %v3375 = vsel %vm2883, %v3160, 0
      %3377 = vmatprep.subr.bf16.mxu0 0
      %3378 = vmatpush1.bf16.msra.mxu0 %v3375
      %3379 = vmatprep.subr.bf16.mxu0 0
      %3380 = vmatpush1.bf16.msra.mxu0 0
      %3381 = vmatprep.subr.bf16.mxu0 0
      %3382 = vmatpush1.bf16.msra.mxu0 0
      %3383 = vmatprep.subr.bf16.mxu0 0
      %3384 = vmatpush1.bf16.msra.mxu0 0
      %3385 = vmatprep.subr.bf16.mxu0 0
      %3386 = vmatpush1.bf16.msra.mxu0 0
      %3387 = vmatprep.subr.bf16.mxu0 0
      %3388 = vmatpush1.bf16.msra.mxu0 0
      %3389 = vmatprep.subr.bf16.mxu0 0
      %3390 = vmatpush1.bf16.msra.mxu0 0
      %3391 = vmatprep.subr.bf16.mxu0 0
      %3392 = vmatpush1.bf16.msra.mxu0 0
      %3393 = vmatprep.subr.bf16.mxu0 0
      %3394 = vmatpush1.bf16.msra.mxu0 0
      %3395 = vmatprep.subr.bf16.mxu0 0
      %3396 = vmatpush1.bf16.msra.mxu0 0
      %3397 = vmatprep.subr.bf16.mxu0 0
      %3398 = vmatpush1.bf16.msra.mxu0 0
      %3399 = vmatprep.subr.bf16.mxu0 0
      %3400 = vmatpush1.bf16.msra.mxu0 0
      %3401 = vmatprep.subr.bf16.mxu0 0
      %3402 = vmatpush1.bf16.msra.mxu0 0
      %3403 = vmatprep.subr.bf16.mxu0 0
      %3404 = vmatpush1.bf16.msra.mxu0 0
      %3405 = vmatprep.subr.bf16.mxu0 0
      %3406 = vmatpush1.bf16.msra.mxu0 0
      %3407 = vmatprep.subr.bf16.mxu0 0
      %3408 = vmatpush1.bf16.msra.mxu0 0
      %3409 = vmatprep.mubr.bf16.mxu0 0
      %3410 = vmatmul.mubr.bf16.gmra.mrb[0].mxu0 %v3327
      %v3411 = vpop.f32.mrb[0].mxu0
      %v3412 = vadd.f32 %v3200, %v3411
      %v3413 = vpop.f32.mrb[0].mxu0
      %v3414 = vpop.f32.mrb[0].mxu0
      %v3415 = vadd.f32 %v3203, %v3414
      %v3416 = vpop.f32.mrb[0].mxu0
      %3417 = vmatprep.mubr.bf16.mxu0 0
      %3418 = vmatmul.mubr.bf16.gmra.mrb[0].mxu0 %v3330
      %v3419 = vpop.f32.mrb[0].mxu0
      %v3420 = vadd.f32 %v3208, %v3419
      %v3421 = vpop.f32.mrb[0].mxu0
      %v3422 = vpop.f32.mrb[0].mxu0
      %v3423 = vadd.f32 %v3211, %v3422
      %v3424 = vpop.f32.mrb[0].mxu0
      %3425 = vmatprep.mubr.bf16.mxu0 0
      %3426 = vmatmul.mubr.bf16.gmra.mrb[0].mxu0 %v3333
      %v3427 = vpop.f32.mrb[0].mxu0
      %v3428 = vadd.f32 %v3216, %v3427
      %v3429 = vpop.f32.mrb[0].mxu0
      %v3430 = vpop.f32.mrb[0].mxu0
      %v3431 = vadd.f32 %v3219, %v3430
      %v3432 = vpop.f32.mrb[0].mxu0
      %3433 = vmatprep.mubr.bf16.mxu0 0
      %3434 = vmatmul.mubr.bf16.gmra.mrb[0].mxu0 %v3336
      %v3435 = vpop.f32.mrb[0].mxu0
      %v3436 = vadd.f32 %v3224, %v3435
      %v3437 = vpop.f32.mrb[0].mxu0
      %v3438 = vpop.f32.mrb[0].mxu0
      %v3439 = vadd.f32 %v3227, %v3438
      %v3440 = vpop.f32.mrb[0].mxu0
      %3441 = vmatprep.mubr.bf16.mxu0 0
      %3442 = vmatmul.mubr.bf16.gmra.mrb[0].mxu0 %v3339
      %v3443 = vpop.f32.mrb[0].mxu0
      %v3444 = vadd.f32 %v3232, %v3443
      %v3445 = vpop.f32.mrb[0].mxu0
      %v3446 = vpop.f32.mrb[0].mxu0
      %v3447 = vadd.f32 %v3235, %v3446
      %v3448 = vpop.f32.mrb[0].mxu0
      %3449 = vmatprep.mubr.bf16.mxu0 0
      %3450 = vmatmul.mubr.bf16.gmra.mrb[0].mxu0 %v3342
      %v3451 = vpop.f32.mrb[0].mxu0
      %v3452 = vadd.f32 %v3240, %v3451
      %v3453 = vpop.f32.mrb[0].mxu0
      %v3454 = vpop.f32.mrb[0].mxu0
      %v3455 = vadd.f32 %v3243, %v3454
      %v3456 = vpop.f32.mrb[0].mxu0
      %3457 = vmatprep.mubr.bf16.mxu0 0
      %3458 = vmatmul.mubr.bf16.gmra.mrb[0].mxu0 %v3345
      %v3459 = vpop.f32.mrb[0].mxu0
      %v3460 = vadd.f32 %v3248, %v3459
      %v3461 = vpop.f32.mrb[0].mxu0
      %v3462 = vpop.f32.mrb[0].mxu0
      %v3463 = vadd.f32 %v3251, %v3462
      %v3464 = vpop.f32.mrb[0].mxu0
      %3465 = vmatprep.mubr.bf16.mxu0 0
      %3466 = vmatmul.mubr.bf16.gmra.mrb[0].mxu0 %v3348
      %v3467 = vpop.f32.mrb[0].mxu0
      %v3468 = vadd.f32 %v3256, %v3467
      %v3469 = vpop.f32.mrb[0].mxu0
      %v3470 = vpop.f32.mrb[0].mxu0
      %v3471 = vadd.f32 %v3259, %v3470
      %v3472 = vpop.f32.mrb[0].mxu0
      %3473 = vmatprep.mubr.bf16.mxu0 0
      %3474 = vmatmul.mubr.bf16.gmra.mrb[0].mxu0 %v3351
      %v3475 = vpop.f32.mrb[0].mxu0
      %v3476 = vadd.f32 %v3264, %v3475
      %v3477 = vpop.f32.mrb[0].mxu0
      %v3478 = vpop.f32.mrb[0].mxu0
      %v3479 = vadd.f32 %v3267, %v3478
      %v3480 = vpop.f32.mrb[0].mxu0
      %3481 = vmatprep.mubr.bf16.mxu0 0
      %3482 = vmatmul.mubr.bf16.gmra.mrb[0].mxu0 %v3354
      %v3483 = vpop.f32.mrb[0].mxu0
      %v3484 = vadd.f32 %v3272, %v3483
      %v3485 = vpop.f32.mrb[0].mxu0
      %v3486 = vpop.f32.mrb[0].mxu0
      %v3487 = vadd.f32 %v3275, %v3486
      %v3488 = vpop.f32.mrb[0].mxu0
      %3489 = vmatprep.mubr.bf16.mxu0 0
      %3490 = vmatmul.mubr.bf16.gmra.mrb[0].mxu0 %v3357
      %v3491 = vpop.f32.mrb[0].mxu0
      %v3492 = vadd.f32 %v3280, %v3491
      %v3493 = vpop.f32.mrb[0].mxu0
      %v3494 = vpop.f32.mrb[0].mxu0
      %v3495 = vadd.f32 %v3283, %v3494
      %v3496 = vpop.f32.mrb[0].mxu0
      %3497 = vmatprep.mubr.bf16.mxu0 0
      %3498 = vmatmul.mubr.bf16.gmra.mrb[0].mxu0 %v3360
      %v3499 = vpop.f32.mrb[0].mxu0
      %v3500 = vadd.f32 %v3288, %v3499
      %v3501 = vpop.f32.mrb[0].mxu0
      %v3502 = vpop.f32.mrb[0].mxu0
      %v3503 = vadd.f32 %v3291, %v3502
      %v3504 = vpop.f32.mrb[0].mxu0
      %3505 = vmatprep.mubr.bf16.mxu0 0
      %3506 = vmatmul.mubr.bf16.gmra.mrb[0].mxu0 %v3363
      %v3507 = vpop.f32.mrb[0].mxu0
      %v3508 = vadd.f32 %v3296, %v3507
      %v3509 = vpop.f32.mrb[0].mxu0
      %v3510 = vpop.f32.mrb[0].mxu0
      %v3511 = vadd.f32 %v3299, %v3510
      %v3512 = vpop.f32.mrb[0].mxu0
      %3513 = vmatprep.mubr.bf16.mxu0 0
      %3514 = vmatmul.mubr.bf16.gmra.mrb[0].mxu0 %v3366
      %v3515 = vpop.f32.mrb[0].mxu0
      %v3516 = vadd.f32 %v3304, %v3515
      %v3517 = vpop.f32.mrb[0].mxu0
      %v3518 = vpop.f32.mrb[0].mxu0
      %v3519 = vadd.f32 %v3307, %v3518
      %v3520 = vpop.f32.mrb[0].mxu0
      %3521 = vmatprep.mubr.bf16.mxu0 0
      %3522 = vmatmul.mubr.bf16.gmra.mrb[0].mxu0 %v3369
      %v3523 = vpop.f32.mrb[0].mxu0
      %v3524 = vadd.f32 %v3312, %v3523
      %v3525 = vpop.f32.mrb[0].mxu0
      %v3526 = vpop.f32.mrb[0].mxu0
      %v3527 = vadd.f32 %v3315, %v3526
      %v3528 = vpop.f32.mrb[0].mxu0
      %3529 = vmatprep.mubr.bf16.mxu0 0
      %3530 = vmatmul.mubr.bf16.gmra.mrb[0].mxu0 %v3372
      %v3531 = vpop.f32.mrb[0].mxu0
      %v3532 = vadd.f32 %v3320, %v3531
      %v3533 = vpop.f32.mrb[0].mxu0
      %v3534 = vpop.f32.mrb[0].mxu0
      %v3535 = vadd.f32 %v3323, %v3534
      %v3536 = vpop.f32.mrb[0].mxu0
      %3537 = vdwg.mxu0
      %v3538 = vld [vmem:[%s7] sm:$0x1]
      %v3540 = vlaneseq
      %v3541 = vshrl.u32 %v3540, 7
      %v3542 = vsub.s32 0, %v3541
      %v3543 = vrot.slane %v3538, %v3542
      %v3545 = vadd.f32 %v3412, %v3543
      %v3546 = vadd.f32 %v3415, %v3543
      %v3547 = vadd.f32 %v3420, %v3543
      %v3548 = vadd.f32 %v3423, %v3543
      %v3549 = vadd.f32 %v3428, %v3543
      %v3550 = vadd.f32 %v3431, %v3543
      %v3551 = vadd.f32 %v3436, %v3543
      %v3552 = vadd.f32 %v3439, %v3543
      %v3553 = vadd.f32 %v3444, %v3543
      %v3554 = vadd.f32 %v3447, %v3543
      %v3555 = vadd.f32 %v3452, %v3543
      %v3556 = vadd.f32 %v3455, %v3543
      %v3557 = vadd.f32 %v3460, %v3543
      %v3558 = vadd.f32 %v3463, %v3543
      %v3559 = vadd.f32 %v3468, %v3543
      %v3560 = vadd.f32 %v3471, %v3543
      %v3561 = vadd.f32 %v3476, %v3543
      %v3562 = vadd.f32 %v3479, %v3543
      %v3563 = vadd.f32 %v3484, %v3543
      %v3564 = vadd.f32 %v3487, %v3543
      %v3565 = vadd.f32 %v3492, %v3543
      %v3566 = vadd.f32 %v3495, %v3543
      %v3567 = vadd.f32 %v3500, %v3543
      %v3568 = vadd.f32 %v3503, %v3543
      %v3569 = vadd.f32 %v3508, %v3543
      %v3570 = vadd.f32 %v3511, %v3543
      %v3571 = vadd.f32 %v3516, %v3543
      %v3572 = vadd.f32 %v3519, %v3543
      %v3573 = vadd.f32 %v3524, %v3543
      %v3574 = vadd.f32 %v3527, %v3543
      %v3575 = vadd.f32 %v3532, %v3543
      %v3576 = vadd.f32 %v3535, %v3543
      %vm3577 = vcmp.ge.f32.partialorder %v3545, 0.0
      %vm3578 = vcmp.ge.f32.partialorder %v3546, 0.0
      %vm3579 = vcmp.ge.f32.partialorder %v3547, 0.0
      %vm3580 = vcmp.ge.f32.partialorder %v3548, 0.0
      %vm3581 = vcmp.ge.f32.partialorder %v3549, 0.0
      %vm3582 = vcmp.ge.f32.partialorder %v3550, 0.0
      %vm3583 = vcmp.ge.f32.partialorder %v3551, 0.0
      %vm3584 = vcmp.ge.f32.partialorder %v3552, 0.0
      %vm3585 = vcmp.ge.f32.partialorder %v3553, 0.0
      %vm3586 = vcmp.ge.f32.partialorder %v3554, 0.0
      %vm3587 = vcmp.ge.f32.partialorder %v3555, 0.0
      %vm3588 = vcmp.ge.f32.partialorder %v3556, 0.0
      %vm3589 = vcmp.ge.f32.partialorder %v3557, 0.0
      %vm3590 = vcmp.ge.f32.partialorder %v3558, 0.0
      %vm3591 = vcmp.ge.f32.partialorder %v3559, 0.0
      %vm3592 = vcmp.ge.f32.partialorder %v3560, 0.0
      %vm3593 = vcmp.ge.f32.partialorder %v3561, 0.0
      %vm3594 = vcmp.ge.f32.partialorder %v3562, 0.0
      %vm3595 = vcmp.ge.f32.partialorder %v3563, 0.0
      %vm3596 = vcmp.ge.f32.partialorder %v3564, 0.0
      %vm3597 = vcmp.ge.f32.partialorder %v3565, 0.0
      %vm3598 = vcmp.ge.f32.partialorder %v3566, 0.0
      %vm3599 = vcmp.ge.f32.partialorder %v3567, 0.0
      %vm3600 = vcmp.ge.f32.partialorder %v3568, 0.0
      %vm3601 = vcmp.ge.f32.partialorder %v3569, 0.0
      %vm3602 = vcmp.ge.f32.partialorder %v3570, 0.0
      %vm3603 = vcmp.ge.f32.partialorder %v3571, 0.0
      %vm3604 = vcmp.ge.f32.partialorder %v3572, 0.0
      %vm3605 = vcmp.ge.f32.partialorder %v3573, 0.0
      %vm3606 = vcmp.ge.f32.partialorder %v3574, 0.0
      %vm3607 = vcmp.ge.f32.partialorder %v3575, 0.0
      %vm3608 = vcmp.ge.f32.partialorder %v3576, 0.0
      %v3609 = vmul.f32 %v702, %v3545
      %v3610 = vmul.f32 %v702, %v3546
      %v3611 = vmul.f32 %v702, %v3547
      %v3612 = vmul.f32 %v702, %v3548
      %v3613 = vmul.f32 %v702, %v3549
      %v3614 = vmul.f32 %v702, %v3550
      %v3615 = vmul.f32 %v702, %v3551
      %v3616 = vmul.f32 %v702, %v3552
      %v3617 = vmul.f32 %v702, %v3553
      %v3618 = vmul.f32 %v702, %v3554
      %v3619 = vmul.f32 %v702, %v3555
      %v3620 = vmul.f32 %v702, %v3556
      %v3621 = vmul.f32 %v702, %v3557
      %v3622 = vmul.f32 %v702, %v3558
      %v3623 = vmul.f32 %v702, %v3559
      %v3624 = vmul.f32 %v702, %v3560
      %v3625 = vmul.f32 %v702, %v3561
      %v3626 = vmul.f32 %v702, %v3562
      %v3627 = vmul.f32 %v702, %v3563
      %v3628 = vmul.f32 %v702, %v3564
      %v3629 = vmul.f32 %v702, %v3565
      %v3630 = vmul.f32 %v702, %v3566
      %v3631 = vmul.f32 %v702, %v3567
      %v3632 = vmul.f32 %v702, %v3568
      %v3633 = vmul.f32 %v702, %v3569
      %v3634 = vmul.f32 %v702, %v3570
      %v3635 = vmul.f32 %v702, %v3571
      %v3636 = vmul.f32 %v702, %v3572
      %v3637 = vmul.f32 %v702, %v3573
      %v3638 = vmul.f32 %v702, %v3574
      %v3639 = vmul.f32 %v702, %v3575
      %v3640 = vmul.f32 %v702, %v3576
      %v3641 = vsel %vm3577, %v3545, %v3609
      %v3642 = vsel %vm3578, %v3546, %v3610
      %v3643 = vsel %vm3579, %v3547, %v3611
      %v3644 = vsel %vm3580, %v3548, %v3612
      %v3645 = vsel %vm3581, %v3549, %v3613
      %v3646 = vsel %vm3582, %v3550, %v3614
      %v3647 = vsel %vm3583, %v3551, %v3615
      %v3648 = vsel %vm3584, %v3552, %v3616
      %v3649 = vsel %vm3585, %v3553, %v3617
      %v3650 = vsel %vm3586, %v3554, %v3618
      %v3651 = vsel %vm3587, %v3555, %v3619
      %v3652 = vsel %vm3588, %v3556, %v3620
      %v3653 = vsel %vm3589, %v3557, %v3621
      %v3654 = vsel %vm3590, %v3558, %v3622
      %v3655 = vsel %vm3591, %v3559, %v3623
      %v3656 = vsel %vm3592, %v3560, %v3624
      %v3657 = vsel %vm3593, %v3561, %v3625
      %v3658 = vsel %vm3594, %v3562, %v3626
      %v3659 = vsel %vm3595, %v3563, %v3627
      %v3660 = vsel %vm3596, %v3564, %v3628
      %v3661 = vsel %vm3597, %v3565, %v3629
      %v3662 = vsel %vm3598, %v3566, %v3630
      %v3663 = vsel %vm3599, %v3567, %v3631
      %v3664 = vsel %vm3600, %v3568, %v3632
      %v3665 = vsel %vm3601, %v3569, %v3633
      %v3666 = vsel %vm3602, %v3570, %v3634
      %v3667 = vsel %vm3603, %v3571, %v3635
      %v3668 = vsel %vm3604, %v3572, %v3636
      %v3669 = vsel %vm3605, %v3573, %v3637
      %v3670 = vsel %vm3606, %v3574, %v3638
      %v3671 = vsel %vm3607, %v3575, %v3639
      %v3672 = vsel %vm3608, %v3576, %v3640
      %3673 = vst.msk [vmem:[%s333] sm:$0xff] %vm2610, %v3641
      %3674 = vst.msk [vmem:[%s333 + $0x8] sm:$0xff] %vm2610, %v3642
      %3675 = vst.msk [vmem:[%s333 + $0x10] sm:$0xff] %vm2610, %v3643
      %3676 = vst.msk [vmem:[%s333 + $0x18] sm:$0xff] %vm2610, %v3644
      %3677 = vst.msk [vmem:[%s333 + $0x20] sm:$0xff] %vm2610, %v3645
      %3678 = vst.msk [vmem:[%s333 + $0x28] sm:$0xff] %vm2610, %v3646
      %3679 = vst.msk [vmem:[%s333 + $0x30] sm:$0xff] %vm2610, %v3647
      %3680 = vst.msk [vmem:[%s333 + $0x38] sm:$0xff] %vm2610, %v3648
      %3681 = vst.msk [vmem:[%s333 + $0x40] sm:$0xff] %vm2610, %v3649
      %3682 = vst.msk [vmem:[%s333 + $0x48] sm:$0xff] %vm2610, %v3650
      %3683 = vst.msk [vmem:[%s333 + $0x50] sm:$0xff] %vm2610, %v3651
      %3684 = vst.msk [vmem:[%s333 + $0x58] sm:$0xff] %vm2610, %v3652
      %3685 = vst.msk [vmem:[%s333 + $0x60] sm:$0xff] %vm2610, %v3653
      %3686 = vst.msk [vmem:[%s333 + $0x68] sm:$0xff] %vm2610, %v3654
      %3687 = vst.msk [vmem:[%s333 + $0x70] sm:$0xff] %vm2610, %v3655
      %3688 = vst.msk [vmem:[%s333 + $0x78] sm:$0xff] %vm2610, %v3656
      %3689 = vst.msk [vmem:[%s333 + $0x80] sm:$0xff] %vm2610, %v3657
      %3690 = vst.msk [vmem:[%s333 + $0x88] sm:$0xff] %vm2610, %v3658
      %3691 = vst.msk [vmem:[%s333 + $0x90] sm:$0xff] %vm2610, %v3659
      %3692 = vst.msk [vmem:[%s333 + $0x98] sm:$0xff] %vm2610, %v3660
      %3693 = vst.msk [vmem:[%s333 + $0xa0] sm:$0xff] %vm2610, %v3661
      %3694 = vst.msk [vmem:[%s333 + $0xa8] sm:$0xff] %vm2610, %v3662
      %3695 = vst.msk [vmem:[%s333 + $0xb0] sm:$0xff] %vm2610, %v3663
      %3696 = vst.msk [vmem:[%s333 + $0xb8] sm:$0xff] %vm2610, %v3664
      %3697 = vst.msk [vmem:[%s333 + $0xc0] sm:$0xff] %vm2610, %v3665
      %3698 = vst.msk [vmem:[%s333 + $0xc8] sm:$0xff] %vm2610, %v3666
      %3699 = vst.msk [vmem:[%s333 + $0xd0] sm:$0xff] %vm2610, %v3667
      %3700 = vst.msk [vmem:[%s333 + $0xd8] sm:$0xff] %vm2610, %v3668
      %3701 = vst.msk [vmem:[%s333 + $0xe0] sm:$0xff] %vm2610, %v3669
      %3702 = vst.msk [vmem:[%s333 + $0xe8] sm:$0xff] %vm2610, %v3670
      %3703 = vst.msk [vmem:[%s333 + $0xf0] sm:$0xff] %vm2610, %v3671
      %3704 = vst.msk [vmem:[%s333 + $0xf8] sm:$0xff] %vm2610, %v3672
      %p3705 = scmp.lt.s32.totalorder %s21, 1
      %s3706 = scalar_select %p3705, %s21, 1
      %s3707 = smul.addr %s3706, 32
      %s3708 = smul.addr %s3707, 8
      %s3709 = scalar_lea.vmem %s9, %s3708
      // Predicated region
      $region57: #{tpu_custom_call.1} parent=55 // pred_check
        %p3710 = pneg %p233
      $region58: #{tpu_custom_call.1} parent=55 // pred_check_branch
        %3712 = sbr.rel (%p3710) target = $region60
      $region59: #{tpu_custom_call.1} parent=55 // pred_region
        _
      $region60: #{tpu_custom_call.1} parent=55 // pred_fallthru
        _
    $region56: #{tpu_custom_call.1} parent=5 // pred_fallthru
      _
    %p3713 = scmp.le.s32.totalorder 2, %s16
    // Predicated region
    $region61: #{tpu_custom_call.1} parent=5 // pred_check
      %p3714 = pneg %p3713
    $region62: #{tpu_custom_call.1} parent=5 // pred_check_branch
      %3716 = sbr.rel (%p3714) target = $region64
    $region63: #{tpu_custom_call.1} parent=5 // pred_region
      %s3717 = ssub.s32 %s16, 2
      // Predicated region
      $region65: #{tpu_custom_call.1} parent=63 // pred_check
        %p3718 = pneg %p239
      $region66: #{tpu_custom_call.1} parent=63 // pred_check_branch
        %3720 = sbr.rel (%p3718) target = $region68
      $region67: #{tpu_custom_call.1} parent=63 // pred_region
        %p3721 = scmp.lt.s32.totalorder %s22, 1
        %s3722 = scalar_select %p3721, %s22, 1
        %s3723 = smul.addr %s3722, 32
        %s3724 = smul.addr %s3723, 8
        %s3725 = scalar_lea.vmem %s9, %s3724
      $region68: #{tpu_custom_call.1} parent=63 // pred_fallthru
        _
    $region64: #{tpu_custom_call.1} parent=5 // pred_fallthru
      _
  $region6: #{tpu_custom_call.1} parent=0 // loop_footer
    %s20 = sadd.s32 1, %s16
  $region7: #{tpu_custom_call.1} parent=0 // loop_footer_branch
    %15 = sbr.rel target = $region3
  $region8: #{tpu_custom_call.1} parent=0 // loop_exit
    _

</llo_original>
